<compile_context>
chip_gen: v5e
topology: v5e:2x2
jax: 0.10.0
libtpu: 0.0.40
codegen_flags: <defaults>
</compile_context>

<pallas_src>
import jax
import jax.numpy as jnp
import numpy as np
from jax.experimental import pallas as pl
from jax.experimental.pallas import tpu as pltpu


def _round_up(x, m):
    return ((x + m - 1) // m) * m


def _tap_masks(hrow, wrow, s_pad):
    """(9, s_pad) 0/1 masks for a flat row-major 'same' 3x3 conv.

    mask[t, i] == 1 iff destination flat index i is a valid pixel AND tap
    t = 3*(dh+1)+(dw+1) reads an in-bounds source pixel (handles row-boundary
    crossings, top/bottom rows, roll wrap-around and the lane padding at once).
    Built with numpy at trace time -> baked in as a constant.
    """
    i = np.arange(s_pad)
    r = i // wrow
    c = i % wrow
    valid = i < hrow * wrow
    masks = []
    for dh in (-1, 0, 1):
        for dw in (-1, 0, 1):
            m = valid & (r + dh >= 0) & (r + dh < hrow) & (c + dw >= 0) & (c + dw < wrow)
            masks.append(m.astype(np.float32))
    return jnp.asarray(np.stack(masks))


# ------------------------ module parameters & forward ---------------------- #

def init_params(key, inchannels, n_filters):
    """Deterministic synthetic parameters, shapes matching the PyTorch module."""
    k1, k2, k3, k4 = jax.random.split(key, 4)
    return {
        # ConvTranspose2d(inchannels, n_filters, 3, stride=2): (Cin, Cout, 3, 3)
        "wt": 0.1 * jax.random.normal(k1, (inchannels, n_filters, 3, 3), jnp.float32),
        "bt": 0.1 * jax.random.normal(k2, (n_filters,), jnp.float32),
        # Conv2d(n_filters, n_filters, 3, padding='same'): (Cout, Cin, 3, 3)
        "wc": 0.1 * jax.random.normal(k3, (n_filters, n_filters, 3, 3), jnp.float32),
        "bc": 0.1 * jax.random.normal(k4, (n_filters,), jnp.float32),
    }


@jax.jit
def upsampling_block_forward(params, expansive_input, contractive_input):
    """Pallas forward. Inputs/outputs are NCHW float32, matching PyTorch.

    Note: the reference forward uses `self.conv`, which is not defined in
    __init__; it is interpreted as `self.conv1` (same conv applied twice).
    """
    f32 = jnp.float32
    wt, bt = params["wt"], params["bt"]
    wc, bc = params["wc"], params["bc"]
    n, cin, h, w = expansive_input.shape
    _, nf, hs, ws = contractive_input.shape
    hm, wu = 2 * h + 1, 2 * w + 1
    assert hs == hm, "skip connection height must match the deconv output"
    wm = wu + ws
    su = hm * wu                      # compact "up" layout size
    sm = hm * wm                      # merged layout size
    su_pad = _round_up(su, 128)       # lane-dense padding
    sm_pad = _round_up(sm, 128)

    # ConvTranspose weights -> per-tap plain-conv weights (spatially flipped):
    # (9, Cout, Cin), tap order (dh, dw) row-major over {-1,0,1}^2.
    w1_taps = jnp.transpose(jnp.flip(wt, axis=(2, 3)), (2, 3, 1, 0)).reshape(9, nf, cin).astype(f32)
    # Conv2d weights -> per-tap (9, Cout, Cin), same tap order.
    w2_taps = jnp.transpose(wc, (2, 3, 0, 1)).reshape(9, nf, nf).astype(f32)
    bt2 = bt.reshape(nf, 1).astype(f32)
    bc2 = bc.reshape(nf, 1).astype(f32)

    # Fused H+W dilation (incl. 1-px zero border) scatter: input flat pixel
    # ih*W+iw -> column (1+2*ih)*Wu + (1+2*iw) of the compact dilated layout.
    idx_d = jnp.arange(h * w)
    sd = jnp.zeros((h * w, su_pad), f32).at[
        idx_d, (1 + 2 * (idx_d // w)) * wu + (1 + 2 * (idx_d % w))].set(1.0)
    # "up" (compact, Wu-wide) -> merged (Wm-wide) column scatter.
    idx_u = jnp.arange(su)
    su_mat = jnp.zeros((su_pad, sm_pad), f32).at[
        idx_u, (idx_u // wu) * wm + (idx_u % wu)].set(1.0)
    # skip (Ws-wide) -> merged columns [Wu, Wm) scatter.
    idx_s = jnp.arange(hm * ws)
    ss_mat = jnp.zeros((hm * ws, sm_pad), f32).at[
        idx_s, (idx_s // ws) * wm + wu + (idx_s % ws)].set(1.0)

    mask_u = _tap_masks(hm, wu, su_pad)     # (9, su_pad)
    mask_m = _tap_masks(hm, wm, sm_pad)     # (9, sm_pad)

    # Free wrapper-side flattening of the spatial dims (lane-dense kernel I/O).
    x_flat = expansive_input.reshape(n, cin, h * w).astype(f32)
    skip_flat = contractive_input.reshape(n, nf, hm * ws).astype(f32)

    def conv3x3_acc(x, w_ref, b, mask_ref, wrow, s_pad, relu):
        """'same' 3x3 conv on a flat row-major image: 9 accumulated tap matmuls.

        x: (Cin, s_pad); w_ref: (9, Cout, Cin) ref; b: (Cout, 1);
        mask_ref: (9, s_pad) ref of per-tap validity masks.
        """
        cout = w_ref.shape[1]
        acc = jnp.zeros((cout, s_pad), jnp.float32)
        t = 0
        for dh in (-1, 0, 1):
            for dw in (-1, 0, 1):
                k = dh * wrow + dw
                if k == 0:
                    xs = x                      # center tap: mask not needed
                else:
                    xs = pltpu.roll(x, (-k) % s_pad, axis=1)   # XLU, off VALU path
                    xs = xs * mask_ref[t:t + 1, :]             # zero wrap/boundary
                acc = acc + jnp.dot(w_ref[t], xs, preferred_element_type=jnp.float32)
                t += 1
        acc = acc + b
        if relu:
            acc = jnp.maximum(acc, 0.0)
        return acc

    def kernel(x_ref, skip_ref, sd_ref, su_ref, ss_ref,
               w1_ref, bt_ref, w2_ref, bc_ref, mu_ref, mm_ref, o_ref):
        # ---- stage 1: ConvTranspose2d(Cin, nf, 3, stride=2) -----------------
        # One scatter matmul builds the stride-2-dilated (bordered) image in
        # registers; the flat 3x3 conv with flipped weights gives `up` on the
        # compact (Hm*Wu) layout (no wasted columns).
        dil = jnp.dot(x_ref[0], sd_ref[...], preferred_element_type=jnp.float32)
        up = conv3x3_acc(dil, w1_ref, bt_ref[...], mu_ref, wu, su_pad, relu=False)

        # ---- stage 2: merge = concat([up, skip], dim=W) ---------------------
        # Two lane-dense scatter matmuls + add; no masked row stores, no scratch.
        merged = (jnp.dot(up, su_ref[...], preferred_element_type=jnp.float32)
                  + jnp.dot(skip_ref[0], ss_ref[...], preferred_element_type=jnp.float32))

        # ---- stage 3: conv1 + ReLU, applied twice (shared weights) ----------
        y = conv3x3_acc(merged, w2_ref, bc_ref[...], mm_ref, wm, sm_pad, relu=True)
        y = conv3x3_acc(y, w2_ref, bc_ref[...], mm_ref, wm, sm_pad, relu=True)
        o_ref[0] = y.astype(o_ref.dtype)

    out_flat = pl.pallas_call(
        kernel,
        out_shape=jax.ShapeDtypeStruct((n, nf, sm_pad), f32),
        grid=(n,),
        in_specs=[
            pl.BlockSpec((1, cin, h * w), lambda i: (i, 0, 0)),
            pl.BlockSpec((1, nf, hm * ws), lambda i: (i, 0, 0)),
            pl.BlockSpec((h * w, su_pad), lambda i: (0, 0)),      # dilation scatter
            pl.BlockSpec((su_pad, sm_pad), lambda i: (0, 0)),     # up -> merged scatter
            pl.BlockSpec((hm * ws, sm_pad), lambda i: (0, 0)),    # skip -> merged scatter
            pl.BlockSpec((9, nf, cin), lambda i: (0, 0, 0)),      # deconv tap weights
            pl.BlockSpec((nf, 1), lambda i: (0, 0)),
            pl.BlockSpec((9, nf, nf), lambda i: (0, 0, 0)),       # conv tap weights
            pl.BlockSpec((nf, 1), lambda i: (0, 0)),
            pl.BlockSpec((9, su_pad), lambda i: (0, 0)),          # tap masks (compact)
            pl.BlockSpec((9, sm_pad), lambda i: (0, 0)),          # tap masks (merged)
        ],
        out_specs=pl.BlockSpec((1, nf, sm_pad), lambda i: (i, 0, 0)),
        compiler_params=pltpu.CompilerParams(dimension_semantics=("parallel",)),
    )(x_flat, skip_flat, sd, su_mat, ss_mat,
      w1_taps, bt2, w2_taps, bc2, mask_u, mask_m)

    # Free wrapper-side un-padding + reshape back to NCHW.
    return out_flat[:, :, :sm].reshape(n, nf, hm, wm)


# ---------------------- independent plain-JAX reference -------------------- #

def _ref_forward(params, expansive_input, contractive_input):
    wt, bt = params["wt"], params["bt"]
    wc, bc = params["wc"], params["bc"]
    n, cin, h, w = expansive_input.shape
    nf = wt.shape[1]

    # ConvTranspose2d via scatter formulation (different from the kernel path).
    ho, wo = 2 * h + 1, 2 * w + 1
    up = jnp.zeros((n, nf, ho, wo), jnp.float32)
    for kh in range(3):
        for kw in range(3):
            contrib = jnp.einsum("nchw,cd->ndhw", expansive_input, wt[:, :, kh, kw])
            up = up.at[:, :, kh:kh + 2 * h:2, kw:kw + 2 * w:2].add(contrib)
    up = up + bt[None, :, None, None]

    merge = jnp.concatenate([up, contractive_input], axis=3)

    def conv_same(xx):
        hm_, wm_ = xx.shape[2], xx.shape[3]
        xp = jnp.pad(xx, ((0, 0), (0, 0), (1, 1), (1, 1)))
        out = jnp.zeros((xx.shape[0], wc.shape[0], hm_, wm_), jnp.float32)
        for kh in range(3):
            for kw in range(3):
                out = out + jnp.einsum("nchw,dc->ndhw",
                                       xp[:, :, kh:kh + hm_, kw:kw + wm_],
                                       wc[:, :, kh, kw])
        return out + bc[None, :, None, None]

    y = jax.nn.relu(conv_same(merge))
    y = jax.nn.relu(conv_same(y))
    return y


# ----------------------------------- main ----------------------------------- #

if __name__ == "__main__":
    key = jax.random.PRNGKey(0)
    k_p, k_x, k_s = jax.random.split(key, 3)

    N, Cin, H, W = 2, 4, 8, 8        # expansive input (NCHW)
    n_filters = 8
    Hs, Ws = 2 * H + 1, 2 * W + 1    # skip must match up's height

    params = init_params(k_p, Cin, n_filters)
    expansive = jax.random.normal(k_x, (N, Cin, H, W), jnp.float32)
    contractive = jax.random.normal(k_s, (N, n_filters, Hs, Ws), jnp.float32)

    out = upsampling_block_forward(params, expansive, contractive)
    out = jax.block_until_ready(out)

    ref = _ref_forward(params, expansive, contractive)
    assert out.shape == (N, n_filters, Hs, Ws + (2 * W + 1)), out.shape
    np.testing.assert_allclose(np.asarray(out), np.asarray(ref), rtol=1e-4, atol=1e-4)

    print("KERNEL_OK")
</pallas_src>

<mosaic_0001>
module attributes {stable_mosaic.version = 11 : i64} {
  func.func @kernel(%arg0: i32, %arg1: memref<1x4x64xf32, #tpu.memory_space<vmem>>, %arg2: memref<1x8x289xf32, #tpu.memory_space<vmem>>, %arg3: memref<64x384xf32, #tpu.memory_space<vmem>>, %arg4: memref<384x640xf32, #tpu.memory_space<vmem>>, %arg5: memref<289x640xf32, #tpu.memory_space<vmem>>, %arg6: memref<9x8x4xf32, #tpu.memory_space<vmem>>, %arg7: memref<8x1xf32, #tpu.memory_space<vmem>>, %arg8: memref<9x8x8xf32, #tpu.memory_space<vmem>>, %arg9: memref<8x1xf32, #tpu.memory_space<vmem>>, %arg10: memref<9x384xf32, #tpu.memory_space<vmem>>, %arg11: memref<9x640xf32, #tpu.memory_space<vmem>>, %arg12: memref<1x8x640xf32, #tpu.memory_space<vmem>>) attributes {dimension_semantics = [#tpu.dimension_semantics<parallel>], iteration_bounds = array<i64: 2>, scalar_prefetch = 0 : i64, scratch_operands = 0 : i64, tpu.core_type = #tpu.core_type<tc>, window_params = [{transform_indices = @transform_0, window_bounds = array<i64: 1, 4, 64>}, {transform_indices = @transform_1, window_bounds = array<i64: 1, 8, 289>}, {pipeline_mode = #tpu.pipeline_mode<synchronous>, transform_indices = @transform_2, window_bounds = array<i64: 64, 384>}, {pipeline_mode = #tpu.pipeline_mode<synchronous>, transform_indices = @transform_3, window_bounds = array<i64: 384, 640>}, {pipeline_mode = #tpu.pipeline_mode<synchronous>, transform_indices = @transform_4, window_bounds = array<i64: 289, 640>}, {pipeline_mode = #tpu.pipeline_mode<synchronous>, transform_indices = @transform_5, window_bounds = array<i64: 9, 8, 4>}, {pipeline_mode = #tpu.pipeline_mode<synchronous>, transform_indices = @transform_6, window_bounds = array<i64: 8, 1>}, {pipeline_mode = #tpu.pipeline_mode<synchronous>, transform_indices = @transform_7, window_bounds = array<i64: 9, 8, 8>}, {pipeline_mode = #tpu.pipeline_mode<synchronous>, transform_indices = @transform_8, window_bounds = array<i64: 8, 1>}, {pipeline_mode = #tpu.pipeline_mode<synchronous>, transform_indices = @transform_9, window_bounds = array<i64: 9, 384>}, {pipeline_mode = #tpu.pipeline_mode<synchronous>, transform_indices = @transform_10, window_bounds = array<i64: 9, 640>}, {transform_indices = @transform_11, window_bounds = array<i64: 1, 8, 640>}]} {
    %c0 = arith.constant 0 : index
    %c0_0 = arith.constant 0 : index
    %c0_1 = arith.constant 0 : index
    %0 = vector.load %arg1[%c0, %c0_0, %c0_1] : memref<1x4x64xf32, #tpu.memory_space<vmem>>, vector<1x4x64xf32>
    %1 = vector.shape_cast %0 : vector<1x4x64xf32> to vector<4x64xf32>
    %c0_2 = arith.constant 0 : index
    %c0_3 = arith.constant 0 : index
    %2 = vector.load %arg3[%c0_2, %c0_3] : memref<64x384xf32, #tpu.memory_space<vmem>>, vector<64x384xf32>
    %cst = arith.constant dense<0.000000e+00> : vector<4x384xf32>
    %3 = tpu.matmul %1, %2, %cst {dimension_numbers = #tpu.dot_dimension_numbers<[1], [0], [0], [1], [0, 0, 1, 1], [], []>} : vector<4x64xf32>, vector<64x384xf32>, vector<4x384xf32> -> vector<4x384xf32>
    %c0_4 = arith.constant 0 : index
    %c0_5 = arith.constant 0 : index
    %4 = vector.load %arg7[%c0_4, %c0_5] : memref<8x1xf32, #tpu.memory_space<vmem>>, vector<8x1xf32>
    %cst_6 = arith.constant 0.000000e+00 : f32
    %5 = vector.broadcast %cst_6 : f32 to vector<8x384xf32>
    %c18_i32 = arith.constant 18 : i32
    %6 = tpu.dynamic_rotate %3 by %c18_i32 dim 1 : vector<4x384xf32>, i32 -> vector<4x384xf32>
    %c0_7 = arith.constant 0 : index
    %c0_8 = arith.constant 0 : index
    %7 = vector.load %arg10[%c0_7, %c0_8] : memref<9x384xf32, #tpu.memory_space<vmem>>, vector<1x384xf32>
    %8 = vector.broadcast %7 : vector<1x384xf32> to vector<4x384xf32>
    %9 = arith.mulf %6, %8 : vector<4x384xf32>
    %c0_9 = arith.constant 0 : index
    %c0_10 = arith.constant 0 : index
    %c0_11 = arith.constant 0 : index
    %10 = vector.load %arg6[%c0_9, %c0_10, %c0_11] : memref<9x8x4xf32, #tpu.memory_space<vmem>>, vector<1x8x4xf32>
    %11 = vector.shape_cast %10 : vector<1x8x4xf32> to vector<8x4xf32>
    %cst_12 = arith.constant dense<0.000000e+00> : vector<8x384xf32>
    %12 = tpu.matmul %11, %9, %cst_12 {dimension_numbers = #tpu.dot_dimension_numbers<[1], [0], [0], [1], [0, 0, 1, 1], [], []>} : vector<8x4xf32>, vector<4x384xf32>, vector<8x384xf32> -> vector<8x384xf32>
    %13 = arith.addf %5, %12 : vector<8x384xf32>
    %c17_i32 = arith.constant 17 : i32
    %14 = tpu.dynamic_rotate %3 by %c17_i32 dim 1 : vector<4x384xf32>, i32 -> vector<4x384xf32>
    %c1 = arith.constant 1 : index
    %c0_13 = arith.constant 0 : index
    %15 = vector.load %arg10[%c1, %c0_13] : memref<9x384xf32, #tpu.memory_space<vmem>>, vector<1x384xf32>
    %16 = vector.broadcast %15 : vector<1x384xf32> to vector<4x384xf32>
    %17 = arith.mulf %14, %16 : vector<4x384xf32>
    %c1_14 = arith.constant 1 : index
    %c0_15 = arith.constant 0 : index
    %c0_16 = arith.constant 0 : index
    %18 = vector.load %arg6[%c1_14, %c0_15, %c0_16] : memref<9x8x4xf32, #tpu.memory_space<vmem>>, vector<1x8x4xf32>
    %19 = vector.shape_cast %18 : vector<1x8x4xf32> to vector<8x4xf32>
    %cst_17 = arith.constant dense<0.000000e+00> : vector<8x384xf32>
    %20 = tpu.matmul %19, %17, %cst_17 {dimension_numbers = #tpu.dot_dimension_numbers<[1], [0], [0], [1], [0, 0, 1, 1], [], []>} : vector<8x4xf32>, vector<4x384xf32>, vector<8x384xf32> -> vector<8x384xf32>
    %21 = arith.addf %13, %20 : vector<8x384xf32>
    %c16_i32 = arith.constant 16 : i32
    %22 = tpu.dynamic_rotate %3 by %c16_i32 dim 1 : vector<4x384xf32>, i32 -> vector<4x384xf32>
    %c2 = arith.constant 2 : index
    %c0_18 = arith.constant 0 : index
    %23 = vector.load %arg10[%c2, %c0_18] : memref<9x384xf32, #tpu.memory_space<vmem>>, vector<1x384xf32>
    %24 = vector.broadcast %23 : vector<1x384xf32> to vector<4x384xf32>
    %25 = arith.mulf %22, %24 : vector<4x384xf32>
    %c2_19 = arith.constant 2 : index
    %c0_20 = arith.constant 0 : index
    %c0_21 = arith.constant 0 : index
    %26 = vector.load %arg6[%c2_19, %c0_20, %c0_21] : memref<9x8x4xf32, #tpu.memory_space<vmem>>, vector<1x8x4xf32>
    %27 = vector.shape_cast %26 : vector<1x8x4xf32> to vector<8x4xf32>
    %cst_22 = arith.constant dense<0.000000e+00> : vector<8x384xf32>
    %28 = tpu.matmul %27, %25, %cst_22 {dimension_numbers = #tpu.dot_dimension_numbers<[1], [0], [0], [1], [0, 0, 1, 1], [], []>} : vector<8x4xf32>, vector<4x384xf32>, vector<8x384xf32> -> vector<8x384xf32>
    %29 = arith.addf %21, %28 : vector<8x384xf32>
    %c1_i32 = arith.constant 1 : i32
    %30 = tpu.dynamic_rotate %3 by %c1_i32 dim 1 : vector<4x384xf32>, i32 -> vector<4x384xf32>
    %c3 = arith.constant 3 : index
    %c0_23 = arith.constant 0 : index
    %31 = vector.load %arg10[%c3, %c0_23] : memref<9x384xf32, #tpu.memory_space<vmem>>, vector<1x384xf32>
    %32 = vector.broadcast %31 : vector<1x384xf32> to vector<4x384xf32>
    %33 = arith.mulf %30, %32 : vector<4x384xf32>
    %c3_24 = arith.constant 3 : index
    %c0_25 = arith.constant 0 : index
    %c0_26 = arith.constant 0 : index
    %34 = vector.load %arg6[%c3_24, %c0_25, %c0_26] : memref<9x8x4xf32, #tpu.memory_space<vmem>>, vector<1x8x4xf32>
    %35 = vector.shape_cast %34 : vector<1x8x4xf32> to vector<8x4xf32>
    %cst_27 = arith.constant dense<0.000000e+00> : vector<8x384xf32>
    %36 = tpu.matmul %35, %33, %cst_27 {dimension_numbers = #tpu.dot_dimension_numbers<[1], [0], [0], [1], [0, 0, 1, 1], [], []>} : vector<8x4xf32>, vector<4x384xf32>, vector<8x384xf32> -> vector<8x384xf32>
    %37 = arith.addf %29, %36 : vector<8x384xf32>
    %c4 = arith.constant 4 : index
    %c0_28 = arith.constant 0 : index
    %c0_29 = arith.constant 0 : index
    %38 = vector.load %arg6[%c4, %c0_28, %c0_29] : memref<9x8x4xf32, #tpu.memory_space<vmem>>, vector<1x8x4xf32>
    %39 = vector.shape_cast %38 : vector<1x8x4xf32> to vector<8x4xf32>
    %cst_30 = arith.constant dense<0.000000e+00> : vector<8x384xf32>
    %40 = tpu.matmul %39, %3, %cst_30 {dimension_numbers = #tpu.dot_dimension_numbers<[1], [0], [0], [1], [0, 0, 1, 1], [], []>} : vector<8x4xf32>, vector<4x384xf32>, vector<8x384xf32> -> vector<8x384xf32>
    %41 = arith.addf %37, %40 : vector<8x384xf32>
    %c383_i32 = arith.constant 383 : i32
    %42 = tpu.dynamic_rotate %3 by %c383_i32 dim 1 : vector<4x384xf32>, i32 -> vector<4x384xf32>
    %c5 = arith.constant 5 : index
    %c0_31 = arith.constant 0 : index
    %43 = vector.load %arg10[%c5, %c0_31] : memref<9x384xf32, #tpu.memory_space<vmem>>, vector<1x384xf32>
    %44 = vector.broadcast %43 : vector<1x384xf32> to vector<4x384xf32>
    %45 = arith.mulf %42, %44 : vector<4x384xf32>
    %c5_32 = arith.constant 5 : index
    %c0_33 = arith.constant 0 : index
    %c0_34 = arith.constant 0 : index
    %46 = vector.load %arg6[%c5_32, %c0_33, %c0_34] : memref<9x8x4xf32, #tpu.memory_space<vmem>>, vector<1x8x4xf32>
    %47 = vector.shape_cast %46 : vector<1x8x4xf32> to vector<8x4xf32>
    %cst_35 = arith.constant dense<0.000000e+00> : vector<8x384xf32>
    %48 = tpu.matmul %47, %45, %cst_35 {dimension_numbers = #tpu.dot_dimension_numbers<[1], [0], [0], [1], [0, 0, 1, 1], [], []>} : vector<8x4xf32>, vector<4x384xf32>, vector<8x384xf32> -> vector<8x384xf32>
    %49 = arith.addf %41, %48 : vector<8x384xf32>
    %c368_i32 = arith.constant 368 : i32
    %50 = tpu.dynamic_rotate %3 by %c368_i32 dim 1 : vector<4x384xf32>, i32 -> vector<4x384xf32>
    %c6 = arith.constant 6 : index
    %c0_36 = arith.constant 0 : index
    %51 = vector.load %arg10[%c6, %c0_36] : memref<9x384xf32, #tpu.memory_space<vmem>>, vector<1x384xf32>
    %52 = vector.broadcast %51 : vector<1x384xf32> to vector<4x384xf32>
    %53 = arith.mulf %50, %52 : vector<4x384xf32>
    %c6_37 = arith.constant 6 : index
    %c0_38 = arith.constant 0 : index
    %c0_39 = arith.constant 0 : index
    %54 = vector.load %arg6[%c6_37, %c0_38, %c0_39] : memref<9x8x4xf32, #tpu.memory_space<vmem>>, vector<1x8x4xf32>
    %55 = vector.shape_cast %54 : vector<1x8x4xf32> to vector<8x4xf32>
    %cst_40 = arith.constant dense<0.000000e+00> : vector<8x384xf32>
    %56 = tpu.matmul %55, %53, %cst_40 {dimension_numbers = #tpu.dot_dimension_numbers<[1], [0], [0], [1], [0, 0, 1, 1], [], []>} : vector<8x4xf32>, vector<4x384xf32>, vector<8x384xf32> -> vector<8x384xf32>
    %57 = arith.addf %49, %56 : vector<8x384xf32>
    %c367_i32 = arith.constant 367 : i32
    %58 = tpu.dynamic_rotate %3 by %c367_i32 dim 1 : vector<4x384xf32>, i32 -> vector<4x384xf32>
    %c7 = arith.constant 7 : index
    %c0_41 = arith.constant 0 : index
    %59 = vector.load %arg10[%c7, %c0_41] : memref<9x384xf32, #tpu.memory_space<vmem>>, vector<1x384xf32>
    %60 = vector.broadcast %59 : vector<1x384xf32> to vector<4x384xf32>
    %61 = arith.mulf %58, %60 : vector<4x384xf32>
    %c7_42 = arith.constant 7 : index
    %c0_43 = arith.constant 0 : index
    %c0_44 = arith.constant 0 : index
    %62 = vector.load %arg6[%c7_42, %c0_43, %c0_44] : memref<9x8x4xf32, #tpu.memory_space<vmem>>, vector<1x8x4xf32>
    %63 = vector.shape_cast %62 : vector<1x8x4xf32> to vector<8x4xf32>
    %cst_45 = arith.constant dense<0.000000e+00> : vector<8x384xf32>
    %64 = tpu.matmul %63, %61, %cst_45 {dimension_numbers = #tpu.dot_dimension_numbers<[1], [0], [0], [1], [0, 0, 1, 1], [], []>} : vector<8x4xf32>, vector<4x384xf32>, vector<8x384xf32> -> vector<8x384xf32>
    %65 = arith.addf %57, %64 : vector<8x384xf32>
    %c366_i32 = arith.constant 366 : i32
    %66 = tpu.dynamic_rotate %3 by %c366_i32 dim 1 : vector<4x384xf32>, i32 -> vector<4x384xf32>
    %c8 = arith.constant 8 : index
    %c0_46 = arith.constant 0 : index
    %67 = vector.load %arg10[%c8, %c0_46] : memref<9x384xf32, #tpu.memory_space<vmem>>, vector<1x384xf32>
    %68 = vector.broadcast %67 : vector<1x384xf32> to vector<4x384xf32>
    %69 = arith.mulf %66, %68 : vector<4x384xf32>
    %c8_47 = arith.constant 8 : index
    %c0_48 = arith.constant 0 : index
    %c0_49 = arith.constant 0 : index
    %70 = vector.load %arg6[%c8_47, %c0_48, %c0_49] : memref<9x8x4xf32, #tpu.memory_space<vmem>>, vector<1x8x4xf32>
    %71 = vector.shape_cast %70 : vector<1x8x4xf32> to vector<8x4xf32>
    %cst_50 = arith.constant dense<0.000000e+00> : vector<8x384xf32>
    %72 = tpu.matmul %71, %69, %cst_50 {dimension_numbers = #tpu.dot_dimension_numbers<[1], [0], [0], [1], [0, 0, 1, 1], [], []>} : vector<8x4xf32>, vector<4x384xf32>, vector<8x384xf32> -> vector<8x384xf32>
    %73 = arith.addf %65, %72 : vector<8x384xf32>
    %74 = vector.broadcast %4 : vector<8x1xf32> to vector<8x384xf32>
    %75 = arith.addf %73, %74 : vector<8x384xf32>
    %c0_51 = arith.constant 0 : index
    %c0_52 = arith.constant 0 : index
    %76 = vector.load %arg4[%c0_51, %c0_52] : memref<384x640xf32, #tpu.memory_space<vmem>>, vector<384x640xf32>
    %cst_53 = arith.constant dense<0.000000e+00> : vector<8x640xf32>
    %77 = tpu.matmul %75, %76, %cst_53 {dimension_numbers = #tpu.dot_dimension_numbers<[1], [0], [0], [1], [0, 0, 1, 1], [], []>} : vector<8x384xf32>, vector<384x640xf32>, vector<8x640xf32> -> vector<8x640xf32>
    %c0_54 = arith.constant 0 : index
    %c0_55 = arith.constant 0 : index
    %c0_56 = arith.constant 0 : index
    %78 = vector.load %arg2[%c0_54, %c0_55, %c0_56] : memref<1x8x289xf32, #tpu.memory_space<vmem>>, vector<1x8x289xf32>
    %79 = vector.shape_cast %78 : vector<1x8x289xf32> to vector<8x289xf32>
    %c0_57 = arith.constant 0 : index
    %c0_58 = arith.constant 0 : index
    %80 = vector.load %arg5[%c0_57, %c0_58] : memref<289x640xf32, #tpu.memory_space<vmem>>, vector<289x640xf32>
    %cst_59 = arith.constant dense<0.000000e+00> : vector<8x640xf32>
    %81 = tpu.matmul %79, %80, %cst_59 {dimension_numbers = #tpu.dot_dimension_numbers<[1], [0], [0], [1], [0, 0, 1, 1], [], []>} : vector<8x289xf32>, vector<289x640xf32>, vector<8x640xf32> -> vector<8x640xf32>
    %82 = arith.addf %77, %81 : vector<8x640xf32>
    %c0_60 = arith.constant 0 : index
    %c0_61 = arith.constant 0 : index
    %83 = vector.load %arg9[%c0_60, %c0_61] : memref<8x1xf32, #tpu.memory_space<vmem>>, vector<8x1xf32>
    %cst_62 = arith.constant 0.000000e+00 : f32
    %84 = vector.broadcast %cst_62 : f32 to vector<8x640xf32>
    %c35_i32 = arith.constant 35 : i32
    %85 = tpu.dynamic_rotate %82 by %c35_i32 dim 1 : vector<8x640xf32>, i32 -> vector<8x640xf32>
    %c0_63 = arith.constant 0 : index
    %c0_64 = arith.constant 0 : index
    %86 = vector.load %arg11[%c0_63, %c0_64] : memref<9x640xf32, #tpu.memory_space<vmem>>, vector<1x640xf32>
    %87 = vector.broadcast %86 : vector<1x640xf32> to vector<8x640xf32>
    %88 = arith.mulf %85, %87 : vector<8x640xf32>
    %c0_65 = arith.constant 0 : index
    %c0_66 = arith.constant 0 : index
    %c0_67 = arith.constant 0 : index
    %89 = vector.load %arg8[%c0_65, %c0_66, %c0_67] : memref<9x8x8xf32, #tpu.memory_space<vmem>>, vector<1x8x8xf32>
    %90 = vector.shape_cast %89 : vector<1x8x8xf32> to vector<8x8xf32>
    %cst_68 = arith.constant dense<0.000000e+00> : vector<8x640xf32>
    %91 = tpu.matmul %90, %88, %cst_68 {dimension_numbers = #tpu.dot_dimension_numbers<[1], [0], [0], [1], [0, 0, 1, 1], [], []>} : vector<8x8xf32>, vector<8x640xf32>, vector<8x640xf32> -> vector<8x640xf32>
    %92 = arith.addf %84, %91 : vector<8x640xf32>
    %c34_i32 = arith.constant 34 : i32
    %93 = tpu.dynamic_rotate %82 by %c34_i32 dim 1 : vector<8x640xf32>, i32 -> vector<8x640xf32>
    %c1_69 = arith.constant 1 : index
    %c0_70 = arith.constant 0 : index
    %94 = vector.load %arg11[%c1_69, %c0_70] : memref<9x640xf32, #tpu.memory_space<vmem>>, vector<1x640xf32>
    %95 = vector.broadcast %94 : vector<1x640xf32> to vector<8x640xf32>
    %96 = arith.mulf %93, %95 : vector<8x640xf32>
    %c1_71 = arith.constant 1 : index
    %c0_72 = arith.constant 0 : index
    %c0_73 = arith.constant 0 : index
    %97 = vector.load %arg8[%c1_71, %c0_72, %c0_73] : memref<9x8x8xf32, #tpu.memory_space<vmem>>, vector<1x8x8xf32>
    %98 = vector.shape_cast %97 : vector<1x8x8xf32> to vector<8x8xf32>
    %cst_74 = arith.constant dense<0.000000e+00> : vector<8x640xf32>
    %99 = tpu.matmul %98, %96, %cst_74 {dimension_numbers = #tpu.dot_dimension_numbers<[1], [0], [0], [1], [0, 0, 1, 1], [], []>} : vector<8x8xf32>, vector<8x640xf32>, vector<8x640xf32> -> vector<8x640xf32>
    %100 = arith.addf %92, %99 : vector<8x640xf32>
    %c33_i32 = arith.constant 33 : i32
    %101 = tpu.dynamic_rotate %82 by %c33_i32 dim 1 : vector<8x640xf32>, i32 -> vector<8x640xf32>
    %c2_75 = arith.constant 2 : index
    %c0_76 = arith.constant 0 : index
    %102 = vector.load %arg11[%c2_75, %c0_76] : memref<9x640xf32, #tpu.memory_space<vmem>>, vector<1x640xf32>
    %103 = vector.broadcast %102 : vector<1x640xf32> to vector<8x640xf32>
    %104 = arith.mulf %101, %103 : vector<8x640xf32>
    %c2_77 = arith.constant 2 : index
    %c0_78 = arith.constant 0 : index
    %c0_79 = arith.constant 0 : index
    %105 = vector.load %arg8[%c2_77, %c0_78, %c0_79] : memref<9x8x8xf32, #tpu.memory_space<vmem>>, vector<1x8x8xf32>
    %106 = vector.shape_cast %105 : vector<1x8x8xf32> to vector<8x8xf32>
    %cst_80 = arith.constant dense<0.000000e+00> : vector<8x640xf32>
    %107 = tpu.matmul %106, %104, %cst_80 {dimension_numbers = #tpu.dot_dimension_numbers<[1], [0], [0], [1], [0, 0, 1, 1], [], []>} : vector<8x8xf32>, vector<8x640xf32>, vector<8x640xf32> -> vector<8x640xf32>
    %108 = arith.addf %100, %107 : vector<8x640xf32>
    %c1_i32_81 = arith.constant 1 : i32
    %109 = tpu.dynamic_rotate %82 by %c1_i32_81 dim 1 : vector<8x640xf32>, i32 -> vector<8x640xf32>
    %c3_82 = arith.constant 3 : index
    %c0_83 = arith.constant 0 : index
    %110 = vector.load %arg11[%c3_82, %c0_83] : memref<9x640xf32, #tpu.memory_space<vmem>>, vector<1x640xf32>
    %111 = vector.broadcast %110 : vector<1x640xf32> to vector<8x640xf32>
    %112 = arith.mulf %109, %111 : vector<8x640xf32>
    %c3_84 = arith.constant 3 : index
    %c0_85 = arith.constant 0 : index
    %c0_86 = arith.constant 0 : index
    %113 = vector.load %arg8[%c3_84, %c0_85, %c0_86] : memref<9x8x8xf32, #tpu.memory_space<vmem>>, vector<1x8x8xf32>
    %114 = vector.shape_cast %113 : vector<1x8x8xf32> to vector<8x8xf32>
    %cst_87 = arith.constant dense<0.000000e+00> : vector<8x640xf32>
    %115 = tpu.matmul %114, %112, %cst_87 {dimension_numbers = #tpu.dot_dimension_numbers<[1], [0], [0], [1], [0, 0, 1, 1], [], []>} : vector<8x8xf32>, vector<8x640xf32>, vector<8x640xf32> -> vector<8x640xf32>
    %116 = arith.addf %108, %115 : vector<8x640xf32>
    %c4_88 = arith.constant 4 : index
    %c0_89 = arith.constant 0 : index
    %c0_90 = arith.constant 0 : index
    %117 = vector.load %arg8[%c4_88, %c0_89, %c0_90] : memref<9x8x8xf32, #tpu.memory_space<vmem>>, vector<1x8x8xf32>
    %118 = vector.shape_cast %117 : vector<1x8x8xf32> to vector<8x8xf32>
    %cst_91 = arith.constant dense<0.000000e+00> : vector<8x640xf32>
    %119 = tpu.matmul %118, %82, %cst_91 {dimension_numbers = #tpu.dot_dimension_numbers<[1], [0], [0], [1], [0, 0, 1, 1], [], []>} : vector<8x8xf32>, vector<8x640xf32>, vector<8x640xf32> -> vector<8x640xf32>
    %120 = arith.addf %116, %119 : vector<8x640xf32>
    %c639_i32 = arith.constant 639 : i32
    %121 = tpu.dynamic_rotate %82 by %c639_i32 dim 1 : vector<8x640xf32>, i32 -> vector<8x640xf32>
    %c5_92 = arith.constant 5 : index
    %c0_93 = arith.constant 0 : index
    %122 = vector.load %arg11[%c5_92, %c0_93] : memref<9x640xf32, #tpu.memory_space<vmem>>, vector<1x640xf32>
    %123 = vector.broadcast %122 : vector<1x640xf32> to vector<8x640xf32>
    %124 = arith.mulf %121, %123 : vector<8x640xf32>
    %c5_94 = arith.constant 5 : index
    %c0_95 = arith.constant 0 : index
    %c0_96 = arith.constant 0 : index
    %125 = vector.load %arg8[%c5_94, %c0_95, %c0_96] : memref<9x8x8xf32, #tpu.memory_space<vmem>>, vector<1x8x8xf32>
    %126 = vector.shape_cast %125 : vector<1x8x8xf32> to vector<8x8xf32>
    %cst_97 = arith.constant dense<0.000000e+00> : vector<8x640xf32>
    %127 = tpu.matmul %126, %124, %cst_97 {dimension_numbers = #tpu.dot_dimension_numbers<[1], [0], [0], [1], [0, 0, 1, 1], [], []>} : vector<8x8xf32>, vector<8x640xf32>, vector<8x640xf32> -> vector<8x640xf32>
    %128 = arith.addf %120, %127 : vector<8x640xf32>
    %c607_i32 = arith.constant 607 : i32
    %129 = tpu.dynamic_rotate %82 by %c607_i32 dim 1 : vector<8x640xf32>, i32 -> vector<8x640xf32>
    %c6_98 = arith.constant 6 : index
    %c0_99 = arith.constant 0 : index
    %130 = vector.load %arg11[%c6_98, %c0_99] : memref<9x640xf32, #tpu.memory_space<vmem>>, vector<1x640xf32>
    %131 = vector.broadcast %130 : vector<1x640xf32> to vector<8x640xf32>
    %132 = arith.mulf %129, %131 : vector<8x640xf32>
    %c6_100 = arith.constant 6 : index
    %c0_101 = arith.constant 0 : index
    %c0_102 = arith.constant 0 : index
    %133 = vector.load %arg8[%c6_100, %c0_101, %c0_102] : memref<9x8x8xf32, #tpu.memory_space<vmem>>, vector<1x8x8xf32>
    %134 = vector.shape_cast %133 : vector<1x8x8xf32> to vector<8x8xf32>
    %cst_103 = arith.constant dense<0.000000e+00> : vector<8x640xf32>
    %135 = tpu.matmul %134, %132, %cst_103 {dimension_numbers = #tpu.dot_dimension_numbers<[1], [0], [0], [1], [0, 0, 1, 1], [], []>} : vector<8x8xf32>, vector<8x640xf32>, vector<8x640xf32> -> vector<8x640xf32>
    %136 = arith.addf %128, %135 : vector<8x640xf32>
    %c606_i32 = arith.constant 606 : i32
    %137 = tpu.dynamic_rotate %82 by %c606_i32 dim 1 : vector<8x640xf32>, i32 -> vector<8x640xf32>
    %c7_104 = arith.constant 7 : index
    %c0_105 = arith.constant 0 : index
    %138 = vector.load %arg11[%c7_104, %c0_105] : memref<9x640xf32, #tpu.memory_space<vmem>>, vector<1x640xf32>
    %139 = vector.broadcast %138 : vector<1x640xf32> to vector<8x640xf32>
    %140 = arith.mulf %137, %139 : vector<8x640xf32>
    %c7_106 = arith.constant 7 : index
    %c0_107 = arith.constant 0 : index
    %c0_108 = arith.constant 0 : index
    %141 = vector.load %arg8[%c7_106, %c0_107, %c0_108] : memref<9x8x8xf32, #tpu.memory_space<vmem>>, vector<1x8x8xf32>
    %142 = vector.shape_cast %141 : vector<1x8x8xf32> to vector<8x8xf32>
    %cst_109 = arith.constant dense<0.000000e+00> : vector<8x640xf32>
    %143 = tpu.matmul %142, %140, %cst_109 {dimension_numbers = #tpu.dot_dimension_numbers<[1], [0], [0], [1], [0, 0, 1, 1], [], []>} : vector<8x8xf32>, vector<8x640xf32>, vector<8x640xf32> -> vector<8x640xf32>
    %144 = arith.addf %136, %143 : vector<8x640xf32>
    %c605_i32 = arith.constant 605 : i32
    %145 = tpu.dynamic_rotate %82 by %c605_i32 dim 1 : vector<8x640xf32>, i32 -> vector<8x640xf32>
    %c8_110 = arith.constant 8 : index
    %c0_111 = arith.constant 0 : index
    %146 = vector.load %arg11[%c8_110, %c0_111] : memref<9x640xf32, #tpu.memory_space<vmem>>, vector<1x640xf32>
    %147 = vector.broadcast %146 : vector<1x640xf32> to vector<8x640xf32>
    %148 = arith.mulf %145, %147 : vector<8x640xf32>
    %c8_112 = arith.constant 8 : index
    %c0_113 = arith.constant 0 : index
    %c0_114 = arith.constant 0 : index
    %149 = vector.load %arg8[%c8_112, %c0_113, %c0_114] : memref<9x8x8xf32, #tpu.memory_space<vmem>>, vector<1x8x8xf32>
    %150 = vector.shape_cast %149 : vector<1x8x8xf32> to vector<8x8xf32>
    %cst_115 = arith.constant dense<0.000000e+00> : vector<8x640xf32>
    %151 = tpu.matmul %150, %148, %cst_115 {dimension_numbers = #tpu.dot_dimension_numbers<[1], [0], [0], [1], [0, 0, 1, 1], [], []>} : vector<8x8xf32>, vector<8x640xf32>, vector<8x640xf32> -> vector<8x640xf32>
    %152 = arith.addf %144, %151 : vector<8x640xf32>
    %153 = vector.broadcast %83 : vector<8x1xf32> to vector<8x640xf32>
    %154 = arith.addf %152, %153 : vector<8x640xf32>
    %cst_116 = arith.constant 0.000000e+00 : f32
    %155 = vector.broadcast %cst_116 : f32 to vector<8x640xf32>
    %156 = arith.maximumf %154, %155 : vector<8x640xf32>
    %c0_117 = arith.constant 0 : index
    %c0_118 = arith.constant 0 : index
    %157 = vector.load %arg9[%c0_117, %c0_118] : memref<8x1xf32, #tpu.memory_space<vmem>>, vector<8x1xf32>
    %cst_119 = arith.constant 0.000000e+00 : f32
    %158 = vector.broadcast %cst_119 : f32 to vector<8x640xf32>
    %c35_i32_120 = arith.constant 35 : i32
    %159 = tpu.dynamic_rotate %156 by %c35_i32_120 dim 1 : vector<8x640xf32>, i32 -> vector<8x640xf32>
    %c0_121 = arith.constant 0 : index
    %c0_122 = arith.constant 0 : index
    %160 = vector.load %arg11[%c0_121, %c0_122] : memref<9x640xf32, #tpu.memory_space<vmem>>, vector<1x640xf32>
    %161 = vector.broadcast %160 : vector<1x640xf32> to vector<8x640xf32>
    %162 = arith.mulf %159, %161 : vector<8x640xf32>
    %c0_123 = arith.constant 0 : index
    %c0_124 = arith.constant 0 : index
    %c0_125 = arith.constant 0 : index
    %163 = vector.load %arg8[%c0_123, %c0_124, %c0_125] : memref<9x8x8xf32, #tpu.memory_space<vmem>>, vector<1x8x8xf32>
    %164 = vector.shape_cast %163 : vector<1x8x8xf32> to vector<8x8xf32>
    %cst_126 = arith.constant dense<0.000000e+00> : vector<8x640xf32>
    %165 = tpu.matmul %164, %162, %cst_126 {dimension_numbers = #tpu.dot_dimension_numbers<[1], [0], [0], [1], [0, 0, 1, 1], [], []>} : vector<8x8xf32>, vector<8x640xf32>, vector<8x640xf32> -> vector<8x640xf32>
    %166 = arith.addf %158, %165 : vector<8x640xf32>
    %c34_i32_127 = arith.constant 34 : i32
    %167 = tpu.dynamic_rotate %156 by %c34_i32_127 dim 1 : vector<8x640xf32>, i32 -> vector<8x640xf32>
    %c1_128 = arith.constant 1 : index
    %c0_129 = arith.constant 0 : index
    %168 = vector.load %arg11[%c1_128, %c0_129] : memref<9x640xf32, #tpu.memory_space<vmem>>, vector<1x640xf32>
    %169 = vector.broadcast %168 : vector<1x640xf32> to vector<8x640xf32>
    %170 = arith.mulf %167, %169 : vector<8x640xf32>
    %c1_130 = arith.constant 1 : index
    %c0_131 = arith.constant 0 : index
    %c0_132 = arith.constant 0 : index
    %171 = vector.load %arg8[%c1_130, %c0_131, %c0_132] : memref<9x8x8xf32, #tpu.memory_space<vmem>>, vector<1x8x8xf32>
    %172 = vector.shape_cast %171 : vector<1x8x8xf32> to vector<8x8xf32>
    %cst_133 = arith.constant dense<0.000000e+00> : vector<8x640xf32>
    %173 = tpu.matmul %172, %170, %cst_133 {dimension_numbers = #tpu.dot_dimension_numbers<[1], [0], [0], [1], [0, 0, 1, 1], [], []>} : vector<8x8xf32>, vector<8x640xf32>, vector<8x640xf32> -> vector<8x640xf32>
    %174 = arith.addf %166, %173 : vector<8x640xf32>
    %c33_i32_134 = arith.constant 33 : i32
    %175 = tpu.dynamic_rotate %156 by %c33_i32_134 dim 1 : vector<8x640xf32>, i32 -> vector<8x640xf32>
    %c2_135 = arith.constant 2 : index
    %c0_136 = arith.constant 0 : index
    %176 = vector.load %arg11[%c2_135, %c0_136] : memref<9x640xf32, #tpu.memory_space<vmem>>, vector<1x640xf32>
    %177 = vector.broadcast %176 : vector<1x640xf32> to vector<8x640xf32>
    %178 = arith.mulf %175, %177 : vector<8x640xf32>
    %c2_137 = arith.constant 2 : index
    %c0_138 = arith.constant 0 : index
    %c0_139 = arith.constant 0 : index
    %179 = vector.load %arg8[%c2_137, %c0_138, %c0_139] : memref<9x8x8xf32, #tpu.memory_space<vmem>>, vector<1x8x8xf32>
    %180 = vector.shape_cast %179 : vector<1x8x8xf32> to vector<8x8xf32>
    %cst_140 = arith.constant dense<0.000000e+00> : vector<8x640xf32>
    %181 = tpu.matmul %180, %178, %cst_140 {dimension_numbers = #tpu.dot_dimension_numbers<[1], [0], [0], [1], [0, 0, 1, 1], [], []>} : vector<8x8xf32>, vector<8x640xf32>, vector<8x640xf32> -> vector<8x640xf32>
    %182 = arith.addf %174, %181 : vector<8x640xf32>
    %c1_i32_141 = arith.constant 1 : i32
    %183 = tpu.dynamic_rotate %156 by %c1_i32_141 dim 1 : vector<8x640xf32>, i32 -> vector<8x640xf32>
    %c3_142 = arith.constant 3 : index
    %c0_143 = arith.constant 0 : index
    %184 = vector.load %arg11[%c3_142, %c0_143] : memref<9x640xf32, #tpu.memory_space<vmem>>, vector<1x640xf32>
    %185 = vector.broadcast %184 : vector<1x640xf32> to vector<8x640xf32>
    %186 = arith.mulf %183, %185 : vector<8x640xf32>
    %c3_144 = arith.constant 3 : index
    %c0_145 = arith.constant 0 : index
    %c0_146 = arith.constant 0 : index
    %187 = vector.load %arg8[%c3_144, %c0_145, %c0_146] : memref<9x8x8xf32, #tpu.memory_space<vmem>>, vector<1x8x8xf32>
    %188 = vector.shape_cast %187 : vector<1x8x8xf32> to vector<8x8xf32>
    %cst_147 = arith.constant dense<0.000000e+00> : vector<8x640xf32>
    %189 = tpu.matmul %188, %186, %cst_147 {dimension_numbers = #tpu.dot_dimension_numbers<[1], [0], [0], [1], [0, 0, 1, 1], [], []>} : vector<8x8xf32>, vector<8x640xf32>, vector<8x640xf32> -> vector<8x640xf32>
    %190 = arith.addf %182, %189 : vector<8x640xf32>
    %c4_148 = arith.constant 4 : index
    %c0_149 = arith.constant 0 : index
    %c0_150 = arith.constant 0 : index
    %191 = vector.load %arg8[%c4_148, %c0_149, %c0_150] : memref<9x8x8xf32, #tpu.memory_space<vmem>>, vector<1x8x8xf32>
    %192 = vector.shape_cast %191 : vector<1x8x8xf32> to vector<8x8xf32>
    %cst_151 = arith.constant dense<0.000000e+00> : vector<8x640xf32>
    %193 = tpu.matmul %192, %156, %cst_151 {dimension_numbers = #tpu.dot_dimension_numbers<[1], [0], [0], [1], [0, 0, 1, 1], [], []>} : vector<8x8xf32>, vector<8x640xf32>, vector<8x640xf32> -> vector<8x640xf32>
    %194 = arith.addf %190, %193 : vector<8x640xf32>
    %c639_i32_152 = arith.constant 639 : i32
    %195 = tpu.dynamic_rotate %156 by %c639_i32_152 dim 1 : vector<8x640xf32>, i32 -> vector<8x640xf32>
    %c5_153 = arith.constant 5 : index
    %c0_154 = arith.constant 0 : index
    %196 = vector.load %arg11[%c5_153, %c0_154] : memref<9x640xf32, #tpu.memory_space<vmem>>, vector<1x640xf32>
    %197 = vector.broadcast %196 : vector<1x640xf32> to vector<8x640xf32>
    %198 = arith.mulf %195, %197 : vector<8x640xf32>
    %c5_155 = arith.constant 5 : index
    %c0_156 = arith.constant 0 : index
    %c0_157 = arith.constant 0 : index
    %199 = vector.load %arg8[%c5_155, %c0_156, %c0_157] : memref<9x8x8xf32, #tpu.memory_space<vmem>>, vector<1x8x8xf32>
    %200 = vector.shape_cast %199 : vector<1x8x8xf32> to vector<8x8xf32>
    %cst_158 = arith.constant dense<0.000000e+00> : vector<8x640xf32>
    %201 = tpu.matmul %200, %198, %cst_158 {dimension_numbers = #tpu.dot_dimension_numbers<[1], [0], [0], [1], [0, 0, 1, 1], [], []>} : vector<8x8xf32>, vector<8x640xf32>, vector<8x640xf32> -> vector<8x640xf32>
    %202 = arith.addf %194, %201 : vector<8x640xf32>
    %c607_i32_159 = arith.constant 607 : i32
    %203 = tpu.dynamic_rotate %156 by %c607_i32_159 dim 1 : vector<8x640xf32>, i32 -> vector<8x640xf32>
    %c6_160 = arith.constant 6 : index
    %c0_161 = arith.constant 0 : index
    %204 = vector.load %arg11[%c6_160, %c0_161] : memref<9x640xf32, #tpu.memory_space<vmem>>, vector<1x640xf32>
    %205 = vector.broadcast %204 : vector<1x640xf32> to vector<8x640xf32>
    %206 = arith.mulf %203, %205 : vector<8x640xf32>
    %c6_162 = arith.constant 6 : index
    %c0_163 = arith.constant 0 : index
    %c0_164 = arith.constant 0 : index
    %207 = vector.load %arg8[%c6_162, %c0_163, %c0_164] : memref<9x8x8xf32, #tpu.memory_space<vmem>>, vector<1x8x8xf32>
    %208 = vector.shape_cast %207 : vector<1x8x8xf32> to vector<8x8xf32>
    %cst_165 = arith.constant dense<0.000000e+00> : vector<8x640xf32>
    %209 = tpu.matmul %208, %206, %cst_165 {dimension_numbers = #tpu.dot_dimension_numbers<[1], [0], [0], [1], [0, 0, 1, 1], [], []>} : vector<8x8xf32>, vector<8x640xf32>, vector<8x640xf32> -> vector<8x640xf32>
    %210 = arith.addf %202, %209 : vector<8x640xf32>
    %c606_i32_166 = arith.constant 606 : i32
    %211 = tpu.dynamic_rotate %156 by %c606_i32_166 dim 1 : vector<8x640xf32>, i32 -> vector<8x640xf32>
    %c7_167 = arith.constant 7 : index
    %c0_168 = arith.constant 0 : index
    %212 = vector.load %arg11[%c7_167, %c0_168] : memref<9x640xf32, #tpu.memory_space<vmem>>, vector<1x640xf32>
    %213 = vector.broadcast %212 : vector<1x640xf32> to vector<8x640xf32>
    %214 = arith.mulf %211, %213 : vector<8x640xf32>
    %c7_169 = arith.constant 7 : index
    %c0_170 = arith.constant 0 : index
    %c0_171 = arith.constant 0 : index
    %215 = vector.load %arg8[%c7_169, %c0_170, %c0_171] : memref<9x8x8xf32, #tpu.memory_space<vmem>>, vector<1x8x8xf32>
    %216 = vector.shape_cast %215 : vector<1x8x8xf32> to vector<8x8xf32>
    %cst_172 = arith.constant dense<0.000000e+00> : vector<8x640xf32>
    %217 = tpu.matmul %216, %214, %cst_172 {dimension_numbers = #tpu.dot_dimension_numbers<[1], [0], [0], [1], [0, 0, 1, 1], [], []>} : vector<8x8xf32>, vector<8x640xf32>, vector<8x640xf32> -> vector<8x640xf32>
    %218 = arith.addf %210, %217 : vector<8x640xf32>
    %c605_i32_173 = arith.constant 605 : i32
    %219 = tpu.dynamic_rotate %156 by %c605_i32_173 dim 1 : vector<8x640xf32>, i32 -> vector<8x640xf32>
    %c8_174 = arith.constant 8 : index
    %c0_175 = arith.constant 0 : index
    %220 = vector.load %arg11[%c8_174, %c0_175] : memref<9x640xf32, #tpu.memory_space<vmem>>, vector<1x640xf32>
    %221 = vector.broadcast %220 : vector<1x640xf32> to vector<8x640xf32>
    %222 = arith.mulf %219, %221 : vector<8x640xf32>
    %c8_176 = arith.constant 8 : index
    %c0_177 = arith.constant 0 : index
    %c0_178 = arith.constant 0 : index
    %223 = vector.load %arg8[%c8_176, %c0_177, %c0_178] : memref<9x8x8xf32, #tpu.memory_space<vmem>>, vector<1x8x8xf32>
    %224 = vector.shape_cast %223 : vector<1x8x8xf32> to vector<8x8xf32>
    %cst_179 = arith.constant dense<0.000000e+00> : vector<8x640xf32>
    %225 = tpu.matmul %224, %222, %cst_179 {dimension_numbers = #tpu.dot_dimension_numbers<[1], [0], [0], [1], [0, 0, 1, 1], [], []>} : vector<8x8xf32>, vector<8x640xf32>, vector<8x640xf32> -> vector<8x640xf32>
    %226 = arith.addf %218, %225 : vector<8x640xf32>
    %227 = vector.broadcast %157 : vector<8x1xf32> to vector<8x640xf32>
    %228 = arith.addf %226, %227 : vector<8x640xf32>
    %cst_180 = arith.constant 0.000000e+00 : f32
    %229 = vector.broadcast %cst_180 : f32 to vector<8x640xf32>
    %230 = arith.maximumf %228, %229 : vector<8x640xf32>
    %c0_181 = arith.constant 0 : index
    %c0_182 = arith.constant 0 : index
    %c0_183 = arith.constant 0 : index
    %231 = vector.load %arg12[%c0_181, %c0_182, %c0_183] : memref<1x8x640xf32, #tpu.memory_space<vmem>>, vector<1x8x640xf32>
    %232 = vector.shape_cast %231 : vector<1x8x640xf32> to vector<8x640xf32>
    %233 = vector.shape_cast %230 : vector<8x640xf32> to vector<1x8x640xf32>
    tpu.vector_store %arg12[%c0_181, %c0_182, %c0_183], %233 {strides = array<i32>} : memref<1x8x640xf32, #tpu.memory_space<vmem>>, vector<1x8x640xf32>,
    return
  }
  func.func @transform_0(%arg0: i32) -> (i32, i32, i32) {
    %c0_i32 = arith.constant 0 : i32
    %c0_i32_0 = arith.constant 0 : i32
    %c0_i32_1 = arith.constant 0 : i32
    return %arg0, %c0_i32, %c0_i32_0 : i32, i32, i32
  }
  func.func @transform_1(%arg0: i32) -> (i32, i32, i32) {
    %c0_i32 = arith.constant 0 : i32
    %c0_i32_0 = arith.constant 0 : i32
    %c0_i32_1 = arith.constant 0 : i32
    return %arg0, %c0_i32, %c0_i32_0 : i32, i32, i32
  }
  func.func @transform_2(%arg0: i32) -> (i32, i32) {
    %c0_i32 = arith.constant 0 : i32
    %c0_i32_0 = arith.constant 0 : i32
    %c0_i32_1 = arith.constant 0 : i32
    return %c0_i32, %c0_i32_0 : i32, i32
  }
  func.func @transform_3(%arg0: i32) -> (i32, i32) {
    %c0_i32 = arith.constant 0 : i32
    %c0_i32_0 = arith.constant 0 : i32
    %c0_i32_1 = arith.constant 0 : i32
    return %c0_i32, %c0_i32_0 : i32, i32
  }
  func.func @transform_4(%arg0: i32) -> (i32, i32) {
    %c0_i32 = arith.constant 0 : i32
    %c0_i32_0 = arith.constant 0 : i32
    %c0_i32_1 = arith.constant 0 : i32
    return %c0_i32, %c0_i32_0 : i32, i32
  }
  func.func @transform_5(%arg0: i32) -> (i32, i32, i32) {
    %c0_i32 = arith.constant 0 : i32
    %c0_i32_0 = arith.constant 0 : i32
    %c0_i32_1 = arith.constant 0 : i32
    %c0_i32_2 = arith.constant 0 : i32
    return %c0_i32, %c0_i32_0, %c0_i32_1 : i32, i32, i32
  }
  func.func @transform_6(%arg0: i32) -> (i32, i32) {
    %c0_i32 = arith.constant 0 : i32
    %c0_i32_0 = arith.constant 0 : i32
    %c0_i32_1 = arith.constant 0 : i32
    return %c0_i32, %c0_i32_0 : i32, i32
  }
  func.func @transform_7(%arg0: i32) -> (i32, i32, i32) {
    %c0_i32 = arith.constant 0 : i32
    %c0_i32_0 = arith.constant 0 : i32
    %c0_i32_1 = arith.constant 0 : i32
    %c0_i32_2 = arith.constant 0 : i32
    return %c0_i32, %c0_i32_0, %c0_i32_1 : i32, i32, i32
  }
  func.func @transform_8(%arg0: i32) -> (i32, i32) {
    %c0_i32 = arith.constant 0 : i32
    %c0_i32_0 = arith.constant 0 : i32
    %c0_i32_1 = arith.constant 0 : i32
    return %c0_i32, %c0_i32_0 : i32, i32
  }
  func.func @transform_9(%arg0: i32) -> (i32, i32) {
    %c0_i32 = arith.constant 0 : i32
    %c0_i32_0 = arith.constant 0 : i32
    %c0_i32_1 = arith.constant 0 : i32
    return %c0_i32, %c0_i32_0 : i32, i32
  }
  func.func @transform_10(%arg0: i32) -> (i32, i32) {
    %c0_i32 = arith.constant 0 : i32
    %c0_i32_0 = arith.constant 0 : i32
    %c0_i32_1 = arith.constant 0 : i32
    return %c0_i32, %c0_i32_0 : i32, i32
  }
  func.func @transform_11(%arg0: i32) -> (i32, i32, i32) {
    %c0_i32 = arith.constant 0 : i32
    %c0_i32_0 = arith.constant 0 : i32
    %c0_i32_1 = arith.constant 0 : i32
    return %arg0, %c0_i32, %c0_i32_0 : i32, i32, i32
  }
}

</mosaic_0001>

<llo_original>
// kernel: upsampling_block_forward.1
$region0: #{upsampling_block_forward.1}
  #allocation0 [shape = 'u32[]', space=smem, size = 0x4, offset = 0x4, fixed_abs, tag = 'smem constant byte address 0x4 - core index']
  #allocation1 [shape = 'u32[72,128]{1,0:T(1,128)}', space=vmem, size = 0x9000, scoped, tag = 'internal scratch']
  %s0 = inlined_call_operand.vmem [shape: f32[2,4,64], index: 0, kind: input, shape index: {}]
  %s1 = inlined_call_operand.vmem [shape: f32[2,8,289], index: 1, kind: input, shape index: {}]
  %s2 = inlined_call_operand.vmem [shape: f32[64,384], index: 2, kind: input, shape index: {}]
  %s3 = inlined_call_operand.vmem [shape: f32[384,640], index: 3, kind: input, shape index: {}]
  %s4 = inlined_call_operand.vmem [shape: f32[289,640], index: 4, kind: input, shape index: {}]
  %s5 = inlined_call_operand.vmem [shape: f32[9,8,4], index: 5, kind: input, shape index: {}]
  %s6 = inlined_call_operand.vmem [shape: f32[8,1], index: 6, kind: input, shape index: {}]
  %s7 = inlined_call_operand.vmem [shape: f32[9,8,8], index: 7, kind: input, shape index: {}]
  %s8 = inlined_call_operand.vmem [shape: f32[8,1], index: 8, kind: input, shape index: {}]
  %s9 = inlined_call_operand.vmem [shape: f32[9,384], index: 9, kind: input, shape index: {}]
  %s10 = inlined_call_operand.vmem [shape: f32[9,640], index: 10, kind: input, shape index: {}]
  %s11 = inlined_call_operand.vmem [shape: f32[2,8,640], index: 11, kind: output, shape index: {}]
  %s12 = sld [smem:[#allocation0]]
  $region77: #{upsampling_block_forward.1} parent=0
    _
  %s14 = ssub.s32 1, %s12
  %s15 = scalar_select 0, %s14, %s12
  loop: start=0, step=1, limit=4
  $region2: #{upsampling_block_forward.1} parent=0 // loop_pre_header
    _
  $region3: #{upsampling_block_forward.1} parent=0 // loop_header
    %s17 = sphi 0, %s21
    %p18 = scmp.ge.s32.totalorder %s17, 4
    %s27 = sphi 0, %s29
    %s30 = sphi 0, %s27
    %s31 = sphi 0, %s30
    %s47 = sphi 0, %s31
    %s53 = sphi 0, %s55
    %s56 = sphi 0, %s53
    %s57 = sphi 0, %s56
    %s73 = sphi 0, %s57
    %s77 = sphi 0, %s77
    %s79 = sphi 0, %s77
    %s80 = sphi 0, %s79
    %s94 = sphi 0, %s80
    %s98 = sphi 0, %s98
    %s100 = sphi 0, %s98
    %s101 = sphi 0, %s100
    %s115 = sphi 0, %s101
    %s119 = sphi 0, %s119
    %s121 = sphi 0, %s119
    %s122 = sphi 0, %s121
    %s136 = sphi 0, %s122
    %s140 = sphi 0, %s140
    %s142 = sphi 0, %s140
    %s143 = sphi 0, %s142
    %s157 = sphi 0, %s143
    %s161 = sphi 0, %s161
    %s163 = sphi 0, %s161
    %s164 = sphi 0, %s163
    %s178 = sphi 0, %s164
    %s182 = sphi 0, %s182
    %s184 = sphi 0, %s182
    %s185 = sphi 0, %s184
    %s199 = sphi 0, %s185
    %s203 = sphi 0, %s203
    %s205 = sphi 0, %s203
    %s206 = sphi 0, %s205
    %s220 = sphi 0, %s206
    %s224 = sphi 0, %s224
    %s226 = sphi 0, %s224
    %s227 = sphi 0, %s226
    %s241 = sphi 0, %s227
    %s245 = sphi 0, %s245
    %s247 = sphi 0, %s245
    %s248 = sphi 0, %s247
    %s262 = sphi 0, %s248
    %s268 = sphi 0, %s270
    %s271 = sphi 0, %s268
    %s272 = sphi 0, %s271
    %s288 = sphi 0, %s272
  $region4: #{upsampling_block_forward.1} parent=0 // loop_header_branch
    %20 = sbr.rel (%p18) target = $region8
  $region5: #{upsampling_block_forward.1} parent=0 // loop_body
    %s22 = ssub.s32 %s17, 1
    %s23 = ssub.s32 %s17, 2
    %s24 = sadd.s32 %s17, 1
    %s25 = ssub.s32 %s17, %s24
    %p26 = scmp.eq.s32.totalorder %s25, 0
    %s28 = sadd.s32 %s27, 1
    %s29 = scalar_select %p26, %s27, %s28
    %p32 = pneg %p26
    %p33 = scmp.eq.s32.totalorder %s17, 1
    %p34 = por %p32, %p33
    %p35 = scmp.ne.s32.totalorder %s27, %s30
    %p36 = scmp.eq.s32.totalorder %s17, 0
    %p37 = por %p35, %p36
    %p38 = scmp.ne.s32.totalorder %s27, %s30
    %p39 = scmp.eq.s32.totalorder %s22, 1
    %p40 = por %p38, %p39
    %p41 = scmp.ne.s32.totalorder %s30, %s31
    %p42 = scmp.eq.s32.totalorder %s22, 0
    %p43 = por %p41, %p42
    %p44 = scmp.ne.s32.totalorder %s30, %s31
    %p45 = scmp.eq.s32.totalorder %s23, 1
    %p46 = por %p44, %p45
    %p48 = scmp.ne.s32.totalorder %s31, %s47
    %p49 = scmp.eq.s32.totalorder %s23, 0
    %p50 = por %p48, %p49
    %s51 = ssub.s32 %s17, %s24
    %p52 = scmp.eq.s32.totalorder %s51, 0
    %s54 = sadd.s32 %s53, 1
    %s55 = scalar_select %p52, %s53, %s54
    %p58 = pneg %p52
    %p59 = scmp.eq.s32.totalorder %s17, 1
    %p60 = por %p58, %p59
    %p61 = scmp.ne.s32.totalorder %s53, %s56
    %p62 = scmp.eq.s32.totalorder %s17, 0
    %p63 = por %p61, %p62
    %p64 = scmp.ne.s32.totalorder %s53, %s56
    %p65 = scmp.eq.s32.totalorder %s22, 1
    %p66 = por %p64, %p65
    %p67 = scmp.ne.s32.totalorder %s56, %s57
    %p68 = scmp.eq.s32.totalorder %s22, 0
    %p69 = por %p67, %p68
    %p70 = scmp.ne.s32.totalorder %s56, %s57
    %p71 = scmp.eq.s32.totalorder %s23, 1
    %p72 = por %p70, %p71
    %p74 = scmp.ne.s32.totalorder %s57, %s73
    %p75 = scmp.eq.s32.totalorder %s23, 0
    %p76 = por %p74, %p75
    %s78 = sadd.s32 %s77, 1
    %p81 = scmp.eq.s32.totalorder %s17, 1
    %p82 = scmp.ne.s32.totalorder %s77, %s79
    %p83 = scmp.eq.s32.totalorder %s17, 0
    %p84 = por %p82, %p83
    %p85 = scmp.ne.s32.totalorder %s77, %s79
    %p86 = scmp.eq.s32.totalorder %s22, 1
    %p87 = por %p85, %p86
    %p88 = scmp.ne.s32.totalorder %s79, %s80
    %p89 = scmp.eq.s32.totalorder %s22, 0
    %p90 = por %p88, %p89
    %p91 = scmp.ne.s32.totalorder %s79, %s80
    %p92 = scmp.eq.s32.totalorder %s23, 1
    %p93 = por %p91, %p92
    %p95 = scmp.ne.s32.totalorder %s80, %s94
    %p96 = scmp.eq.s32.totalorder %s23, 0
    %p97 = por %p95, %p96
    %s99 = sadd.s32 %s98, 1
    %p102 = scmp.eq.s32.totalorder %s17, 1
    %p103 = scmp.ne.s32.totalorder %s98, %s100
    %p104 = scmp.eq.s32.totalorder %s17, 0
    %p105 = por %p103, %p104
    %p106 = scmp.ne.s32.totalorder %s98, %s100
    %p107 = scmp.eq.s32.totalorder %s22, 1
    %p108 = por %p106, %p107
    %p109 = scmp.ne.s32.totalorder %s100, %s101
    %p110 = scmp.eq.s32.totalorder %s22, 0
    %p111 = por %p109, %p110
    %p112 = scmp.ne.s32.totalorder %s100, %s101
    %p113 = scmp.eq.s32.totalorder %s23, 1
    %p114 = por %p112, %p113
    %p116 = scmp.ne.s32.totalorder %s101, %s115
    %p117 = scmp.eq.s32.totalorder %s23, 0
    %p118 = por %p116, %p117
    %s120 = sadd.s32 %s119, 1
    %p123 = scmp.eq.s32.totalorder %s17, 1
    %p124 = scmp.ne.s32.totalorder %s119, %s121
    %p125 = scmp.eq.s32.totalorder %s17, 0
    %p126 = por %p124, %p125
    %p127 = scmp.ne.s32.totalorder %s119, %s121
    %p128 = scmp.eq.s32.totalorder %s22, 1
    %p129 = por %p127, %p128
    %p130 = scmp.ne.s32.totalorder %s121, %s122
    %p131 = scmp.eq.s32.totalorder %s22, 0
    %p132 = por %p130, %p131
    %p133 = scmp.ne.s32.totalorder %s121, %s122
    %p134 = scmp.eq.s32.totalorder %s23, 1
    %p135 = por %p133, %p134
    %p137 = scmp.ne.s32.totalorder %s122, %s136
    %p138 = scmp.eq.s32.totalorder %s23, 0
    %p139 = por %p137, %p138
    %s141 = sadd.s32 %s140, 1
    %p144 = scmp.eq.s32.totalorder %s17, 1
    %p145 = scmp.ne.s32.totalorder %s140, %s142
    %p146 = scmp.eq.s32.totalorder %s17, 0
    %p147 = por %p145, %p146
    %p148 = scmp.ne.s32.totalorder %s140, %s142
    %p149 = scmp.eq.s32.totalorder %s22, 1
    %p150 = por %p148, %p149
    %p151 = scmp.ne.s32.totalorder %s142, %s143
    %p152 = scmp.eq.s32.totalorder %s22, 0
    %p153 = por %p151, %p152
    %p154 = scmp.ne.s32.totalorder %s142, %s143
    %p155 = scmp.eq.s32.totalorder %s23, 1
    %p156 = por %p154, %p155
    %p158 = scmp.ne.s32.totalorder %s143, %s157
    %p159 = scmp.eq.s32.totalorder %s23, 0
    %p160 = por %p158, %p159
    %s162 = sadd.s32 %s161, 1
    %p165 = scmp.eq.s32.totalorder %s17, 1
    %p166 = scmp.ne.s32.totalorder %s161, %s163
    %p167 = scmp.eq.s32.totalorder %s17, 0
    %p168 = por %p166, %p167
    %p169 = scmp.ne.s32.totalorder %s161, %s163
    %p170 = scmp.eq.s32.totalorder %s22, 1
    %p171 = por %p169, %p170
    %p172 = scmp.ne.s32.totalorder %s163, %s164
    %p173 = scmp.eq.s32.totalorder %s22, 0
    %p174 = por %p172, %p173
    %p175 = scmp.ne.s32.totalorder %s163, %s164
    %p176 = scmp.eq.s32.totalorder %s23, 1
    %p177 = por %p175, %p176
    %p179 = scmp.ne.s32.totalorder %s164, %s178
    %p180 = scmp.eq.s32.totalorder %s23, 0
    %p181 = por %p179, %p180
    %s183 = sadd.s32 %s182, 1
    %p186 = scmp.eq.s32.totalorder %s17, 1
    %p187 = scmp.ne.s32.totalorder %s182, %s184
    %p188 = scmp.eq.s32.totalorder %s17, 0
    %p189 = por %p187, %p188
    %p190 = scmp.ne.s32.totalorder %s182, %s184
    %p191 = scmp.eq.s32.totalorder %s22, 1
    %p192 = por %p190, %p191
    %p193 = scmp.ne.s32.totalorder %s184, %s185
    %p194 = scmp.eq.s32.totalorder %s22, 0
    %p195 = por %p193, %p194
    %p196 = scmp.ne.s32.totalorder %s184, %s185
    %p197 = scmp.eq.s32.totalorder %s23, 1
    %p198 = por %p196, %p197
    %p200 = scmp.ne.s32.totalorder %s185, %s199
    %p201 = scmp.eq.s32.totalorder %s23, 0
    %p202 = por %p200, %p201
    %s204 = sadd.s32 %s203, 1
    %p207 = scmp.eq.s32.totalorder %s17, 1
    %p208 = scmp.ne.s32.totalorder %s203, %s205
    %p209 = scmp.eq.s32.totalorder %s17, 0
    %p210 = por %p208, %p209
    %p211 = scmp.ne.s32.totalorder %s203, %s205
    %p212 = scmp.eq.s32.totalorder %s22, 1
    %p213 = por %p211, %p212
    %p214 = scmp.ne.s32.totalorder %s205, %s206
    %p215 = scmp.eq.s32.totalorder %s22, 0
    %p216 = por %p214, %p215
    %p217 = scmp.ne.s32.totalorder %s205, %s206
    %p218 = scmp.eq.s32.totalorder %s23, 1
    %p219 = por %p217, %p218
    %p221 = scmp.ne.s32.totalorder %s206, %s220
    %p222 = scmp.eq.s32.totalorder %s23, 0
    %p223 = por %p221, %p222
    %s225 = sadd.s32 %s224, 1
    %p228 = scmp.eq.s32.totalorder %s17, 1
    %p229 = scmp.ne.s32.totalorder %s224, %s226
    %p230 = scmp.eq.s32.totalorder %s17, 0
    %p231 = por %p229, %p230
    %p232 = scmp.ne.s32.totalorder %s224, %s226
    %p233 = scmp.eq.s32.totalorder %s22, 1
    %p234 = por %p232, %p233
    %p235 = scmp.ne.s32.totalorder %s226, %s227
    %p236 = scmp.eq.s32.totalorder %s22, 0
    %p237 = por %p235, %p236
    %p238 = scmp.ne.s32.totalorder %s226, %s227
    %p239 = scmp.eq.s32.totalorder %s23, 1
    %p240 = por %p238, %p239
    %p242 = scmp.ne.s32.totalorder %s227, %s241
    %p243 = scmp.eq.s32.totalorder %s23, 0
    %p244 = por %p242, %p243
    %s246 = sadd.s32 %s245, 1
    %p249 = scmp.eq.s32.totalorder %s17, 1
    %p250 = scmp.ne.s32.totalorder %s245, %s247
    %p251 = scmp.eq.s32.totalorder %s17, 0
    %p252 = por %p250, %p251
    %p253 = scmp.ne.s32.totalorder %s245, %s247
    %p254 = scmp.eq.s32.totalorder %s22, 1
    %p255 = por %p253, %p254
    %p256 = scmp.ne.s32.totalorder %s247, %s248
    %p257 = scmp.eq.s32.totalorder %s22, 0
    %p258 = por %p256, %p257
    %p259 = scmp.ne.s32.totalorder %s247, %s248
    %p260 = scmp.eq.s32.totalorder %s23, 1
    %p261 = por %p259, %p260
    %p263 = scmp.ne.s32.totalorder %s248, %s262
    %p264 = scmp.eq.s32.totalorder %s23, 0
    %p265 = por %p263, %p264
    %s266 = ssub.s32 %s17, %s24
    %p267 = scmp.eq.s32.totalorder %s266, 0
    %s269 = sadd.s32 %s268, 1
    %s270 = scalar_select %p267, %s268, %s269
    %p273 = pneg %p267
    %p274 = scmp.eq.s32.totalorder %s17, 1
    %p275 = por %p273, %p274
    %p276 = scmp.ne.s32.totalorder %s268, %s271
    %p277 = scmp.eq.s32.totalorder %s17, 0
    %p278 = por %p276, %p277
    %p279 = scmp.ne.s32.totalorder %s268, %s271
    %p280 = scmp.eq.s32.totalorder %s22, 1
    %p281 = por %p279, %p280
    %p282 = scmp.ne.s32.totalorder %s271, %s272
    %p283 = scmp.eq.s32.totalorder %s22, 0
    %p284 = por %p282, %p283
    %p285 = scmp.ne.s32.totalorder %s271, %s272
    %p286 = scmp.eq.s32.totalorder %s23, 1
    %p287 = por %p285, %p286
    %p289 = scmp.ne.s32.totalorder %s272, %s288
    %p290 = scmp.eq.s32.totalorder %s23, 0
    %p291 = por %p289, %p290
    %p292 = scmp.le.s32.totalorder 1, %s17
    %p293 = scmp.lt.s32.totalorder %s17, 3
    %p294 = pnand %p292, %p293
    %p295 = pneg %p294
    // Predicated region
    $region9: #{upsampling_block_forward.1} parent=5 // pred_check
      _
    $region10: #{upsampling_block_forward.1} parent=5 // pred_check_branch
      %297 = sbr.rel (%p294) target = $region12
    $region11: #{upsampling_block_forward.1} parent=5 // pred_region
      %s298 = ssub.s32 %s17, 1
      // Predicated region
      $region13: #{upsampling_block_forward.1} parent=11 // pred_check
        %p299 = pneg %p90
      $region14: #{upsampling_block_forward.1} parent=11 // pred_check_branch
        %301 = sbr.rel (%p299) target = $region16
      $region15: #{upsampling_block_forward.1} parent=11 // pred_region
        _
      $region16: #{upsampling_block_forward.1} parent=11 // pred_fallthru
        _
      // Predicated region
      $region17: #{upsampling_block_forward.1} parent=11 // pred_check
        %p302 = pneg %p111
      $region18: #{upsampling_block_forward.1} parent=11 // pred_check_branch
        %304 = sbr.rel (%p302) target = $region20
      $region19: #{upsampling_block_forward.1} parent=11 // pred_region
        _
      $region20: #{upsampling_block_forward.1} parent=11 // pred_fallthru
        _
      // Predicated region
      $region21: #{upsampling_block_forward.1} parent=11 // pred_check
        %p305 = pneg %p132
      $region22: #{upsampling_block_forward.1} parent=11 // pred_check_branch
        %307 = sbr.rel (%p305) target = $region24
      $region23: #{upsampling_block_forward.1} parent=11 // pred_region
        _
      $region24: #{upsampling_block_forward.1} parent=11 // pred_fallthru
        _
      // Predicated region
      $region25: #{upsampling_block_forward.1} parent=11 // pred_check
        %p308 = pneg %p153
      $region26: #{upsampling_block_forward.1} parent=11 // pred_check_branch
        %310 = sbr.rel (%p308) target = $region28
      $region27: #{upsampling_block_forward.1} parent=11 // pred_region
        _
      $region28: #{upsampling_block_forward.1} parent=11 // pred_fallthru
        _
      // Predicated region
      $region29: #{upsampling_block_forward.1} parent=11 // pred_check
        %p311 = pneg %p174
      $region30: #{upsampling_block_forward.1} parent=11 // pred_check_branch
        %313 = sbr.rel (%p311) target = $region32
      $region31: #{upsampling_block_forward.1} parent=11 // pred_region
        _
      $region32: #{upsampling_block_forward.1} parent=11 // pred_fallthru
        _
      // Predicated region
      $region33: #{upsampling_block_forward.1} parent=11 // pred_check
        %p314 = pneg %p195
      $region34: #{upsampling_block_forward.1} parent=11 // pred_check_branch
        %316 = sbr.rel (%p314) target = $region36
      $region35: #{upsampling_block_forward.1} parent=11 // pred_region
        _
      $region36: #{upsampling_block_forward.1} parent=11 // pred_fallthru
        _
      // Predicated region
      $region37: #{upsampling_block_forward.1} parent=11 // pred_check
        %p317 = pneg %p216
      $region38: #{upsampling_block_forward.1} parent=11 // pred_check_branch
        %319 = sbr.rel (%p317) target = $region40
      $region39: #{upsampling_block_forward.1} parent=11 // pred_region
        _
      $region40: #{upsampling_block_forward.1} parent=11 // pred_fallthru
        _
      // Predicated region
      $region41: #{upsampling_block_forward.1} parent=11 // pred_check
        %p320 = pneg %p237
      $region42: #{upsampling_block_forward.1} parent=11 // pred_check_branch
        %322 = sbr.rel (%p320) target = $region44
      $region43: #{upsampling_block_forward.1} parent=11 // pred_region
        _
      $region44: #{upsampling_block_forward.1} parent=11 // pred_fallthru
        _
      // Predicated region
      $region45: #{upsampling_block_forward.1} parent=11 // pred_check
        %p323 = pneg %p258
      $region46: #{upsampling_block_forward.1} parent=11 // pred_check_branch
        %325 = sbr.rel (%p323) target = $region48
      $region47: #{upsampling_block_forward.1} parent=11 // pred_region
        _
      $region48: #{upsampling_block_forward.1} parent=11 // pred_fallthru
        _
    $region12: #{upsampling_block_forward.1} parent=5 // pred_fallthru
      _
    %p326 = scmp.lt.s32.totalorder %s17, 2
    // Predicated region
    $region49: #{upsampling_block_forward.1} parent=5 // pred_check
      %p327 = pneg %p326
    $region50: #{upsampling_block_forward.1} parent=5 // pred_check_branch
      %329 = sbr.rel (%p327) target = $region52
    $region51: #{upsampling_block_forward.1} parent=5 // pred_region
      // Predicated region
      $region53: #{upsampling_block_forward.1} parent=51 // pred_check
        %p330 = pneg %p37
      $region54: #{upsampling_block_forward.1} parent=51 // pred_check_branch
        %332 = sbr.rel (%p330) target = $region56
      $region55: #{upsampling_block_forward.1} parent=51 // pred_region
        %p333 = scmp.lt.s32.totalorder %s17, 1
        %s334 = scalar_select %p333, %s17, 1
        %s335 = smul.addr %s334, 4
        %s336 = scalar_lea.vmem %s0, %s335
      $region56: #{upsampling_block_forward.1} parent=51 // pred_fallthru
        _
      // Predicated region
      $region57: #{upsampling_block_forward.1} parent=51 // pred_check
        %p337 = pneg %p63
      $region58: #{upsampling_block_forward.1} parent=51 // pred_check_branch
        %339 = sbr.rel (%p337) target = $region60
      $region59: #{upsampling_block_forward.1} parent=51 // pred_region
        %p340 = scmp.lt.s32.totalorder %s17, 1
        %s341 = scalar_select %p340, %s17, 1
        %s342 = smul.addr %s341, 3
        %s343 = smul.addr %s342, 8
        %s344 = scalar_lea.vmem %s1, %s343
      $region60: #{upsampling_block_forward.1} parent=51 // pred_fallthru
        _
    $region52: #{upsampling_block_forward.1} parent=5 // pred_fallthru
      _
    %p345 = scmp.le.s32.totalorder 1, %s17
    %p346 = scmp.lt.s32.totalorder %s17, 3
    %p347 = pnand %p345, %p346
    %p348 = pneg %p347
    // Predicated region
    $region61: #{upsampling_block_forward.1} parent=5 // pred_check
      _
    $region62: #{upsampling_block_forward.1} parent=5 // pred_check_branch
      %350 = sbr.rel (%p347) target = $region64
    $region63: #{upsampling_block_forward.1} parent=5 // pred_region
      %s351 = ssub.s32 %s17, 1
      %p352 = scmp.lt.s32.totalorder %s22, 1
      %s353 = scalar_select %p352, %s22, 1
      %s354 = smul.addr %s353, 4
      %s355 = scalar_lea.vmem %s0, %s354
      %p356 = pneg %p43
      %p357 = pneg %p40
      %p358 = scmp.lt.s32.totalorder %s22, 1
      %s359 = scalar_select %p358, %s22, 1
      %s360 = smul.addr %s359, 3
      %s361 = smul.addr %s360, 8
      %s362 = scalar_lea.vmem %s1, %s361
      %p363 = pneg %p69
      %p364 = pneg %p66
      %p365 = pneg %p90
      %p366 = pneg %p87
      %p367 = pneg %p111
      %p368 = pneg %p108
      %p369 = pneg %p132
      %p370 = pneg %p129
      %p371 = pneg %p153
      %p372 = pneg %p150
      %p373 = pneg %p174
      %p374 = pneg %p171
      %p375 = pneg %p195
      %p376 = pneg %p192
      %p377 = pneg %p216
      %p378 = pneg %p213
      %p379 = pneg %p237
      %p380 = pneg %p234
      %p381 = pneg %p258
      %p382 = pneg %p255
      %p383 = pneg %p284
      %p384 = pneg %p281
      %p385 = scmp.lt.s32.totalorder %s22, 1
      %s386 = scalar_select %p385, %s22, 1
      %s387 = smul.addr %s386, 5
      %s388 = smul.addr %s387, 8
      %s389 = scalar_lea.vmem %s11, %s388
      %p390 = scmp.lt.s32.totalorder %s22, 1
      %s391 = scalar_select %p390, %s22, 1
      %s392 = smul.addr %s391, 4
      %s393 = scalar_lea.vmem %s0, %s392
      %p394 = scmp.lt.s32.totalorder %s22, 1
      %s395 = scalar_select %p394, %s22, 1
      %s396 = smul.addr %s395, 3
      %s397 = smul.addr %s396, 8
      %s398 = scalar_lea.vmem %s1, %s397
      %p399 = scmp.lt.s32.totalorder %s22, 1
      %s400 = scalar_select %p399, %s22, 1
      %s401 = smul.addr %s400, 5
      %s402 = smul.addr %s401, 8
      %s403 = scalar_lea.vmem %s11, %s402
      %v404 = vld [vmem:[%s393] sm:$0xf]
      %v405 = vld [vmem:[%s2] sm:$0xff]
      %v406 = vld [vmem:[%s2 + $0x8] sm:$0xff]
      %v407 = vld [vmem:[%s2 + $0x10] sm:$0xff]
      %v408 = vld [vmem:[%s2 + $0x18] sm:$0xff]
      %v409 = vld [vmem:[%s2 + $0x20] sm:$0xff]
      %v410 = vld [vmem:[%s2 + $0x28] sm:$0xff]
      %v411 = vld [vmem:[%s2 + $0x30] sm:$0xff]
      %v412 = vld [vmem:[%s2 + $0x38] sm:$0xff]
      %v413 = vld [vmem:[%s2 + $0x40] sm:$0xff]
      %v414 = vld [vmem:[%s2 + $0x48] sm:$0xff]
      %v415 = vld [vmem:[%s2 + $0x50] sm:$0xff]
      %v416 = vld [vmem:[%s2 + $0x58] sm:$0xff]
      %v417 = vld [vmem:[%s2 + $0x60] sm:$0xff]
      %v418 = vld [vmem:[%s2 + $0x68] sm:$0xff]
      %v419 = vld [vmem:[%s2 + $0x70] sm:$0xff]
      %v420 = vld [vmem:[%s2 + $0x78] sm:$0xff]
      %v421 = vld [vmem:[%s2 + $0x80] sm:$0xff]
      %v422 = vld [vmem:[%s2 + $0x88] sm:$0xff]
      %v423 = vld [vmem:[%s2 + $0x90] sm:$0xff]
      %v424 = vld [vmem:[%s2 + $0x98] sm:$0xff]
      %v425 = vld [vmem:[%s2 + $0xa0] sm:$0xff]
      %v426 = vld [vmem:[%s2 + $0xa8] sm:$0xff]
      %v427 = vld [vmem:[%s2 + $0xb0] sm:$0xff]
      %v428 = vld [vmem:[%s2 + $0xb8] sm:$0xff]
      %vm429 = vcmask 523264
      %v431 = vsel %vm429, %v404, 0
      %433 = vmatpush.msra.mxu0 0.0
      %434 = vmatpush.msra.mxu0 0.0
      %435 = vmatpush.msra.mxu0 0.0
      %436 = vmatpush.msra.mxu0 0.0
      %437 = vmatpush.msra.mxu0 0.0
      %438 = vmatpush.msra.mxu0 0.0
      %439 = vmatpush.msra.mxu0 0.0
      %440 = vmatpush.msra.mxu0 0.0
      %441 = vmatpush.msra.mxu0 %v426
      %442 = vmatpush.msra.mxu0 %v423
      %443 = vmatpush.msra.mxu0 %v420
      %444 = vmatpush.msra.mxu0 %v417
      %445 = vmatpush.msra.mxu0 %v414
      %446 = vmatpush.msra.mxu0 %v411
      %447 = vmatpush.msra.mxu0 %v408
      %448 = vmatpush.msra.mxu0 %v405
      %449 = vmatmul.f32.gmra.mxu0 %v431
      %v450 = vpop.f32.mrf.mxu0
      %v451 = vadd.f32 0.0, %v450
      %452 = vdwg.mxu0
      %453 = vmatpush.msra.mxu0 0.0
      %454 = vmatpush.msra.mxu0 0.0
      %455 = vmatpush.msra.mxu0 0.0
      %456 = vmatpush.msra.mxu0 0.0
      %457 = vmatpush.msra.mxu0 0.0
      %458 = vmatpush.msra.mxu0 0.0
      %459 = vmatpush.msra.mxu0 0.0
      %460 = vmatpush.msra.mxu0 0.0
      %461 = vmatpush.msra.mxu0 %v427
      %462 = vmatpush.msra.mxu0 %v424
      %463 = vmatpush.msra.mxu0 %v421
      %464 = vmatpush.msra.mxu0 %v418
      %465 = vmatpush.msra.mxu0 %v415
      %466 = vmatpush.msra.mxu0 %v412
      %467 = vmatpush.msra.mxu0 %v409
      %468 = vmatpush.msra.mxu0 %v406
      %469 = vmatmul.f32.gmra.mxu0 %v431
      %v470 = vpop.f32.mrf.mxu0
      %v471 = vadd.f32 0.0, %v470
      %472 = vdwg.mxu0
      %473 = vmatpush.msra.mxu0 0.0
      %474 = vmatpush.msra.mxu0 0.0
      %475 = vmatpush.msra.mxu0 0.0
      %476 = vmatpush.msra.mxu0 0.0
      %477 = vmatpush.msra.mxu0 0.0
      %478 = vmatpush.msra.mxu0 0.0
      %479 = vmatpush.msra.mxu0 0.0
      %480 = vmatpush.msra.mxu0 0.0
      %481 = vmatpush.msra.mxu0 %v428
      %482 = vmatpush.msra.mxu0 %v425
      %483 = vmatpush.msra.mxu0 %v422
      %484 = vmatpush.msra.mxu0 %v419
      %485 = vmatpush.msra.mxu0 %v416
      %486 = vmatpush.msra.mxu0 %v413
      %487 = vmatpush.msra.mxu0 %v410
      %488 = vmatpush.msra.mxu0 %v407
      %489 = vmatmul.f32.gmra.mxu0 %v431
      %v490 = vpop.f32.mrf.mxu0
      %v491 = vadd.f32 0.0, %v490
      %492 = vdwg.mxu0
      %v493 = vld [vmem:[%s6] sm:$0xff]
      %494 = vrot.lane.b32.xlu0 %v451, 18
      %v495 = vpop.permute.xlu0 %494
      %496 = vrot.lane.b32.xlu0 %v471, 18
      %v497 = vpop.permute.xlu0 %496
      %498 = vrot.lane.b32.xlu0 %v491, 18
      %v499 = vpop.permute.xlu0 %498
      %v500 = vlaneseq
      %v501 = vand.u32 %v500, 127
      %vm502 = vcmp.lt.s32.totalorder %v501, 18
      %v503 = vsel %vm502, %v497, %v499
      %v504 = vsel %vm502, %v495, %v497
      %v505 = vsel %vm502, %v499, %v495
      %v506 = vld [vmem:[%s9] ss:$8 sm:$0x7]
      %v508 = vperm.slane %v506, 0
      %v509 = vperm.slane %v506, 1
      %v510 = vperm.slane %v506, 2
      %v514 = vmul.f32 %v505, %v508
      %v515 = vmul.f32 %v504, %v509
      %v516 = vmul.f32 %v503, %v510
      %v517 = vld [vmem:[%s5] sm:$0xff]
      %518 = vrot.lane.b32.xlu0 %v451, 17
      %v519 = vpop.permute.xlu0 %518
      %520 = vrot.lane.b32.xlu0 %v471, 17
      %v521 = vpop.permute.xlu0 %520
      %522 = vrot.lane.b32.xlu0 %v491, 17
      %v523 = vpop.permute.xlu0 %522
      %vm524 = vcmp.lt.s32.totalorder %v501, 17
      %v525 = vsel %vm524, %v521, %v523
      %v526 = vsel %vm524, %v519, %v521
      %v527 = vsel %vm524, %v523, %v519
      %s528 = scalar_lea.vmem %s9, 1
      %v529 = vld [vmem:[%s528] ss:$8 sm:$0x7]
      %v531 = vperm.slane %v529, 0
      %v532 = vperm.slane %v529, 1
      %v533 = vperm.slane %v529, 2
      %v537 = vmul.f32 %v527, %v531
      %v538 = vmul.f32 %v526, %v532
      %v539 = vmul.f32 %v525, %v533
      %s540 = scalar_lea.vmem %s5, 8
      %v541 = vld [vmem:[%s540] sm:$0xff]
      %vm542 = vcmask 31744
      %v544 = vsel %vm542, %v541, 0
      %vm546 = vcmask 1043456
      %v548 = vsel %vm546, %v537, 0
      %v551 = vsel %vm546, %v538, 0
      %v554 = vsel %vm546, %v539, 0
      %556 = vmatpush.msra.mxu0 0.0
      %557 = vmatpush.msra.mxu0 0.0
      %558 = vmatpush.msra.mxu0 0.0
      %559 = vmatpush.msra.mxu0 0.0
      %560 = vmatpush.msra.mxu0 0.0
      %561 = vmatpush.msra.mxu0 0.0
      %562 = vmatpush.msra.mxu0 0.0
      %563 = vmatpush.msra.mxu0 0.0
      %564 = vmatpush.msra.mxu0 0.0
      %565 = vmatpush.msra.mxu0 0.0
      %566 = vmatpush.msra.mxu0 0.0
      %567 = vmatpush.msra.mxu0 0.0
      %568 = vmatpush.msra.mxu0 0.0
      %569 = vmatpush.msra.mxu0 0.0
      %570 = vmatpush.msra.mxu0 0.0
      %571 = vmatpush.msra.mxu0 %v548
      %572 = vmatmul.f32.gmra.mxu0 %v544
      %v573 = vpop.f32.mrf.mxu0
      %v574 = vadd.f32 0.0, %v573
      %575 = vdwg.mxu0
      %576 = vmatpush.msra.mxu0 0.0
      %577 = vmatpush.msra.mxu0 0.0
      %578 = vmatpush.msra.mxu0 0.0
      %579 = vmatpush.msra.mxu0 0.0
      %580 = vmatpush.msra.mxu0 0.0
      %581 = vmatpush.msra.mxu0 0.0
      %582 = vmatpush.msra.mxu0 0.0
      %583 = vmatpush.msra.mxu0 0.0
      %584 = vmatpush.msra.mxu0 0.0
      %585 = vmatpush.msra.mxu0 0.0
      %586 = vmatpush.msra.mxu0 0.0
      %587 = vmatpush.msra.mxu0 0.0
      %588 = vmatpush.msra.mxu0 0.0
      %589 = vmatpush.msra.mxu0 0.0
      %590 = vmatpush.msra.mxu0 0.0
      %591 = vmatpush.msra.mxu0 %v551
      %592 = vmatmul.f32.gmra.mxu0 %v544
      %v593 = vpop.f32.mrf.mxu0
      %v594 = vadd.f32 0.0, %v593
      %595 = vdwg.mxu0
      %596 = vmatpush.msra.mxu0 0.0
      %597 = vmatpush.msra.mxu0 0.0
      %598 = vmatpush.msra.mxu0 0.0
      %599 = vmatpush.msra.mxu0 0.0
      %600 = vmatpush.msra.mxu0 0.0
      %601 = vmatpush.msra.mxu0 0.0
      %602 = vmatpush.msra.mxu0 0.0
      %603 = vmatpush.msra.mxu0 0.0
      %604 = vmatpush.msra.mxu0 0.0
      %605 = vmatpush.msra.mxu0 0.0
      %606 = vmatpush.msra.mxu0 0.0
      %607 = vmatpush.msra.mxu0 0.0
      %608 = vmatpush.msra.mxu0 0.0
      %609 = vmatpush.msra.mxu0 0.0
      %610 = vmatpush.msra.mxu0 0.0
      %611 = vmatpush.msra.mxu0 %v554
      %612 = vmatmul.f32.gmra.mxu0 %v544
      %v613 = vpop.f32.mrf.mxu0
      %v614 = vadd.f32 0.0, %v613
      %615 = vdwg.mxu0
      %v617 = vsel %vm542, %v517, 0
      %v620 = vsel %vm546, %v514, 0
      %v623 = vsel %vm546, %v515, 0
      %v626 = vsel %vm546, %v516, 0
      %628 = vmatpush.msra.mxu0 0.0
      %629 = vmatpush.msra.mxu0 0.0
      %630 = vmatpush.msra.mxu0 0.0
      %631 = vmatpush.msra.mxu0 0.0
      %632 = vmatpush.msra.mxu0 0.0
      %633 = vmatpush.msra.mxu0 0.0
      %634 = vmatpush.msra.mxu0 0.0
      %635 = vmatpush.msra.mxu0 0.0
      %636 = vmatpush.msra.mxu0 0.0
      %637 = vmatpush.msra.mxu0 0.0
      %638 = vmatpush.msra.mxu0 0.0
      %639 = vmatpush.msra.mxu0 0.0
      %640 = vmatpush.msra.mxu0 0.0
      %641 = vmatpush.msra.mxu0 0.0
      %642 = vmatpush.msra.mxu0 0.0
      %643 = vmatpush.msra.mxu0 %v620
      %644 = vmatmul.f32.gmra.mxu0 %v617
      %v645 = vpop.f32.mrf.mxu0
      %v646 = vadd.f32 %v574, %v645
      %647 = vdwg.mxu0
      %648 = vmatpush.msra.mxu0 0.0
      %649 = vmatpush.msra.mxu0 0.0
      %650 = vmatpush.msra.mxu0 0.0
      %651 = vmatpush.msra.mxu0 0.0
      %652 = vmatpush.msra.mxu0 0.0
      %653 = vmatpush.msra.mxu0 0.0
      %654 = vmatpush.msra.mxu0 0.0
      %655 = vmatpush.msra.mxu0 0.0
      %656 = vmatpush.msra.mxu0 0.0
      %657 = vmatpush.msra.mxu0 0.0
      %658 = vmatpush.msra.mxu0 0.0
      %659 = vmatpush.msra.mxu0 0.0
      %660 = vmatpush.msra.mxu0 0.0
      %661 = vmatpush.msra.mxu0 0.0
      %662 = vmatpush.msra.mxu0 0.0
      %663 = vmatpush.msra.mxu0 %v623
      %664 = vmatmul.f32.gmra.mxu0 %v617
      %v665 = vpop.f32.mrf.mxu0
      %v666 = vadd.f32 %v594, %v665
      %667 = vdwg.mxu0
      %668 = vmatpush.msra.mxu0 0.0
      %669 = vmatpush.msra.mxu0 0.0
      %670 = vmatpush.msra.mxu0 0.0
      %671 = vmatpush.msra.mxu0 0.0
      %672 = vmatpush.msra.mxu0 0.0
      %673 = vmatpush.msra.mxu0 0.0
      %674 = vmatpush.msra.mxu0 0.0
      %675 = vmatpush.msra.mxu0 0.0
      %676 = vmatpush.msra.mxu0 0.0
      %677 = vmatpush.msra.mxu0 0.0
      %678 = vmatpush.msra.mxu0 0.0
      %679 = vmatpush.msra.mxu0 0.0
      %680 = vmatpush.msra.mxu0 0.0
      %681 = vmatpush.msra.mxu0 0.0
      %682 = vmatpush.msra.mxu0 0.0
      %683 = vmatpush.msra.mxu0 %v626
      %684 = vmatmul.f32.gmra.mxu0 %v617
      %v685 = vpop.f32.mrf.mxu0
      %v686 = vadd.f32 %v614, %v685
      %687 = vdwg.mxu0
      %688 = vrot.lane.b32.xlu0 %v451, 16
      %v689 = vpop.permute.xlu0 %688
      %690 = vrot.lane.b32.xlu0 %v471, 16
      %v691 = vpop.permute.xlu0 %690
      %692 = vrot.lane.b32.xlu0 %v491, 16
      %v693 = vpop.permute.xlu0 %692
      %vm694 = vcmp.lt.s32.totalorder %v501, 16
      %v695 = vsel %vm694, %v691, %v693
      %v696 = vsel %vm694, %v689, %v691
      %v697 = vsel %vm694, %v693, %v689
      %s698 = scalar_lea.vmem %s9, 2
      %v699 = vld [vmem:[%s698] ss:$8 sm:$0x7]
      %v701 = vperm.slane %v699, 0
      %v702 = vperm.slane %v699, 1
      %v703 = vperm.slane %v699, 2
      %v707 = vmul.f32 %v697, %v701
      %v708 = vmul.f32 %v696, %v702
      %v709 = vmul.f32 %v695, %v703
      %s710 = scalar_lea.vmem %s5, 16
      %v711 = vld [vmem:[%s710] sm:$0xff]
      %v713 = vsel %vm542, %v711, 0
      %v716 = vsel %vm546, %v707, 0
      %v719 = vsel %vm546, %v708, 0
      %v722 = vsel %vm546, %v709, 0
      %724 = vmatpush.msra.mxu0 0.0
      %725 = vmatpush.msra.mxu0 0.0
      %726 = vmatpush.msra.mxu0 0.0
      %727 = vmatpush.msra.mxu0 0.0
      %728 = vmatpush.msra.mxu0 0.0
      %729 = vmatpush.msra.mxu0 0.0
      %730 = vmatpush.msra.mxu0 0.0
      %731 = vmatpush.msra.mxu0 0.0
      %732 = vmatpush.msra.mxu0 0.0
      %733 = vmatpush.msra.mxu0 0.0
      %734 = vmatpush.msra.mxu0 0.0
      %735 = vmatpush.msra.mxu0 0.0
      %736 = vmatpush.msra.mxu0 0.0
      %737 = vmatpush.msra.mxu0 0.0
      %738 = vmatpush.msra.mxu0 0.0
      %739 = vmatpush.msra.mxu0 %v716
      %740 = vmatmul.f32.gmra.mxu0 %v713
      %v741 = vpop.f32.mrf.mxu0
      %v742 = vadd.f32 0.0, %v741
      %743 = vdwg.mxu0
      %744 = vmatpush.msra.mxu0 0.0
      %745 = vmatpush.msra.mxu0 0.0
      %746 = vmatpush.msra.mxu0 0.0
      %747 = vmatpush.msra.mxu0 0.0
      %748 = vmatpush.msra.mxu0 0.0
      %749 = vmatpush.msra.mxu0 0.0
      %750 = vmatpush.msra.mxu0 0.0
      %751 = vmatpush.msra.mxu0 0.0
      %752 = vmatpush.msra.mxu0 0.0
      %753 = vmatpush.msra.mxu0 0.0
      %754 = vmatpush.msra.mxu0 0.0
      %755 = vmatpush.msra.mxu0 0.0
      %756 = vmatpush.msra.mxu0 0.0
      %757 = vmatpush.msra.mxu0 0.0
      %758 = vmatpush.msra.mxu0 0.0
      %759 = vmatpush.msra.mxu0 %v719
      %760 = vmatmul.f32.gmra.mxu0 %v713
      %v761 = vpop.f32.mrf.mxu0
      %v762 = vadd.f32 0.0, %v761
      %763 = vdwg.mxu0
      %764 = vmatpush.msra.mxu0 0.0
      %765 = vmatpush.msra.mxu0 0.0
      %766 = vmatpush.msra.mxu0 0.0
      %767 = vmatpush.msra.mxu0 0.0
      %768 = vmatpush.msra.mxu0 0.0
      %769 = vmatpush.msra.mxu0 0.0
      %770 = vmatpush.msra.mxu0 0.0
      %771 = vmatpush.msra.mxu0 0.0
      %772 = vmatpush.msra.mxu0 0.0
      %773 = vmatpush.msra.mxu0 0.0
      %774 = vmatpush.msra.mxu0 0.0
      %775 = vmatpush.msra.mxu0 0.0
      %776 = vmatpush.msra.mxu0 0.0
      %777 = vmatpush.msra.mxu0 0.0
      %778 = vmatpush.msra.mxu0 0.0
      %779 = vmatpush.msra.mxu0 %v722
      %780 = vmatmul.f32.gmra.mxu0 %v713
      %v781 = vpop.f32.mrf.mxu0
      %v782 = vadd.f32 0.0, %v781
      %783 = vdwg.mxu0
      %v784 = vadd.f32 %v646, %v742
      %v785 = vadd.f32 %v666, %v762
      %v786 = vadd.f32 %v686, %v782
      %787 = vrot.lane.b32.xlu0 %v451, 1
      %v788 = vpop.permute.xlu0 %787
      %789 = vrot.lane.b32.xlu0 %v471, 1
      %v790 = vpop.permute.xlu0 %789
      %791 = vrot.lane.b32.xlu0 %v491, 1
      %v792 = vpop.permute.xlu0 %791
      %vm793 = vcmp.lt.s32.totalorder %v501, 1
      %v794 = vsel %vm793, %v790, %v792
      %v795 = vsel %vm793, %v788, %v790
      %v796 = vsel %vm793, %v792, %v788
      %s797 = scalar_lea.vmem %s9, 3
      %v798 = vld [vmem:[%s797] ss:$8 sm:$0x7]
      %v800 = vperm.slane %v798, 0
      %v801 = vperm.slane %v798, 1
      %v802 = vperm.slane %v798, 2
      %v806 = vmul.f32 %v796, %v800
      %v807 = vmul.f32 %v795, %v801
      %v808 = vmul.f32 %v794, %v802
      %s809 = scalar_lea.vmem %s5, 24
      %v810 = vld [vmem:[%s809] sm:$0xff]
      %v812 = vsel %vm542, %v810, 0
      %v815 = vsel %vm546, %v806, 0
      %v818 = vsel %vm546, %v807, 0
      %v821 = vsel %vm546, %v808, 0
      %823 = vmatpush.msra.mxu0 0.0
      %824 = vmatpush.msra.mxu0 0.0
      %825 = vmatpush.msra.mxu0 0.0
      %826 = vmatpush.msra.mxu0 0.0
      %827 = vmatpush.msra.mxu0 0.0
      %828 = vmatpush.msra.mxu0 0.0
      %829 = vmatpush.msra.mxu0 0.0
      %830 = vmatpush.msra.mxu0 0.0
      %831 = vmatpush.msra.mxu0 0.0
      %832 = vmatpush.msra.mxu0 0.0
      %833 = vmatpush.msra.mxu0 0.0
      %834 = vmatpush.msra.mxu0 0.0
      %835 = vmatpush.msra.mxu0 0.0
      %836 = vmatpush.msra.mxu0 0.0
      %837 = vmatpush.msra.mxu0 0.0
      %838 = vmatpush.msra.mxu0 %v815
      %839 = vmatmul.f32.gmra.mxu0 %v812
      %v840 = vpop.f32.mrf.mxu0
      %v841 = vadd.f32 0.0, %v840
      %842 = vdwg.mxu0
      %843 = vmatpush.msra.mxu0 0.0
      %844 = vmatpush.msra.mxu0 0.0
      %845 = vmatpush.msra.mxu0 0.0
      %846 = vmatpush.msra.mxu0 0.0
      %847 = vmatpush.msra.mxu0 0.0
      %848 = vmatpush.msra.mxu0 0.0
      %849 = vmatpush.msra.mxu0 0.0
      %850 = vmatpush.msra.mxu0 0.0
      %851 = vmatpush.msra.mxu0 0.0
      %852 = vmatpush.msra.mxu0 0.0
      %853 = vmatpush.msra.mxu0 0.0
      %854 = vmatpush.msra.mxu0 0.0
      %855 = vmatpush.msra.mxu0 0.0
      %856 = vmatpush.msra.mxu0 0.0
      %857 = vmatpush.msra.mxu0 0.0
      %858 = vmatpush.msra.mxu0 %v818
      %859 = vmatmul.f32.gmra.mxu0 %v812
      %v860 = vpop.f32.mrf.mxu0
      %v861 = vadd.f32 0.0, %v860
      %862 = vdwg.mxu0
      %863 = vmatpush.msra.mxu0 0.0
      %864 = vmatpush.msra.mxu0 0.0
      %865 = vmatpush.msra.mxu0 0.0
      %866 = vmatpush.msra.mxu0 0.0
      %867 = vmatpush.msra.mxu0 0.0
      %868 = vmatpush.msra.mxu0 0.0
      %869 = vmatpush.msra.mxu0 0.0
      %870 = vmatpush.msra.mxu0 0.0
      %871 = vmatpush.msra.mxu0 0.0
      %872 = vmatpush.msra.mxu0 0.0
      %873 = vmatpush.msra.mxu0 0.0
      %874 = vmatpush.msra.mxu0 0.0
      %875 = vmatpush.msra.mxu0 0.0
      %876 = vmatpush.msra.mxu0 0.0
      %877 = vmatpush.msra.mxu0 0.0
      %878 = vmatpush.msra.mxu0 %v821
      %879 = vmatmul.f32.gmra.mxu0 %v812
      %v880 = vpop.f32.mrf.mxu0
      %v881 = vadd.f32 0.0, %v880
      %882 = vdwg.mxu0
      %v883 = vadd.f32 %v784, %v841
      %v884 = vadd.f32 %v785, %v861
      %v885 = vadd.f32 %v786, %v881
      %s886 = scalar_lea.vmem %s5, 32
      %v887 = vld [vmem:[%s886] sm:$0xff]
      %v889 = vsel %vm542, %v887, 0
      %v892 = vsel %vm546, %v451, 0
      %v895 = vsel %vm546, %v471, 0
      %v898 = vsel %vm546, %v491, 0
      %900 = vmatpush.msra.mxu0 0.0
      %901 = vmatpush.msra.mxu0 0.0
      %902 = vmatpush.msra.mxu0 0.0
      %903 = vmatpush.msra.mxu0 0.0
      %904 = vmatpush.msra.mxu0 0.0
      %905 = vmatpush.msra.mxu0 0.0
      %906 = vmatpush.msra.mxu0 0.0
      %907 = vmatpush.msra.mxu0 0.0
      %908 = vmatpush.msra.mxu0 0.0
      %909 = vmatpush.msra.mxu0 0.0
      %910 = vmatpush.msra.mxu0 0.0
      %911 = vmatpush.msra.mxu0 0.0
      %912 = vmatpush.msra.mxu0 0.0
      %913 = vmatpush.msra.mxu0 0.0
      %914 = vmatpush.msra.mxu0 0.0
      %915 = vmatpush.msra.mxu0 %v892
      %916 = vmatmul.f32.gmra.mxu0 %v889
      %v917 = vpop.f32.mrf.mxu0
      %v918 = vadd.f32 0.0, %v917
      %919 = vdwg.mxu0
      %920 = vmatpush.msra.mxu0 0.0
      %921 = vmatpush.msra.mxu0 0.0
      %922 = vmatpush.msra.mxu0 0.0
      %923 = vmatpush.msra.mxu0 0.0
      %924 = vmatpush.msra.mxu0 0.0
      %925 = vmatpush.msra.mxu0 0.0
      %926 = vmatpush.msra.mxu0 0.0
      %927 = vmatpush.msra.mxu0 0.0
      %928 = vmatpush.msra.mxu0 0.0
      %929 = vmatpush.msra.mxu0 0.0
      %930 = vmatpush.msra.mxu0 0.0
      %931 = vmatpush.msra.mxu0 0.0
      %932 = vmatpush.msra.mxu0 0.0
      %933 = vmatpush.msra.mxu0 0.0
      %934 = vmatpush.msra.mxu0 0.0
      %935 = vmatpush.msra.mxu0 %v895
      %936 = vmatmul.f32.gmra.mxu0 %v889
      %v937 = vpop.f32.mrf.mxu0
      %v938 = vadd.f32 0.0, %v937
      %939 = vdwg.mxu0
      %940 = vmatpush.msra.mxu0 0.0
      %941 = vmatpush.msra.mxu0 0.0
      %942 = vmatpush.msra.mxu0 0.0
      %943 = vmatpush.msra.mxu0 0.0
      %944 = vmatpush.msra.mxu0 0.0
      %945 = vmatpush.msra.mxu0 0.0
      %946 = vmatpush.msra.mxu0 0.0
      %947 = vmatpush.msra.mxu0 0.0
      %948 = vmatpush.msra.mxu0 0.0
      %949 = vmatpush.msra.mxu0 0.0
      %950 = vmatpush.msra.mxu0 0.0
      %951 = vmatpush.msra.mxu0 0.0
      %952 = vmatpush.msra.mxu0 0.0
      %953 = vmatpush.msra.mxu0 0.0
      %954 = vmatpush.msra.mxu0 0.0
      %955 = vmatpush.msra.mxu0 %v898
      %956 = vmatmul.f32.gmra.mxu0 %v889
      %v957 = vpop.f32.mrf.mxu0
      %v958 = vadd.f32 0.0, %v957
      %959 = vdwg.mxu0
      %v960 = vadd.f32 %v883, %v918
      %v961 = vadd.f32 %v884, %v938
      %v962 = vadd.f32 %v885, %v958
      %963 = vrot.lane.b32.xlu0 %v451, 127
      %v964 = vpop.permute.xlu0 %963
      %965 = vrot.lane.b32.xlu0 %v471, 127
      %v966 = vpop.permute.xlu0 %965
      %967 = vrot.lane.b32.xlu0 %v491, 127
      %v968 = vpop.permute.xlu0 %967
      %vm969 = vcmp.lt.s32.totalorder %v501, 127
      %v970 = vsel %vm969, %v966, %v968
      %v971 = vsel %vm969, %v964, %v966
      %v972 = vsel %vm969, %v968, %v964
      %s973 = scalar_lea.vmem %s9, 5
      %v974 = vld [vmem:[%s973] ss:$8 sm:$0x7]
      %v976 = vperm.slane %v974, 0
      %v977 = vperm.slane %v974, 1
      %v978 = vperm.slane %v974, 2
      %v982 = vmul.f32 %v971, %v976
      %v983 = vmul.f32 %v970, %v977
      %v984 = vmul.f32 %v972, %v978
      %s985 = scalar_lea.vmem %s5, 40
      %v986 = vld [vmem:[%s985] sm:$0xff]
      %v988 = vsel %vm542, %v986, 0
      %v991 = vsel %vm546, %v982, 0
      %v994 = vsel %vm546, %v983, 0
      %v997 = vsel %vm546, %v984, 0
      %999 = vmatpush.msra.mxu0 0.0
      %1000 = vmatpush.msra.mxu0 0.0
      %1001 = vmatpush.msra.mxu0 0.0
      %1002 = vmatpush.msra.mxu0 0.0
      %1003 = vmatpush.msra.mxu0 0.0
      %1004 = vmatpush.msra.mxu0 0.0
      %1005 = vmatpush.msra.mxu0 0.0
      %1006 = vmatpush.msra.mxu0 0.0
      %1007 = vmatpush.msra.mxu0 0.0
      %1008 = vmatpush.msra.mxu0 0.0
      %1009 = vmatpush.msra.mxu0 0.0
      %1010 = vmatpush.msra.mxu0 0.0
      %1011 = vmatpush.msra.mxu0 0.0
      %1012 = vmatpush.msra.mxu0 0.0
      %1013 = vmatpush.msra.mxu0 0.0
      %1014 = vmatpush.msra.mxu0 %v991
      %1015 = vmatmul.f32.gmra.mxu0 %v988
      %v1016 = vpop.f32.mrf.mxu0
      %v1017 = vadd.f32 0.0, %v1016
      %1018 = vdwg.mxu0
      %1019 = vmatpush.msra.mxu0 0.0
      %1020 = vmatpush.msra.mxu0 0.0
      %1021 = vmatpush.msra.mxu0 0.0
      %1022 = vmatpush.msra.mxu0 0.0
      %1023 = vmatpush.msra.mxu0 0.0
      %1024 = vmatpush.msra.mxu0 0.0
      %1025 = vmatpush.msra.mxu0 0.0
      %1026 = vmatpush.msra.mxu0 0.0
      %1027 = vmatpush.msra.mxu0 0.0
      %1028 = vmatpush.msra.mxu0 0.0
      %1029 = vmatpush.msra.mxu0 0.0
      %1030 = vmatpush.msra.mxu0 0.0
      %1031 = vmatpush.msra.mxu0 0.0
      %1032 = vmatpush.msra.mxu0 0.0
      %1033 = vmatpush.msra.mxu0 0.0
      %1034 = vmatpush.msra.mxu0 %v994
      %1035 = vmatmul.f32.gmra.mxu0 %v988
      %v1036 = vpop.f32.mrf.mxu0
      %v1037 = vadd.f32 0.0, %v1036
      %1038 = vdwg.mxu0
      %1039 = vmatpush.msra.mxu0 0.0
      %1040 = vmatpush.msra.mxu0 0.0
      %1041 = vmatpush.msra.mxu0 0.0
      %1042 = vmatpush.msra.mxu0 0.0
      %1043 = vmatpush.msra.mxu0 0.0
      %1044 = vmatpush.msra.mxu0 0.0
      %1045 = vmatpush.msra.mxu0 0.0
      %1046 = vmatpush.msra.mxu0 0.0
      %1047 = vmatpush.msra.mxu0 0.0
      %1048 = vmatpush.msra.mxu0 0.0
      %1049 = vmatpush.msra.mxu0 0.0
      %1050 = vmatpush.msra.mxu0 0.0
      %1051 = vmatpush.msra.mxu0 0.0
      %1052 = vmatpush.msra.mxu0 0.0
      %1053 = vmatpush.msra.mxu0 0.0
      %1054 = vmatpush.msra.mxu0 %v997
      %1055 = vmatmul.f32.gmra.mxu0 %v988
      %v1056 = vpop.f32.mrf.mxu0
      %v1057 = vadd.f32 0.0, %v1056
      %1058 = vdwg.mxu0
      %v1059 = vadd.f32 %v960, %v1017
      %v1060 = vadd.f32 %v961, %v1037
      %v1061 = vadd.f32 %v962, %v1057
      %1062 = vrot.lane.b32.xlu0 %v451, 112
      %v1063 = vpop.permute.xlu0 %1062
      %1064 = vrot.lane.b32.xlu0 %v471, 112
      %v1065 = vpop.permute.xlu0 %1064
      %1066 = vrot.lane.b32.xlu0 %v491, 112
      %v1067 = vpop.permute.xlu0 %1066
      %vm1068 = vcmp.lt.s32.totalorder %v501, 112
      %v1069 = vsel %vm1068, %v1065, %v1067
      %v1070 = vsel %vm1068, %v1063, %v1065
      %v1071 = vsel %vm1068, %v1067, %v1063
      %s1072 = scalar_lea.vmem %s9, 6
      %v1073 = vld [vmem:[%s1072] ss:$8 sm:$0x7]
      %v1075 = vperm.slane %v1073, 0
      %v1076 = vperm.slane %v1073, 1
      %v1077 = vperm.slane %v1073, 2
      %v1081 = vmul.f32 %v1070, %v1075
      %v1082 = vmul.f32 %v1069, %v1076
      %v1083 = vmul.f32 %v1071, %v1077
      %s1084 = scalar_lea.vmem %s5, 48
      %v1085 = vld [vmem:[%s1084] sm:$0xff]
      %v1087 = vsel %vm542, %v1085, 0
      %v1090 = vsel %vm546, %v1081, 0
      %v1093 = vsel %vm546, %v1082, 0
      %v1096 = vsel %vm546, %v1083, 0
      %1098 = vmatpush.msra.mxu0 0.0
      %1099 = vmatpush.msra.mxu0 0.0
      %1100 = vmatpush.msra.mxu0 0.0
      %1101 = vmatpush.msra.mxu0 0.0
      %1102 = vmatpush.msra.mxu0 0.0
      %1103 = vmatpush.msra.mxu0 0.0
      %1104 = vmatpush.msra.mxu0 0.0
      %1105 = vmatpush.msra.mxu0 0.0
      %1106 = vmatpush.msra.mxu0 0.0
      %1107 = vmatpush.msra.mxu0 0.0
      %1108 = vmatpush.msra.mxu0 0.0
      %1109 = vmatpush.msra.mxu0 0.0
      %1110 = vmatpush.msra.mxu0 0.0
      %1111 = vmatpush.msra.mxu0 0.0
      %1112 = vmatpush.msra.mxu0 0.0
      %1113 = vmatpush.msra.mxu0 %v1090
      %1114 = vmatmul.f32.gmra.mxu0 %v1087
      %v1115 = vpop.f32.mrf.mxu0
      %v1116 = vadd.f32 0.0, %v1115
      %1117 = vdwg.mxu0
      %1118 = vmatpush.msra.mxu0 0.0
      %1119 = vmatpush.msra.mxu0 0.0
      %1120 = vmatpush.msra.mxu0 0.0
      %1121 = vmatpush.msra.mxu0 0.0
      %1122 = vmatpush.msra.mxu0 0.0
      %1123 = vmatpush.msra.mxu0 0.0
      %1124 = vmatpush.msra.mxu0 0.0
      %1125 = vmatpush.msra.mxu0 0.0
      %1126 = vmatpush.msra.mxu0 0.0
      %1127 = vmatpush.msra.mxu0 0.0
      %1128 = vmatpush.msra.mxu0 0.0
      %1129 = vmatpush.msra.mxu0 0.0
      %1130 = vmatpush.msra.mxu0 0.0
      %1131 = vmatpush.msra.mxu0 0.0
      %1132 = vmatpush.msra.mxu0 0.0
      %1133 = vmatpush.msra.mxu0 %v1093
      %1134 = vmatmul.f32.gmra.mxu0 %v1087
      %v1135 = vpop.f32.mrf.mxu0
      %v1136 = vadd.f32 0.0, %v1135
      %1137 = vdwg.mxu0
      %1138 = vmatpush.msra.mxu0 0.0
      %1139 = vmatpush.msra.mxu0 0.0
      %1140 = vmatpush.msra.mxu0 0.0
      %1141 = vmatpush.msra.mxu0 0.0
      %1142 = vmatpush.msra.mxu0 0.0
      %1143 = vmatpush.msra.mxu0 0.0
      %1144 = vmatpush.msra.mxu0 0.0
      %1145 = vmatpush.msra.mxu0 0.0
      %1146 = vmatpush.msra.mxu0 0.0
      %1147 = vmatpush.msra.mxu0 0.0
      %1148 = vmatpush.msra.mxu0 0.0
      %1149 = vmatpush.msra.mxu0 0.0
      %1150 = vmatpush.msra.mxu0 0.0
      %1151 = vmatpush.msra.mxu0 0.0
      %1152 = vmatpush.msra.mxu0 0.0
      %1153 = vmatpush.msra.mxu0 %v1096
      %1154 = vmatmul.f32.gmra.mxu0 %v1087
      %v1155 = vpop.f32.mrf.mxu0
      %v1156 = vadd.f32 0.0, %v1155
      %1157 = vdwg.mxu0
      %v1158 = vadd.f32 %v1059, %v1116
      %v1159 = vadd.f32 %v1060, %v1136
      %v1160 = vadd.f32 %v1061, %v1156
      %1161 = vrot.lane.b32.xlu0 %v451, 111
      %v1162 = vpop.permute.xlu0 %1161
      %1163 = vrot.lane.b32.xlu0 %v471, 111
      %v1164 = vpop.permute.xlu0 %1163
      %1165 = vrot.lane.b32.xlu0 %v491, 111
      %v1166 = vpop.permute.xlu0 %1165
      %vm1167 = vcmp.lt.s32.totalorder %v501, 111
      %v1168 = vsel %vm1167, %v1164, %v1166
      %v1169 = vsel %vm1167, %v1162, %v1164
      %v1170 = vsel %vm1167, %v1166, %v1162
      %s1171 = scalar_lea.vmem %s9, 7
      %v1172 = vld [vmem:[%s1171] ss:$8 sm:$0x7]
      %v1174 = vperm.slane %v1172, 0
      %v1175 = vperm.slane %v1172, 1
      %v1176 = vperm.slane %v1172, 2
      %v1180 = vmul.f32 %v1169, %v1174
      %v1181 = vmul.f32 %v1168, %v1175
      %v1182 = vmul.f32 %v1170, %v1176
      %s1183 = scalar_lea.vmem %s5, 56
      %v1184 = vld [vmem:[%s1183] sm:$0xff]
      %v1186 = vsel %vm542, %v1184, 0
      %v1189 = vsel %vm546, %v1180, 0
      %v1192 = vsel %vm546, %v1181, 0
      %v1195 = vsel %vm546, %v1182, 0
      %1197 = vmatpush.msra.mxu0 0.0
      %1198 = vmatpush.msra.mxu0 0.0
      %1199 = vmatpush.msra.mxu0 0.0
      %1200 = vmatpush.msra.mxu0 0.0
      %1201 = vmatpush.msra.mxu0 0.0
      %1202 = vmatpush.msra.mxu0 0.0
      %1203 = vmatpush.msra.mxu0 0.0
      %1204 = vmatpush.msra.mxu0 0.0
      %1205 = vmatpush.msra.mxu0 0.0
      %1206 = vmatpush.msra.mxu0 0.0
      %1207 = vmatpush.msra.mxu0 0.0
      %1208 = vmatpush.msra.mxu0 0.0
      %1209 = vmatpush.msra.mxu0 0.0
      %1210 = vmatpush.msra.mxu0 0.0
      %1211 = vmatpush.msra.mxu0 0.0
      %1212 = vmatpush.msra.mxu0 %v1189
      %1213 = vmatmul.f32.gmra.mxu0 %v1186
      %v1214 = vpop.f32.mrf.mxu0
      %v1215 = vadd.f32 0.0, %v1214
      %1216 = vdwg.mxu0
      %1217 = vmatpush.msra.mxu0 0.0
      %1218 = vmatpush.msra.mxu0 0.0
      %1219 = vmatpush.msra.mxu0 0.0
      %1220 = vmatpush.msra.mxu0 0.0
      %1221 = vmatpush.msra.mxu0 0.0
      %1222 = vmatpush.msra.mxu0 0.0
      %1223 = vmatpush.msra.mxu0 0.0
      %1224 = vmatpush.msra.mxu0 0.0
      %1225 = vmatpush.msra.mxu0 0.0
      %1226 = vmatpush.msra.mxu0 0.0
      %1227 = vmatpush.msra.mxu0 0.0
      %1228 = vmatpush.msra.mxu0 0.0
      %1229 = vmatpush.msra.mxu0 0.0
      %1230 = vmatpush.msra.mxu0 0.0
      %1231 = vmatpush.msra.mxu0 0.0
      %1232 = vmatpush.msra.mxu0 %v1192
      %1233 = vmatmul.f32.gmra.mxu0 %v1186
      %v1234 = vpop.f32.mrf.mxu0
      %v1235 = vadd.f32 0.0, %v1234
      %1236 = vdwg.mxu0
      %1237 = vmatpush.msra.mxu0 0.0
      %1238 = vmatpush.msra.mxu0 0.0
      %1239 = vmatpush.msra.mxu0 0.0
      %1240 = vmatpush.msra.mxu0 0.0
      %1241 = vmatpush.msra.mxu0 0.0
      %1242 = vmatpush.msra.mxu0 0.0
      %1243 = vmatpush.msra.mxu0 0.0
      %1244 = vmatpush.msra.mxu0 0.0
      %1245 = vmatpush.msra.mxu0 0.0
      %1246 = vmatpush.msra.mxu0 0.0
      %1247 = vmatpush.msra.mxu0 0.0
      %1248 = vmatpush.msra.mxu0 0.0
      %1249 = vmatpush.msra.mxu0 0.0
      %1250 = vmatpush.msra.mxu0 0.0
      %1251 = vmatpush.msra.mxu0 0.0
      %1252 = vmatpush.msra.mxu0 %v1195
      %1253 = vmatmul.f32.gmra.mxu0 %v1186
      %v1254 = vpop.f32.mrf.mxu0
      %v1255 = vadd.f32 0.0, %v1254
      %1256 = vdwg.mxu0
      %v1257 = vadd.f32 %v1158, %v1215
      %v1258 = vadd.f32 %v1159, %v1235
      %v1259 = vadd.f32 %v1160, %v1255
      %1260 = vrot.lane.b32.xlu0 %v451, 110
      %v1261 = vpop.permute.xlu0 %1260
      %1262 = vrot.lane.b32.xlu0 %v471, 110
      %v1263 = vpop.permute.xlu0 %1262
      %1264 = vrot.lane.b32.xlu0 %v491, 110
      %v1265 = vpop.permute.xlu0 %1264
      %vm1266 = vcmp.lt.s32.totalorder %v501, 110
      %v1267 = vsel %vm1266, %v1263, %v1265
      %v1268 = vsel %vm1266, %v1261, %v1263
      %v1269 = vsel %vm1266, %v1265, %v1261
      %s1270 = scalar_lea.vmem %s9, 24
      %v1271 = vld [vmem:[%s1270] ss:$8 sm:$0x7]
      %v1273 = vperm.slane %v1271, 0
      %v1274 = vperm.slane %v1271, 1
      %v1275 = vperm.slane %v1271, 2
      %v1279 = vmul.f32 %v1268, %v1273
      %v1280 = vmul.f32 %v1267, %v1274
      %v1281 = vmul.f32 %v1269, %v1275
      %s1282 = scalar_lea.vmem %s5, 64
      %v1283 = vld [vmem:[%s1282] sm:$0xff]
      %v1285 = vsel %vm542, %v1283, 0
      %v1288 = vsel %vm546, %v1279, 0
      %v1291 = vsel %vm546, %v1280, 0
      %v1294 = vsel %vm546, %v1281, 0
      %1296 = vmatpush.msra.mxu0 0.0
      %1297 = vmatpush.msra.mxu0 0.0
      %1298 = vmatpush.msra.mxu0 0.0
      %1299 = vmatpush.msra.mxu0 0.0
      %1300 = vmatpush.msra.mxu0 0.0
      %1301 = vmatpush.msra.mxu0 0.0
      %1302 = vmatpush.msra.mxu0 0.0
      %1303 = vmatpush.msra.mxu0 0.0
      %1304 = vmatpush.msra.mxu0 0.0
      %1305 = vmatpush.msra.mxu0 0.0
      %1306 = vmatpush.msra.mxu0 0.0
      %1307 = vmatpush.msra.mxu0 0.0
      %1308 = vmatpush.msra.mxu0 0.0
      %1309 = vmatpush.msra.mxu0 0.0
      %1310 = vmatpush.msra.mxu0 0.0
      %1311 = vmatpush.msra.mxu0 %v1288
      %1312 = vmatmul.f32.gmra.mxu0 %v1285
      %v1313 = vpop.f32.mrf.mxu0
      %v1314 = vadd.f32 0.0, %v1313
      %1315 = vdwg.mxu0
      %1316 = vmatpush.msra.mxu0 0.0
      %1317 = vmatpush.msra.mxu0 0.0
      %1318 = vmatpush.msra.mxu0 0.0
      %1319 = vmatpush.msra.mxu0 0.0
      %1320 = vmatpush.msra.mxu0 0.0
      %1321 = vmatpush.msra.mxu0 0.0
      %1322 = vmatpush.msra.mxu0 0.0
      %1323 = vmatpush.msra.mxu0 0.0
      %1324 = vmatpush.msra.mxu0 0.0
      %1325 = vmatpush.msra.mxu0 0.0
      %1326 = vmatpush.msra.mxu0 0.0
      %1327 = vmatpush.msra.mxu0 0.0
      %1328 = vmatpush.msra.mxu0 0.0
      %1329 = vmatpush.msra.mxu0 0.0
      %1330 = vmatpush.msra.mxu0 0.0
      %1331 = vmatpush.msra.mxu0 %v1291
      %1332 = vmatmul.f32.gmra.mxu0 %v1285
      %v1333 = vpop.f32.mrf.mxu0
      %v1334 = vadd.f32 0.0, %v1333
      %1335 = vdwg.mxu0
      %1336 = vmatpush.msra.mxu0 0.0
      %1337 = vmatpush.msra.mxu0 0.0
      %1338 = vmatpush.msra.mxu0 0.0
      %1339 = vmatpush.msra.mxu0 0.0
      %1340 = vmatpush.msra.mxu0 0.0
      %1341 = vmatpush.msra.mxu0 0.0
      %1342 = vmatpush.msra.mxu0 0.0
      %1343 = vmatpush.msra.mxu0 0.0
      %1344 = vmatpush.msra.mxu0 0.0
      %1345 = vmatpush.msra.mxu0 0.0
      %1346 = vmatpush.msra.mxu0 0.0
      %1347 = vmatpush.msra.mxu0 0.0
      %1348 = vmatpush.msra.mxu0 0.0
      %1349 = vmatpush.msra.mxu0 0.0
      %1350 = vmatpush.msra.mxu0 0.0
      %1351 = vmatpush.msra.mxu0 %v1294
      %1352 = vmatmul.f32.gmra.mxu0 %v1285
      %v1353 = vpop.f32.mrf.mxu0
      %v1354 = vadd.f32 0.0, %v1353
      %1355 = vdwg.mxu0
      %v1356 = vadd.f32 %v1257, %v1314
      %v1357 = vadd.f32 %v1258, %v1334
      %v1358 = vadd.f32 %v1259, %v1354
      %1360 = vset.pattern.permute.xlu0 0
      %1361 = vperm.xlu0 %1360, %v493
      %v1362 = vpop.permute.xlu0 %1361
      %v1364 = vadd.f32 %v1356, %v1362
      %v1365 = vadd.f32 %v1357, %v1362
      %v1366 = vadd.f32 %v1358, %v1362
      %v1367 = vld [vmem:[%s3] sm:$0xff]
      %v1368 = vld [vmem:[%s3 + $0x8] sm:$0xff]
      %v1369 = vld [vmem:[%s3 + $0x10] sm:$0xff]
      %v1370 = vld [vmem:[%s3 + $0x18] sm:$0xff]
      %v1371 = vld [vmem:[%s3 + $0x20] sm:$0xff]
      %v1372 = vld [vmem:[%s3 + $0x28] sm:$0xff]
      %v1373 = vld [vmem:[%s3 + $0x30] sm:$0xff]
      %v1374 = vld [vmem:[%s3 + $0x38] sm:$0xff]
      %v1375 = vld [vmem:[%s3 + $0x40] sm:$0xff]
      %v1376 = vld [vmem:[%s3 + $0x48] sm:$0xff]
      %v1377 = vld [vmem:[%s3 + $0x50] sm:$0xff]
      %v1378 = vld [vmem:[%s3 + $0x58] sm:$0xff]
      %v1379 = vld [vmem:[%s3 + $0x60] sm:$0xff]
      %v1380 = vld [vmem:[%s3 + $0x68] sm:$0xff]
      %v1381 = vld [vmem:[%s3 + $0x70] sm:$0xff]
      %v1382 = vld [vmem:[%s3 + $0x78] sm:$0xff]
      %v1383 = vld [vmem:[%s3 + $0x80] sm:$0xff]
      %v1384 = vld [vmem:[%s3 + $0x88] sm:$0xff]
      %v1385 = vld [vmem:[%s3 + $0x90] sm:$0xff]
      %v1386 = vld [vmem:[%s3 + $0x98] sm:$0xff]
      %v1387 = vld [vmem:[%s3 + $0xa0] sm:$0xff]
      %v1388 = vld [vmem:[%s3 + $0xa8] sm:$0xff]
      %v1389 = vld [vmem:[%s3 + $0xb0] sm:$0xff]
      %v1390 = vld [vmem:[%s3 + $0xb8] sm:$0xff]
      %v1391 = vld [vmem:[%s3 + $0xc0] sm:$0xff]
      %v1392 = vld [vmem:[%s3 + $0xc8] sm:$0xff]
      %v1393 = vld [vmem:[%s3 + $0xd0] sm:$0xff]
      %v1394 = vld [vmem:[%s3 + $0xd8] sm:$0xff]
      %v1395 = vld [vmem:[%s3 + $0xe0] sm:$0xff]
      %v1396 = vld [vmem:[%s3 + $0xe8] sm:$0xff]
      %v1397 = vld [vmem:[%s3 + $0xf0] sm:$0xff]
      %v1398 = vld [vmem:[%s3 + $0xf8] sm:$0xff]
      %v1399 = vld [vmem:[%s3 + $0x100] sm:$0xff]
      %v1400 = vld [vmem:[%s3 + $0x108] sm:$0xff]
      %v1401 = vld [vmem:[%s3 + $0x110] sm:$0xff]
      %v1402 = vld [vmem:[%s3 + $0x118] sm:$0xff]
      %v1403 = vld [vmem:[%s3 + $0x120] sm:$0xff]
      %v1404 = vld [vmem:[%s3 + $0x128] sm:$0xff]
      %v1405 = vld [vmem:[%s3 + $0x130] sm:$0xff]
      %v1406 = vld [vmem:[%s3 + $0x138] sm:$0xff]
      %v1407 = vld [vmem:[%s3 + $0x140] sm:$0xff]
      %v1408 = vld [vmem:[%s3 + $0x148] sm:$0xff]
      %v1409 = vld [vmem:[%s3 + $0x150] sm:$0xff]
      %v1410 = vld [vmem:[%s3 + $0x158] sm:$0xff]
      %v1411 = vld [vmem:[%s3 + $0x160] sm:$0xff]
      %v1412 = vld [vmem:[%s3 + $0x168] sm:$0xff]
      %v1413 = vld [vmem:[%s3 + $0x170] sm:$0xff]
      %v1414 = vld [vmem:[%s3 + $0x178] sm:$0xff]
      %v1415 = vld [vmem:[%s3 + $0x180] sm:$0xff]
      %v1416 = vld [vmem:[%s3 + $0x188] sm:$0xff]
      %v1417 = vld [vmem:[%s3 + $0x190] sm:$0xff]
      %v1418 = vld [vmem:[%s3 + $0x198] sm:$0xff]
      %v1419 = vld [vmem:[%s3 + $0x1a0] sm:$0xff]
      %v1420 = vld [vmem:[%s3 + $0x1a8] sm:$0xff]
      %v1421 = vld [vmem:[%s3 + $0x1b0] sm:$0xff]
      %v1422 = vld [vmem:[%s3 + $0x1b8] sm:$0xff]
      %v1423 = vld [vmem:[%s3 + $0x1c0] sm:$0xff]
      %v1424 = vld [vmem:[%s3 + $0x1c8] sm:$0xff]
      %v1425 = vld [vmem:[%s3 + $0x1d0] sm:$0xff]
      %v1426 = vld [vmem:[%s3 + $0x1d8] sm:$0xff]
      %v1427 = vld [vmem:[%s3 + $0x1e0] sm:$0xff]
      %v1428 = vld [vmem:[%s3 + $0x1e8] sm:$0xff]
      %v1429 = vld [vmem:[%s3 + $0x1f0] sm:$0xff]
      %v1430 = vld [vmem:[%s3 + $0x1f8] sm:$0xff]
      %v1431 = vld [vmem:[%s3 + $0x200] sm:$0xff]
      %v1432 = vld [vmem:[%s3 + $0x208] sm:$0xff]
      %v1433 = vld [vmem:[%s3 + $0x210] sm:$0xff]
      %v1434 = vld [vmem:[%s3 + $0x218] sm:$0xff]
      %v1435 = vld [vmem:[%s3 + $0x220] sm:$0xff]
      %v1436 = vld [vmem:[%s3 + $0x228] sm:$0xff]
      %v1437 = vld [vmem:[%s3 + $0x230] sm:$0xff]
      %v1438 = vld [vmem:[%s3 + $0x238] sm:$0xff]
      %v1439 = vld [vmem:[%s3 + $0x240] sm:$0xff]
      %v1440 = vld [vmem:[%s3 + $0x248] sm:$0xff]
      %v1441 = vld [vmem:[%s3 + $0x250] sm:$0xff]
      %v1442 = vld [vmem:[%s3 + $0x258] sm:$0xff]
      %v1443 = vld [vmem:[%s3 + $0x260] sm:$0xff]
      %v1444 = vld [vmem:[%s3 + $0x268] sm:$0xff]
      %v1445 = vld [vmem:[%s3 + $0x270] sm:$0xff]
      %v1446 = vld [vmem:[%s3 + $0x278] sm:$0xff]
      %v1447 = vld [vmem:[%s3 + $0x280] sm:$0xff]
      %v1448 = vld [vmem:[%s3 + $0x288] sm:$0xff]
      %v1449 = vld [vmem:[%s3 + $0x290] sm:$0xff]
      %v1450 = vld [vmem:[%s3 + $0x298] sm:$0xff]
      %v1451 = vld [vmem:[%s3 + $0x2a0] sm:$0xff]
      %v1452 = vld [vmem:[%s3 + $0x2a8] sm:$0xff]
      %v1453 = vld [vmem:[%s3 + $0x2b0] sm:$0xff]
      %v1454 = vld [vmem:[%s3 + $0x2b8] sm:$0xff]
      %v1455 = vld [vmem:[%s3 + $0x2c0] sm:$0xff]
      %v1456 = vld [vmem:[%s3 + $0x2c8] sm:$0xff]
      %v1457 = vld [vmem:[%s3 + $0x2d0] sm:$0xff]
      %v1458 = vld [vmem:[%s3 + $0x2d8] sm:$0xff]
      %v1459 = vld [vmem:[%s3 + $0x2e0] sm:$0xff]
      %v1460 = vld [vmem:[%s3 + $0x2e8] sm:$0xff]
      %v1461 = vld [vmem:[%s3 + $0x2f0] sm:$0xff]
      %v1462 = vld [vmem:[%s3 + $0x2f8] sm:$0xff]
      %v1463 = vld [vmem:[%s3 + $0x300] sm:$0xff]
      %v1464 = vld [vmem:[%s3 + $0x308] sm:$0xff]
      %v1465 = vld [vmem:[%s3 + $0x310] sm:$0xff]
      %v1466 = vld [vmem:[%s3 + $0x318] sm:$0xff]
      %v1467 = vld [vmem:[%s3 + $0x320] sm:$0xff]
      %v1468 = vld [vmem:[%s3 + $0x328] sm:$0xff]
      %v1469 = vld [vmem:[%s3 + $0x330] sm:$0xff]
      %v1470 = vld [vmem:[%s3 + $0x338] sm:$0xff]
      %v1471 = vld [vmem:[%s3 + $0x340] sm:$0xff]
      %v1472 = vld [vmem:[%s3 + $0x348] sm:$0xff]
      %v1473 = vld [vmem:[%s3 + $0x350] sm:$0xff]
      %v1474 = vld [vmem:[%s3 + $0x358] sm:$0xff]
      %v1475 = vld [vmem:[%s3 + $0x360] sm:$0xff]
      %v1476 = vld [vmem:[%s3 + $0x368] sm:$0xff]
      %v1477 = vld [vmem:[%s3 + $0x370] sm:$0xff]
      %v1478 = vld [vmem:[%s3 + $0x378] sm:$0xff]
      %v1479 = vld [vmem:[%s3 + $0x380] sm:$0xff]
      %v1480 = vld [vmem:[%s3 + $0x388] sm:$0xff]
      %v1481 = vld [vmem:[%s3 + $0x390] sm:$0xff]
      %v1482 = vld [vmem:[%s3 + $0x398] sm:$0xff]
      %v1483 = vld [vmem:[%s3 + $0x3a0] sm:$0xff]
      %v1484 = vld [vmem:[%s3 + $0x3a8] sm:$0xff]
      %v1485 = vld [vmem:[%s3 + $0x3b0] sm:$0xff]
      %v1486 = vld [vmem:[%s3 + $0x3b8] sm:$0xff]
      %v1487 = vld [vmem:[%s3 + $0x3c0] sm:$0xff]
      %v1488 = vld [vmem:[%s3 + $0x3c8] sm:$0xff]
      %v1489 = vld [vmem:[%s3 + $0x3d0] sm:$0xff]
      %v1490 = vld [vmem:[%s3 + $0x3d8] sm:$0xff]
      %v1491 = vld [vmem:[%s3 + $0x3e0] sm:$0xff]
      %v1492 = vld [vmem:[%s3 + $0x3e8] sm:$0xff]
      %v1493 = vld [vmem:[%s3 + $0x3f0] sm:$0xff]
      %v1494 = vld [vmem:[%s3 + $0x3f8] sm:$0xff]
      %v1495 = vld [vmem:[%s3 + $0x400] sm:$0xff]
      %v1496 = vld [vmem:[%s3 + $0x408] sm:$0xff]
      %v1497 = vld [vmem:[%s3 + $0x410] sm:$0xff]
      %v1498 = vld [vmem:[%s3 + $0x418] sm:$0xff]
      %v1499 = vld [vmem:[%s3 + $0x420] sm:$0xff]
      %v1500 = vld [vmem:[%s3 + $0x428] sm:$0xff]
      %v1501 = vld [vmem:[%s3 + $0x430] sm:$0xff]
      %v1502 = vld [vmem:[%s3 + $0x438] sm:$0xff]
      %v1503 = vld [vmem:[%s3 + $0x440] sm:$0xff]
      %v1504 = vld [vmem:[%s3 + $0x448] sm:$0xff]
      %v1505 = vld [vmem:[%s3 + $0x450] sm:$0xff]
      %v1506 = vld [vmem:[%s3 + $0x458] sm:$0xff]
      %v1507 = vld [vmem:[%s3 + $0x460] sm:$0xff]
      %v1508 = vld [vmem:[%s3 + $0x468] sm:$0xff]
      %v1509 = vld [vmem:[%s3 + $0x470] sm:$0xff]
      %v1510 = vld [vmem:[%s3 + $0x478] sm:$0xff]
      %v1511 = vld [vmem:[%s3 + $0x480] sm:$0xff]
      %v1512 = vld [vmem:[%s3 + $0x488] sm:$0xff]
      %v1513 = vld [vmem:[%s3 + $0x490] sm:$0xff]
      %v1514 = vld [vmem:[%s3 + $0x498] sm:$0xff]
      %v1515 = vld [vmem:[%s3 + $0x4a0] sm:$0xff]
      %v1516 = vld [vmem:[%s3 + $0x4a8] sm:$0xff]
      %v1517 = vld [vmem:[%s3 + $0x4b0] sm:$0xff]
      %v1518 = vld [vmem:[%s3 + $0x4b8] sm:$0xff]
      %v1519 = vld [vmem:[%s3 + $0x4c0] sm:$0xff]
      %v1520 = vld [vmem:[%s3 + $0x4c8] sm:$0xff]
      %v1521 = vld [vmem:[%s3 + $0x4d0] sm:$0xff]
      %v1522 = vld [vmem:[%s3 + $0x4d8] sm:$0xff]
      %v1523 = vld [vmem:[%s3 + $0x4e0] sm:$0xff]
      %v1524 = vld [vmem:[%s3 + $0x4e8] sm:$0xff]
      %v1525 = vld [vmem:[%s3 + $0x4f0] sm:$0xff]
      %v1526 = vld [vmem:[%s3 + $0x4f8] sm:$0xff]
      %v1527 = vld [vmem:[%s3 + $0x500] sm:$0xff]
      %v1528 = vld [vmem:[%s3 + $0x508] sm:$0xff]
      %v1529 = vld [vmem:[%s3 + $0x510] sm:$0xff]
      %v1530 = vld [vmem:[%s3 + $0x518] sm:$0xff]
      %v1531 = vld [vmem:[%s3 + $0x520] sm:$0xff]
      %v1532 = vld [vmem:[%s3 + $0x528] sm:$0xff]
      %v1533 = vld [vmem:[%s3 + $0x530] sm:$0xff]
      %v1534 = vld [vmem:[%s3 + $0x538] sm:$0xff]
      %v1535 = vld [vmem:[%s3 + $0x540] sm:$0xff]
      %v1536 = vld [vmem:[%s3 + $0x548] sm:$0xff]
      %v1537 = vld [vmem:[%s3 + $0x550] sm:$0xff]
      %v1538 = vld [vmem:[%s3 + $0x558] sm:$0xff]
      %v1539 = vld [vmem:[%s3 + $0x560] sm:$0xff]
      %v1540 = vld [vmem:[%s3 + $0x568] sm:$0xff]
      %v1541 = vld [vmem:[%s3 + $0x570] sm:$0xff]
      %v1542 = vld [vmem:[%s3 + $0x578] sm:$0xff]
      %v1543 = vld [vmem:[%s3 + $0x580] sm:$0xff]
      %v1544 = vld [vmem:[%s3 + $0x588] sm:$0xff]
      %v1545 = vld [vmem:[%s3 + $0x590] sm:$0xff]
      %v1546 = vld [vmem:[%s3 + $0x598] sm:$0xff]
      %v1547 = vld [vmem:[%s3 + $0x5a0] sm:$0xff]
      %v1548 = vld [vmem:[%s3 + $0x5a8] sm:$0xff]
      %v1549 = vld [vmem:[%s3 + $0x5b0] sm:$0xff]
      %v1550 = vld [vmem:[%s3 + $0x5b8] sm:$0xff]
      %v1551 = vld [vmem:[%s3 + $0x5c0] sm:$0xff]
      %v1552 = vld [vmem:[%s3 + $0x5c8] sm:$0xff]
      %v1553 = vld [vmem:[%s3 + $0x5d0] sm:$0xff]
      %v1554 = vld [vmem:[%s3 + $0x5d8] sm:$0xff]
      %v1555 = vld [vmem:[%s3 + $0x5e0] sm:$0xff]
      %v1556 = vld [vmem:[%s3 + $0x5e8] sm:$0xff]
      %v1557 = vld [vmem:[%s3 + $0x5f0] sm:$0xff]
      %v1558 = vld [vmem:[%s3 + $0x5f8] sm:$0xff]
      %v1559 = vld [vmem:[%s3 + $0x600] sm:$0xff]
      %v1560 = vld [vmem:[%s3 + $0x608] sm:$0xff]
      %v1561 = vld [vmem:[%s3 + $0x610] sm:$0xff]
      %v1562 = vld [vmem:[%s3 + $0x618] sm:$0xff]
      %v1563 = vld [vmem:[%s3 + $0x620] sm:$0xff]
      %v1564 = vld [vmem:[%s3 + $0x628] sm:$0xff]
      %v1565 = vld [vmem:[%s3 + $0x630] sm:$0xff]
      %v1566 = vld [vmem:[%s3 + $0x638] sm:$0xff]
      %v1567 = vld [vmem:[%s3 + $0x640] sm:$0xff]
      %v1568 = vld [vmem:[%s3 + $0x648] sm:$0xff]
      %v1569 = vld [vmem:[%s3 + $0x650] sm:$0xff]
      %v1570 = vld [vmem:[%s3 + $0x658] sm:$0xff]
      %v1571 = vld [vmem:[%s3 + $0x660] sm:$0xff]
      %v1572 = vld [vmem:[%s3 + $0x668] sm:$0xff]
      %v1573 = vld [vmem:[%s3 + $0x670] sm:$0xff]
      %v1574 = vld [vmem:[%s3 + $0x678] sm:$0xff]
      %v1575 = vld [vmem:[%s3 + $0x680] sm:$0xff]
      %v1576 = vld [vmem:[%s3 + $0x688] sm:$0xff]
      %v1577 = vld [vmem:[%s3 + $0x690] sm:$0xff]
      %v1578 = vld [vmem:[%s3 + $0x698] sm:$0xff]
      %v1579 = vld [vmem:[%s3 + $0x6a0] sm:$0xff]
      %v1580 = vld [vmem:[%s3 + $0x6a8] sm:$0xff]
      %v1581 = vld [vmem:[%s3 + $0x6b0] sm:$0xff]
      %v1582 = vld [vmem:[%s3 + $0x6b8] sm:$0xff]
      %v1583 = vld [vmem:[%s3 + $0x6c0] sm:$0xff]
      %v1584 = vld [vmem:[%s3 + $0x6c8] sm:$0xff]
      %v1585 = vld [vmem:[%s3 + $0x6d0] sm:$0xff]
      %v1586 = vld [vmem:[%s3 + $0x6d8] sm:$0xff]
      %v1587 = vld [vmem:[%s3 + $0x6e0] sm:$0xff]
      %v1588 = vld [vmem:[%s3 + $0x6e8] sm:$0xff]
      %v1589 = vld [vmem:[%s3 + $0x6f0] sm:$0xff]
      %v1590 = vld [vmem:[%s3 + $0x6f8] sm:$0xff]
      %v1591 = vld [vmem:[%s3 + $0x700] sm:$0xff]
      %v1592 = vld [vmem:[%s3 + $0x708] sm:$0xff]
      %v1593 = vld [vmem:[%s3 + $0x710] sm:$0xff]
      %v1594 = vld [vmem:[%s3 + $0x718] sm:$0xff]
      %v1595 = vld [vmem:[%s3 + $0x720] sm:$0xff]
      %v1596 = vld [vmem:[%s3 + $0x728] sm:$0xff]
      %v1597 = vld [vmem:[%s3 + $0x730] sm:$0xff]
      %v1598 = vld [vmem:[%s3 + $0x738] sm:$0xff]
      %v1599 = vld [vmem:[%s3 + $0x740] sm:$0xff]
      %v1600 = vld [vmem:[%s3 + $0x748] sm:$0xff]
      %v1601 = vld [vmem:[%s3 + $0x750] sm:$0xff]
      %v1602 = vld [vmem:[%s3 + $0x758] sm:$0xff]
      %v1603 = vld [vmem:[%s3 + $0x760] sm:$0xff]
      %v1604 = vld [vmem:[%s3 + $0x768] sm:$0xff]
      %v1605 = vld [vmem:[%s3 + $0x770] sm:$0xff]
      %v1606 = vld [vmem:[%s3 + $0x778] sm:$0xff]
      %v1607 = vld [vmem:[%s398] sm:$0xff]
      %v1608 = vld [vmem:[%s398 + $0x8] sm:$0xff]
      %v1609 = vld [vmem:[%s398 + $0x10] sm:$0xff]
      %v1610 = vld [vmem:[%s4] sm:$0xff]
      %v1611 = vld [vmem:[%s4 + $0x8] sm:$0xff]
      %v1612 = vld [vmem:[%s4 + $0x10] sm:$0xff]
      %v1613 = vld [vmem:[%s4 + $0x18] sm:$0xff]
      %v1614 = vld [vmem:[%s4 + $0x20] sm:$0xff]
      %v1615 = vld [vmem:[%s4 + $0x28] sm:$0xff]
      %v1616 = vld [vmem:[%s4 + $0x30] sm:$0xff]
      %v1617 = vld [vmem:[%s4 + $0x38] sm:$0xff]
      %v1618 = vld [vmem:[%s4 + $0x40] sm:$0xff]
      %v1619 = vld [vmem:[%s4 + $0x48] sm:$0xff]
      %v1620 = vld [vmem:[%s4 + $0x50] sm:$0xff]
      %v1621 = vld [vmem:[%s4 + $0x58] sm:$0xff]
      %v1622 = vld [vmem:[%s4 + $0x60] sm:$0xff]
      %v1623 = vld [vmem:[%s4 + $0x68] sm:$0xff]
      %v1624 = vld [vmem:[%s4 + $0x70] sm:$0xff]
      %v1625 = vld [vmem:[%s4 + $0x78] sm:$0xff]
      %v1626 = vld [vmem:[%s4 + $0x80] sm:$0xff]
      %v1627 = vld [vmem:[%s4 + $0x88] sm:$0xff]
      %v1628 = vld [vmem:[%s4 + $0x90] sm:$0xff]
      %v1629 = vld [vmem:[%s4 + $0x98] sm:$0xff]
      %v1630 = vld [vmem:[%s4 + $0xa0] sm:$0xff]
      %v1631 = vld [vmem:[%s4 + $0xa8] sm:$0xff]
      %v1632 = vld [vmem:[%s4 + $0xb0] sm:$0xff]
      %v1633 = vld [vmem:[%s4 + $0xb8] sm:$0xff]
      %v1634 = vld [vmem:[%s4 + $0xc0] sm:$0xff]
      %v1635 = vld [vmem:[%s4 + $0xc8] sm:$0xff]
      %v1636 = vld [vmem:[%s4 + $0xd0] sm:$0xff]
      %v1637 = vld [vmem:[%s4 + $0xd8] sm:$0xff]
      %v1638 = vld [vmem:[%s4 + $0xe0] sm:$0xff]
      %v1639 = vld [vmem:[%s4 + $0xe8] sm:$0xff]
      %v1640 = vld [vmem:[%s4 + $0xf0] sm:$0xff]
      %v1641 = vld [vmem:[%s4 + $0xf8] sm:$0xff]
      %v1642 = vld [vmem:[%s4 + $0x100] sm:$0xff]
      %v1643 = vld [vmem:[%s4 + $0x108] sm:$0xff]
      %v1644 = vld [vmem:[%s4 + $0x110] sm:$0xff]
      %v1645 = vld [vmem:[%s4 + $0x118] sm:$0xff]
      %v1646 = vld [vmem:[%s4 + $0x120] sm:$0xff]
      %v1647 = vld [vmem:[%s4 + $0x128] sm:$0xff]
      %v1648 = vld [vmem:[%s4 + $0x130] sm:$0xff]
      %v1649 = vld [vmem:[%s4 + $0x138] sm:$0xff]
      %v1650 = vld [vmem:[%s4 + $0x140] sm:$0xff]
      %v1651 = vld [vmem:[%s4 + $0x148] sm:$0xff]
      %v1652 = vld [vmem:[%s4 + $0x150] sm:$0xff]
      %v1653 = vld [vmem:[%s4 + $0x158] sm:$0xff]
      %v1654 = vld [vmem:[%s4 + $0x160] sm:$0xff]
      %v1655 = vld [vmem:[%s4 + $0x168] sm:$0xff]
      %v1656 = vld [vmem:[%s4 + $0x170] sm:$0xff]
      %v1657 = vld [vmem:[%s4 + $0x178] sm:$0xff]
      %v1658 = vld [vmem:[%s4 + $0x180] sm:$0xff]
      %v1659 = vld [vmem:[%s4 + $0x188] sm:$0xff]
      %v1660 = vld [vmem:[%s4 + $0x190] sm:$0xff]
      %v1661 = vld [vmem:[%s4 + $0x198] sm:$0xff]
      %v1662 = vld [vmem:[%s4 + $0x1a0] sm:$0xff]
      %v1663 = vld [vmem:[%s4 + $0x1a8] sm:$0xff]
      %v1664 = vld [vmem:[%s4 + $0x1b0] sm:$0xff]
      %v1665 = vld [vmem:[%s4 + $0x1b8] sm:$0xff]
      %v1666 = vld [vmem:[%s4 + $0x1c0] sm:$0xff]
      %v1667 = vld [vmem:[%s4 + $0x1c8] sm:$0xff]
      %v1668 = vld [vmem:[%s4 + $0x1d0] sm:$0xff]
      %v1669 = vld [vmem:[%s4 + $0x1d8] sm:$0xff]
      %v1670 = vld [vmem:[%s4 + $0x1e0] sm:$0xff]
      %v1671 = vld [vmem:[%s4 + $0x1e8] sm:$0xff]
      %v1672 = vld [vmem:[%s4 + $0x1f0] sm:$0xff]
      %v1673 = vld [vmem:[%s4 + $0x1f8] sm:$0xff]
      %v1674 = vld [vmem:[%s4 + $0x200] sm:$0xff]
      %v1675 = vld [vmem:[%s4 + $0x208] sm:$0xff]
      %v1676 = vld [vmem:[%s4 + $0x210] sm:$0xff]
      %v1677 = vld [vmem:[%s4 + $0x218] sm:$0xff]
      %v1678 = vld [vmem:[%s4 + $0x220] sm:$0xff]
      %v1679 = vld [vmem:[%s4 + $0x228] sm:$0xff]
      %v1680 = vld [vmem:[%s4 + $0x230] sm:$0xff]
      %v1681 = vld [vmem:[%s4 + $0x238] sm:$0xff]
      %v1682 = vld [vmem:[%s4 + $0x240] sm:$0xff]
      %v1683 = vld [vmem:[%s4 + $0x248] sm:$0xff]
      %v1684 = vld [vmem:[%s4 + $0x250] sm:$0xff]
      %v1685 = vld [vmem:[%s4 + $0x258] sm:$0xff]
      %v1686 = vld [vmem:[%s4 + $0x260] sm:$0xff]
      %v1687 = vld [vmem:[%s4 + $0x268] sm:$0xff]
      %v1688 = vld [vmem:[%s4 + $0x270] sm:$0xff]
      %v1689 = vld [vmem:[%s4 + $0x278] sm:$0xff]
      %v1690 = vld [vmem:[%s4 + $0x280] sm:$0xff]
      %v1691 = vld [vmem:[%s4 + $0x288] sm:$0xff]
      %v1692 = vld [vmem:[%s4 + $0x290] sm:$0xff]
      %v1693 = vld [vmem:[%s4 + $0x298] sm:$0xff]
      %v1694 = vld [vmem:[%s4 + $0x2a0] sm:$0xff]
      %v1695 = vld [vmem:[%s4 + $0x2a8] sm:$0xff]
      %v1696 = vld [vmem:[%s4 + $0x2b0] sm:$0xff]
      %v1697 = vld [vmem:[%s4 + $0x2b8] sm:$0xff]
      %v1698 = vld [vmem:[%s4 + $0x2c0] sm:$0xff]
      %v1699 = vld [vmem:[%s4 + $0x2c8] sm:$0xff]
      %v1700 = vld [vmem:[%s4 + $0x2d0] sm:$0xff]
      %v1701 = vld [vmem:[%s4 + $0x2d8] sm:$0xff]
      %v1702 = vld [vmem:[%s4 + $0x2e0] sm:$0xff]
      %v1703 = vld [vmem:[%s4 + $0x2e8] sm:$0xff]
      %v1704 = vld [vmem:[%s4 + $0x2f0] sm:$0xff]
      %v1705 = vld [vmem:[%s4 + $0x2f8] sm:$0xff]
      %v1706 = vld [vmem:[%s4 + $0x300] sm:$0xff]
      %v1707 = vld [vmem:[%s4 + $0x308] sm:$0xff]
      %v1708 = vld [vmem:[%s4 + $0x310] sm:$0xff]
      %v1709 = vld [vmem:[%s4 + $0x318] sm:$0xff]
      %v1710 = vld [vmem:[%s4 + $0x320] sm:$0xff]
      %v1711 = vld [vmem:[%s4 + $0x328] sm:$0xff]
      %v1712 = vld [vmem:[%s4 + $0x330] sm:$0xff]
      %v1713 = vld [vmem:[%s4 + $0x338] sm:$0xff]
      %v1714 = vld [vmem:[%s4 + $0x340] sm:$0xff]
      %v1715 = vld [vmem:[%s4 + $0x348] sm:$0xff]
      %v1716 = vld [vmem:[%s4 + $0x350] sm:$0xff]
      %v1717 = vld [vmem:[%s4 + $0x358] sm:$0xff]
      %v1718 = vld [vmem:[%s4 + $0x360] sm:$0xff]
      %v1719 = vld [vmem:[%s4 + $0x368] sm:$0xff]
      %v1720 = vld [vmem:[%s4 + $0x370] sm:$0xff]
      %v1721 = vld [vmem:[%s4 + $0x378] sm:$0xff]
      %v1722 = vld [vmem:[%s4 + $0x380] sm:$0xff]
      %v1723 = vld [vmem:[%s4 + $0x388] sm:$0xff]
      %v1724 = vld [vmem:[%s4 + $0x390] sm:$0xff]
      %v1725 = vld [vmem:[%s4 + $0x398] sm:$0xff]
      %v1726 = vld [vmem:[%s4 + $0x3a0] sm:$0xff]
      %v1727 = vld [vmem:[%s4 + $0x3a8] sm:$0xff]
      %v1728 = vld [vmem:[%s4 + $0x3b0] sm:$0xff]
      %v1729 = vld [vmem:[%s4 + $0x3b8] sm:$0xff]
      %v1730 = vld [vmem:[%s4 + $0x3c0] sm:$0xff]
      %v1731 = vld [vmem:[%s4 + $0x3c8] sm:$0xff]
      %v1732 = vld [vmem:[%s4 + $0x3d0] sm:$0xff]
      %v1733 = vld [vmem:[%s4 + $0x3d8] sm:$0xff]
      %v1734 = vld [vmem:[%s4 + $0x3e0] sm:$0xff]
      %v1735 = vld [vmem:[%s4 + $0x3e8] sm:$0xff]
      %v1736 = vld [vmem:[%s4 + $0x3f0] sm:$0xff]
      %v1737 = vld [vmem:[%s4 + $0x3f8] sm:$0xff]
      %v1738 = vld [vmem:[%s4 + $0x400] sm:$0xff]
      %v1739 = vld [vmem:[%s4 + $0x408] sm:$0xff]
      %v1740 = vld [vmem:[%s4 + $0x410] sm:$0xff]
      %v1741 = vld [vmem:[%s4 + $0x418] sm:$0xff]
      %v1742 = vld [vmem:[%s4 + $0x420] sm:$0xff]
      %v1743 = vld [vmem:[%s4 + $0x428] sm:$0xff]
      %v1744 = vld [vmem:[%s4 + $0x430] sm:$0xff]
      %v1745 = vld [vmem:[%s4 + $0x438] sm:$0xff]
      %v1746 = vld [vmem:[%s4 + $0x440] sm:$0xff]
      %v1747 = vld [vmem:[%s4 + $0x448] sm:$0xff]
      %v1748 = vld [vmem:[%s4 + $0x450] sm:$0xff]
      %v1749 = vld [vmem:[%s4 + $0x458] sm:$0xff]
      %v1750 = vld [vmem:[%s4 + $0x460] sm:$0xff]
      %v1751 = vld [vmem:[%s4 + $0x468] sm:$0xff]
      %v1752 = vld [vmem:[%s4 + $0x470] sm:$0xff]
      %v1753 = vld [vmem:[%s4 + $0x478] sm:$0xff]
      %v1754 = vld [vmem:[%s4 + $0x480] sm:$0xff]
      %v1755 = vld [vmem:[%s4 + $0x488] sm:$0xff]
      %v1756 = vld [vmem:[%s4 + $0x490] sm:$0xff]
      %v1757 = vld [vmem:[%s4 + $0x498] sm:$0xff]
      %v1758 = vld [vmem:[%s4 + $0x4a0] sm:$0xff]
      %v1759 = vld [vmem:[%s4 + $0x4a8] sm:$0xff]
      %v1760 = vld [vmem:[%s4 + $0x4b0] sm:$0xff]
      %v1761 = vld [vmem:[%s4 + $0x4b8] sm:$0xff]
      %v1762 = vld [vmem:[%s4 + $0x4c0] sm:$0xff]
      %v1763 = vld [vmem:[%s4 + $0x4c8] sm:$0xff]
      %v1764 = vld [vmem:[%s4 + $0x4d0] sm:$0xff]
      %v1765 = vld [vmem:[%s4 + $0x4d8] sm:$0xff]
      %v1766 = vld [vmem:[%s4 + $0x4e0] sm:$0xff]
      %v1767 = vld [vmem:[%s4 + $0x4e8] sm:$0xff]
      %v1768 = vld [vmem:[%s4 + $0x4f0] sm:$0xff]
      %v1769 = vld [vmem:[%s4 + $0x4f8] sm:$0xff]
      %v1770 = vld [vmem:[%s4 + $0x500] sm:$0xff]
      %v1771 = vld [vmem:[%s4 + $0x508] sm:$0xff]
      %v1772 = vld [vmem:[%s4 + $0x510] sm:$0xff]
      %v1773 = vld [vmem:[%s4 + $0x518] sm:$0xff]
      %v1774 = vld [vmem:[%s4 + $0x520] sm:$0xff]
      %v1775 = vld [vmem:[%s4 + $0x528] sm:$0xff]
      %v1776 = vld [vmem:[%s4 + $0x530] sm:$0xff]
      %v1777 = vld [vmem:[%s4 + $0x538] sm:$0xff]
      %v1778 = vld [vmem:[%s4 + $0x540] sm:$0xff]
      %v1779 = vld [vmem:[%s4 + $0x548] sm:$0xff]
      %v1780 = vld [vmem:[%s4 + $0x550] sm:$0xff]
      %v1781 = vld [vmem:[%s4 + $0x558] sm:$0xff]
      %v1782 = vld [vmem:[%s4 + $0x560] sm:$0xff]
      %v1783 = vld [vmem:[%s4 + $0x568] sm:$0xff]
      %v1784 = vld [vmem:[%s4 + $0x570] sm:$0xff]
      %v1785 = vld [vmem:[%s4 + $0x578] sm:$0xff]
      %v1786 = vld [vmem:[%s4 + $0x580] sm:$0xff]
      %v1787 = vld [vmem:[%s4 + $0x588] sm:$0xff]
      %v1788 = vld [vmem:[%s4 + $0x590] sm:$0xff]
      %v1789 = vld [vmem:[%s4 + $0x598] sm:$0xff]
      %v1790 = vld [vmem:[%s4 + $0x5a0] sm:$0x1]
      %v1791 = vld [vmem:[%s4 + $0x5a8] sm:$0x1]
      %v1792 = vld [vmem:[%s4 + $0x5b0] sm:$0x1]
      %v1793 = vld [vmem:[%s4 + $0x5b8] sm:$0x1]
      %v1794 = vld [vmem:[%s4 + $0x5c0] sm:$0x1]
      %vm1795 = vcmask 269312
      %v1797 = vsel %vm1795, %v1609, 0
      %vm1799 = vcmask 1040384
      %v1801 = vsel %vm1799, %v1790, 0
      %v1804 = vsel %vm1799, %v1791, 0
      %v1807 = vsel %vm1799, %v1792, 0
      %v1810 = vsel %vm1799, %v1793, 0
      %v1813 = vsel %vm1799, %v1794, 0
      %1815 = vmatpush.msra.mxu0 %v1685
      %1816 = vmatpush.msra.mxu0 %v1680
      %1817 = vmatpush.msra.mxu0 %v1675
      %1818 = vmatpush.msra.mxu0 %v1670
      %1819 = vmatpush.msra.mxu0 %v1665
      %1820 = vmatpush.msra.mxu0 %v1660
      %1821 = vmatpush.msra.mxu0 %v1655
      %1822 = vmatpush.msra.mxu0 %v1650
      %1823 = vmatpush.msra.mxu0 %v1645
      %1824 = vmatpush.msra.mxu0 %v1640
      %1825 = vmatpush.msra.mxu0 %v1635
      %1826 = vmatpush.msra.mxu0 %v1630
      %1827 = vmatpush.msra.mxu0 %v1625
      %1828 = vmatpush.msra.mxu0 %v1620
      %1829 = vmatpush.msra.mxu0 %v1615
      %1830 = vmatpush.msra.mxu0 %v1610
      %1831 = vmatmul.f32.gmra.mxu0 %v1607
      %v1832 = vpop.f32.mrf.mxu0
      %v1833 = vadd.f32 0.0, %v1832
      %1834 = vdwg.mxu0
      %1835 = vmatpush.msra.mxu0 %v1765
      %1836 = vmatpush.msra.mxu0 %v1760
      %1837 = vmatpush.msra.mxu0 %v1755
      %1838 = vmatpush.msra.mxu0 %v1750
      %1839 = vmatpush.msra.mxu0 %v1745
      %1840 = vmatpush.msra.mxu0 %v1740
      %1841 = vmatpush.msra.mxu0 %v1735
      %1842 = vmatpush.msra.mxu0 %v1730
      %1843 = vmatpush.msra.mxu0 %v1725
      %1844 = vmatpush.msra.mxu0 %v1720
      %1845 = vmatpush.msra.mxu0 %v1715
      %1846 = vmatpush.msra.mxu0 %v1710
      %1847 = vmatpush.msra.mxu0 %v1705
      %1848 = vmatpush.msra.mxu0 %v1700
      %1849 = vmatpush.msra.mxu0 %v1695
      %1850 = vmatpush.msra.mxu0 %v1690
      %1851 = vmatmul.f32.gmra.mxu0 %v1608
      %v1852 = vpop.f32.mrf.mxu0
      %v1853 = vadd.f32 %v1833, %v1852
      %1854 = vdwg.mxu0
      %1855 = vmatpush.msra.mxu0 0.0
      %1856 = vmatpush.msra.mxu0 0.0
      %1857 = vmatpush.msra.mxu0 0.0
      %1858 = vmatpush.msra.mxu0 0.0
      %1859 = vmatpush.msra.mxu0 0.0
      %1860 = vmatpush.msra.mxu0 0.0
      %1861 = vmatpush.msra.mxu0 0.0
      %1862 = vmatpush.msra.mxu0 0.0
      %1863 = vmatpush.msra.mxu0 0.0
      %1864 = vmatpush.msra.mxu0 0.0
      %1865 = vmatpush.msra.mxu0 0.0
      %1866 = vmatpush.msra.mxu0 %v1801
      %1867 = vmatpush.msra.mxu0 %v1785
      %1868 = vmatpush.msra.mxu0 %v1780
      %1869 = vmatpush.msra.mxu0 %v1775
      %1870 = vmatpush.msra.mxu0 %v1770
      %1871 = vmatmul.f32.gmra.mxu0 %v1797
      %v1872 = vpop.f32.mrf.mxu0
      %v1873 = vadd.f32 %v1853, %v1872
      %1874 = vdwg.mxu0
      %1875 = vmatpush.msra.mxu0 %v1686
      %1876 = vmatpush.msra.mxu0 %v1681
      %1877 = vmatpush.msra.mxu0 %v1676
      %1878 = vmatpush.msra.mxu0 %v1671
      %1879 = vmatpush.msra.mxu0 %v1666
      %1880 = vmatpush.msra.mxu0 %v1661
      %1881 = vmatpush.msra.mxu0 %v1656
      %1882 = vmatpush.msra.mxu0 %v1651
      %1883 = vmatpush.msra.mxu0 %v1646
      %1884 = vmatpush.msra.mxu0 %v1641
      %1885 = vmatpush.msra.mxu0 %v1636
      %1886 = vmatpush.msra.mxu0 %v1631
      %1887 = vmatpush.msra.mxu0 %v1626
      %1888 = vmatpush.msra.mxu0 %v1621
      %1889 = vmatpush.msra.mxu0 %v1616
      %1890 = vmatpush.msra.mxu0 %v1611
      %1891 = vmatmul.f32.gmra.mxu0 %v1607
      %v1892 = vpop.f32.mrf.mxu0
      %v1893 = vadd.f32 0.0, %v1892
      %1894 = vdwg.mxu0
      %1895 = vmatpush.msra.mxu0 %v1766
      %1896 = vmatpush.msra.mxu0 %v1761
      %1897 = vmatpush.msra.mxu0 %v1756
      %1898 = vmatpush.msra.mxu0 %v1751
      %1899 = vmatpush.msra.mxu0 %v1746
      %1900 = vmatpush.msra.mxu0 %v1741
      %1901 = vmatpush.msra.mxu0 %v1736
      %1902 = vmatpush.msra.mxu0 %v1731
      %1903 = vmatpush.msra.mxu0 %v1726
      %1904 = vmatpush.msra.mxu0 %v1721
      %1905 = vmatpush.msra.mxu0 %v1716
      %1906 = vmatpush.msra.mxu0 %v1711
      %1907 = vmatpush.msra.mxu0 %v1706
      %1908 = vmatpush.msra.mxu0 %v1701
      %1909 = vmatpush.msra.mxu0 %v1696
      %1910 = vmatpush.msra.mxu0 %v1691
      %1911 = vmatmul.f32.gmra.mxu0 %v1608
      %v1912 = vpop.f32.mrf.mxu0
      %v1913 = vadd.f32 %v1893, %v1912
      %1914 = vdwg.mxu0
      %1915 = vmatpush.msra.mxu0 0.0
      %1916 = vmatpush.msra.mxu0 0.0
      %1917 = vmatpush.msra.mxu0 0.0
      %1918 = vmatpush.msra.mxu0 0.0
      %1919 = vmatpush.msra.mxu0 0.0
      %1920 = vmatpush.msra.mxu0 0.0
      %1921 = vmatpush.msra.mxu0 0.0
      %1922 = vmatpush.msra.mxu0 0.0
      %1923 = vmatpush.msra.mxu0 0.0
      %1924 = vmatpush.msra.mxu0 0.0
      %1925 = vmatpush.msra.mxu0 0.0
      %1926 = vmatpush.msra.mxu0 %v1804
      %1927 = vmatpush.msra.mxu0 %v1786
      %1928 = vmatpush.msra.mxu0 %v1781
      %1929 = vmatpush.msra.mxu0 %v1776
      %1930 = vmatpush.msra.mxu0 %v1771
      %1931 = vmatmul.f32.gmra.mxu0 %v1797
      %v1932 = vpop.f32.mrf.mxu0
      %v1933 = vadd.f32 %v1913, %v1932
      %1934 = vdwg.mxu0
      %1935 = vmatpush.msra.mxu0 %v1687
      %1936 = vmatpush.msra.mxu0 %v1682
      %1937 = vmatpush.msra.mxu0 %v1677
      %1938 = vmatpush.msra.mxu0 %v1672
      %1939 = vmatpush.msra.mxu0 %v1667
      %1940 = vmatpush.msra.mxu0 %v1662
      %1941 = vmatpush.msra.mxu0 %v1657
      %1942 = vmatpush.msra.mxu0 %v1652
      %1943 = vmatpush.msra.mxu0 %v1647
      %1944 = vmatpush.msra.mxu0 %v1642
      %1945 = vmatpush.msra.mxu0 %v1637
      %1946 = vmatpush.msra.mxu0 %v1632
      %1947 = vmatpush.msra.mxu0 %v1627
      %1948 = vmatpush.msra.mxu0 %v1622
      %1949 = vmatpush.msra.mxu0 %v1617
      %1950 = vmatpush.msra.mxu0 %v1612
      %1951 = vmatmul.f32.gmra.mxu0 %v1607
      %v1952 = vpop.f32.mrf.mxu0
      %v1953 = vadd.f32 0.0, %v1952
      %1954 = vdwg.mxu0
      %1955 = vmatpush.msra.mxu0 %v1767
      %1956 = vmatpush.msra.mxu0 %v1762
      %1957 = vmatpush.msra.mxu0 %v1757
      %1958 = vmatpush.msra.mxu0 %v1752
      %1959 = vmatpush.msra.mxu0 %v1747
      %1960 = vmatpush.msra.mxu0 %v1742
      %1961 = vmatpush.msra.mxu0 %v1737
      %1962 = vmatpush.msra.mxu0 %v1732
      %1963 = vmatpush.msra.mxu0 %v1727
      %1964 = vmatpush.msra.mxu0 %v1722
      %1965 = vmatpush.msra.mxu0 %v1717
      %1966 = vmatpush.msra.mxu0 %v1712
      %1967 = vmatpush.msra.mxu0 %v1707
      %1968 = vmatpush.msra.mxu0 %v1702
      %1969 = vmatpush.msra.mxu0 %v1697
      %1970 = vmatpush.msra.mxu0 %v1692
      %1971 = vmatmul.f32.gmra.mxu0 %v1608
      %v1972 = vpop.f32.mrf.mxu0
      %v1973 = vadd.f32 %v1953, %v1972
      %1974 = vdwg.mxu0
      %1975 = vmatpush.msra.mxu0 0.0
      %1976 = vmatpush.msra.mxu0 0.0
      %1977 = vmatpush.msra.mxu0 0.0
      %1978 = vmatpush.msra.mxu0 0.0
      %1979 = vmatpush.msra.mxu0 0.0
      %1980 = vmatpush.msra.mxu0 0.0
      %1981 = vmatpush.msra.mxu0 0.0
      %1982 = vmatpush.msra.mxu0 0.0
      %1983 = vmatpush.msra.mxu0 0.0
      %1984 = vmatpush.msra.mxu0 0.0
      %1985 = vmatpush.msra.mxu0 0.0
      %1986 = vmatpush.msra.mxu0 %v1807
      %1987 = vmatpush.msra.mxu0 %v1787
      %1988 = vmatpush.msra.mxu0 %v1782
      %1989 = vmatpush.msra.mxu0 %v1777
      %1990 = vmatpush.msra.mxu0 %v1772
      %1991 = vmatmul.f32.gmra.mxu0 %v1797
      %v1992 = vpop.f32.mrf.mxu0
      %v1993 = vadd.f32 %v1973, %v1992
      %1994 = vdwg.mxu0
      %1995 = vmatpush.msra.mxu0 %v1688
      %1996 = vmatpush.msra.mxu0 %v1683
      %1997 = vmatpush.msra.mxu0 %v1678
      %1998 = vmatpush.msra.mxu0 %v1673
      %1999 = vmatpush.msra.mxu0 %v1668
      %2000 = vmatpush.msra.mxu0 %v1663
      %2001 = vmatpush.msra.mxu0 %v1658
      %2002 = vmatpush.msra.mxu0 %v1653
      %2003 = vmatpush.msra.mxu0 %v1648
      %2004 = vmatpush.msra.mxu0 %v1643
      %2005 = vmatpush.msra.mxu0 %v1638
      %2006 = vmatpush.msra.mxu0 %v1633
      %2007 = vmatpush.msra.mxu0 %v1628
      %2008 = vmatpush.msra.mxu0 %v1623
      %2009 = vmatpush.msra.mxu0 %v1618
      %2010 = vmatpush.msra.mxu0 %v1613
      %2011 = vmatmul.f32.gmra.mxu0 %v1607
      %v2012 = vpop.f32.mrf.mxu0
      %v2013 = vadd.f32 0.0, %v2012
      %2014 = vdwg.mxu0
      %2015 = vmatpush.msra.mxu0 %v1768
      %2016 = vmatpush.msra.mxu0 %v1763
      %2017 = vmatpush.msra.mxu0 %v1758
      %2018 = vmatpush.msra.mxu0 %v1753
      %2019 = vmatpush.msra.mxu0 %v1748
      %2020 = vmatpush.msra.mxu0 %v1743
      %2021 = vmatpush.msra.mxu0 %v1738
      %2022 = vmatpush.msra.mxu0 %v1733
      %2023 = vmatpush.msra.mxu0 %v1728
      %2024 = vmatpush.msra.mxu0 %v1723
      %2025 = vmatpush.msra.mxu0 %v1718
      %2026 = vmatpush.msra.mxu0 %v1713
      %2027 = vmatpush.msra.mxu0 %v1708
      %2028 = vmatpush.msra.mxu0 %v1703
      %2029 = vmatpush.msra.mxu0 %v1698
      %2030 = vmatpush.msra.mxu0 %v1693
      %2031 = vmatmul.f32.gmra.mxu0 %v1608
      %v2032 = vpop.f32.mrf.mxu0
      %v2033 = vadd.f32 %v2013, %v2032
      %2034 = vdwg.mxu0
      %2035 = vmatpush.msra.mxu0 0.0
      %2036 = vmatpush.msra.mxu0 0.0
      %2037 = vmatpush.msra.mxu0 0.0
      %2038 = vmatpush.msra.mxu0 0.0
      %2039 = vmatpush.msra.mxu0 0.0
      %2040 = vmatpush.msra.mxu0 0.0
      %2041 = vmatpush.msra.mxu0 0.0
      %2042 = vmatpush.msra.mxu0 0.0
      %2043 = vmatpush.msra.mxu0 0.0
      %2044 = vmatpush.msra.mxu0 0.0
      %2045 = vmatpush.msra.mxu0 0.0
      %2046 = vmatpush.msra.mxu0 %v1810
      %2047 = vmatpush.msra.mxu0 %v1788
      %2048 = vmatpush.msra.mxu0 %v1783
      %2049 = vmatpush.msra.mxu0 %v1778
      %2050 = vmatpush.msra.mxu0 %v1773
      %2051 = vmatmul.f32.gmra.mxu0 %v1797
      %v2052 = vpop.f32.mrf.mxu0
      %v2053 = vadd.f32 %v2033, %v2052
      %2054 = vdwg.mxu0
      %2055 = vmatpush.msra.mxu0 %v1689
      %2056 = vmatpush.msra.mxu0 %v1684
      %2057 = vmatpush.msra.mxu0 %v1679
      %2058 = vmatpush.msra.mxu0 %v1674
      %2059 = vmatpush.msra.mxu0 %v1669
      %2060 = vmatpush.msra.mxu0 %v1664
      %2061 = vmatpush.msra.mxu0 %v1659
      %2062 = vmatpush.msra.mxu0 %v1654
      %2063 = vmatpush.msra.mxu0 %v1649
      %2064 = vmatpush.msra.mxu0 %v1644
      %2065 = vmatpush.msra.mxu0 %v1639
      %2066 = vmatpush.msra.mxu0 %v1634
      %2067 = vmatpush.msra.mxu0 %v1629
      %2068 = vmatpush.msra.mxu0 %v1624
      %2069 = vmatpush.msra.mxu0 %v1619
      %2070 = vmatpush.msra.mxu0 %v1614
      %2071 = vmatmul.f32.gmra.mxu0 %v1607
      %v2072 = vpop.f32.mrf.mxu0
      %v2073 = vadd.f32 0.0, %v2072
      %2074 = vdwg.mxu0
      %2075 = vmatpush.msra.mxu0 %v1769
      %2076 = vmatpush.msra.mxu0 %v1764
      %2077 = vmatpush.msra.mxu0 %v1759
      %2078 = vmatpush.msra.mxu0 %v1754
      %2079 = vmatpush.msra.mxu0 %v1749
      %2080 = vmatpush.msra.mxu0 %v1744
      %2081 = vmatpush.msra.mxu0 %v1739
      %2082 = vmatpush.msra.mxu0 %v1734
      %2083 = vmatpush.msra.mxu0 %v1729
      %2084 = vmatpush.msra.mxu0 %v1724
      %2085 = vmatpush.msra.mxu0 %v1719
      %2086 = vmatpush.msra.mxu0 %v1714
      %2087 = vmatpush.msra.mxu0 %v1709
      %2088 = vmatpush.msra.mxu0 %v1704
      %2089 = vmatpush.msra.mxu0 %v1699
      %2090 = vmatpush.msra.mxu0 %v1694
      %2091 = vmatmul.f32.gmra.mxu0 %v1608
      %v2092 = vpop.f32.mrf.mxu0
      %v2093 = vadd.f32 %v2073, %v2092
      %2094 = vdwg.mxu0
      %2095 = vmatpush.msra.mxu0 0.0
      %2096 = vmatpush.msra.mxu0 0.0
      %2097 = vmatpush.msra.mxu0 0.0
      %2098 = vmatpush.msra.mxu0 0.0
      %2099 = vmatpush.msra.mxu0 0.0
      %2100 = vmatpush.msra.mxu0 0.0
      %2101 = vmatpush.msra.mxu0 0.0
      %2102 = vmatpush.msra.mxu0 0.0
      %2103 = vmatpush.msra.mxu0 0.0
      %2104 = vmatpush.msra.mxu0 0.0
      %2105 = vmatpush.msra.mxu0 0.0
      %2106 = vmatpush.msra.mxu0 %v1813
      %2107 = vmatpush.msra.mxu0 %v1789
      %2108 = vmatpush.msra.mxu0 %v1784
      %2109 = vmatpush.msra.mxu0 %v1779
      %2110 = vmatpush.msra.mxu0 %v1774
      %2111 = vmatmul.f32.gmra.mxu0 %v1797
      %v2112 = vpop.f32.mrf.mxu0
      %v2113 = vadd.f32 %v2093, %v2112
      %2114 = vdwg.mxu0
      %2115 = vmatpush.msra.mxu0 %v1442
      %2116 = vmatpush.msra.mxu0 %v1437
      %2117 = vmatpush.msra.mxu0 %v1432
      %2118 = vmatpush.msra.mxu0 %v1427
      %2119 = vmatpush.msra.mxu0 %v1422
      %2120 = vmatpush.msra.mxu0 %v1417
      %2121 = vmatpush.msra.mxu0 %v1412
      %2122 = vmatpush.msra.mxu0 %v1407
      %2123 = vmatpush.msra.mxu0 %v1402
      %2124 = vmatpush.msra.mxu0 %v1397
      %2125 = vmatpush.msra.mxu0 %v1392
      %2126 = vmatpush.msra.mxu0 %v1387
      %2127 = vmatpush.msra.mxu0 %v1382
      %2128 = vmatpush.msra.mxu0 %v1377
      %2129 = vmatpush.msra.mxu0 %v1372
      %2130 = vmatpush.msra.mxu0 %v1367
      %2131 = vmatmul.f32.gmra.mxu0 %v1364
      %v2132 = vpop.f32.mrf.mxu0
      %v2133 = vadd.f32 %v1873, %v2132
      %2134 = vdwg.mxu0
      %2135 = vmatpush.msra.mxu0 %v1522
      %2136 = vmatpush.msra.mxu0 %v1517
      %2137 = vmatpush.msra.mxu0 %v1512
      %2138 = vmatpush.msra.mxu0 %v1507
      %2139 = vmatpush.msra.mxu0 %v1502
      %2140 = vmatpush.msra.mxu0 %v1497
      %2141 = vmatpush.msra.mxu0 %v1492
      %2142 = vmatpush.msra.mxu0 %v1487
      %2143 = vmatpush.msra.mxu0 %v1482
      %2144 = vmatpush.msra.mxu0 %v1477
      %2145 = vmatpush.msra.mxu0 %v1472
      %2146 = vmatpush.msra.mxu0 %v1467
      %2147 = vmatpush.msra.mxu0 %v1462
      %2148 = vmatpush.msra.mxu0 %v1457
      %2149 = vmatpush.msra.mxu0 %v1452
      %2150 = vmatpush.msra.mxu0 %v1447
      %2151 = vmatmul.f32.gmra.mxu0 %v1365
      %v2152 = vpop.f32.mrf.mxu0
      %v2153 = vadd.f32 %v2133, %v2152
      %2154 = vdwg.mxu0
      %2155 = vmatpush.msra.mxu0 %v1602
      %2156 = vmatpush.msra.mxu0 %v1597
      %2157 = vmatpush.msra.mxu0 %v1592
      %2158 = vmatpush.msra.mxu0 %v1587
      %2159 = vmatpush.msra.mxu0 %v1582
      %2160 = vmatpush.msra.mxu0 %v1577
      %2161 = vmatpush.msra.mxu0 %v1572
      %2162 = vmatpush.msra.mxu0 %v1567
      %2163 = vmatpush.msra.mxu0 %v1562
      %2164 = vmatpush.msra.mxu0 %v1557
      %2165 = vmatpush.msra.mxu0 %v1552
      %2166 = vmatpush.msra.mxu0 %v1547
      %2167 = vmatpush.msra.mxu0 %v1542
      %2168 = vmatpush.msra.mxu0 %v1537
      %2169 = vmatpush.msra.mxu0 %v1532
      %2170 = vmatpush.msra.mxu0 %v1527
      %2171 = vmatmul.f32.gmra.mxu0 %v1366
      %v2172 = vpop.f32.mrf.mxu0
      %v2173 = vadd.f32 %v2153, %v2172
      %2174 = vdwg.mxu0
      %2175 = vmatpush.msra.mxu0 %v1443
      %2176 = vmatpush.msra.mxu0 %v1438
      %2177 = vmatpush.msra.mxu0 %v1433
      %2178 = vmatpush.msra.mxu0 %v1428
      %2179 = vmatpush.msra.mxu0 %v1423
      %2180 = vmatpush.msra.mxu0 %v1418
      %2181 = vmatpush.msra.mxu0 %v1413
      %2182 = vmatpush.msra.mxu0 %v1408
      %2183 = vmatpush.msra.mxu0 %v1403
      %2184 = vmatpush.msra.mxu0 %v1398
      %2185 = vmatpush.msra.mxu0 %v1393
      %2186 = vmatpush.msra.mxu0 %v1388
      %2187 = vmatpush.msra.mxu0 %v1383
      %2188 = vmatpush.msra.mxu0 %v1378
      %2189 = vmatpush.msra.mxu0 %v1373
      %2190 = vmatpush.msra.mxu0 %v1368
      %2191 = vmatmul.f32.gmra.mxu0 %v1364
      %v2192 = vpop.f32.mrf.mxu0
      %v2193 = vadd.f32 %v1933, %v2192
      %2194 = vdwg.mxu0
      %2195 = vmatpush.msra.mxu0 %v1523
      %2196 = vmatpush.msra.mxu0 %v1518
      %2197 = vmatpush.msra.mxu0 %v1513
      %2198 = vmatpush.msra.mxu0 %v1508
      %2199 = vmatpush.msra.mxu0 %v1503
      %2200 = vmatpush.msra.mxu0 %v1498
      %2201 = vmatpush.msra.mxu0 %v1493
      %2202 = vmatpush.msra.mxu0 %v1488
      %2203 = vmatpush.msra.mxu0 %v1483
      %2204 = vmatpush.msra.mxu0 %v1478
      %2205 = vmatpush.msra.mxu0 %v1473
      %2206 = vmatpush.msra.mxu0 %v1468
      %2207 = vmatpush.msra.mxu0 %v1463
      %2208 = vmatpush.msra.mxu0 %v1458
      %2209 = vmatpush.msra.mxu0 %v1453
      %2210 = vmatpush.msra.mxu0 %v1448
      %2211 = vmatmul.f32.gmra.mxu0 %v1365
      %v2212 = vpop.f32.mrf.mxu0
      %v2213 = vadd.f32 %v2193, %v2212
      %2214 = vdwg.mxu0
      %2215 = vmatpush.msra.mxu0 %v1603
      %2216 = vmatpush.msra.mxu0 %v1598
      %2217 = vmatpush.msra.mxu0 %v1593
      %2218 = vmatpush.msra.mxu0 %v1588
      %2219 = vmatpush.msra.mxu0 %v1583
      %2220 = vmatpush.msra.mxu0 %v1578
      %2221 = vmatpush.msra.mxu0 %v1573
      %2222 = vmatpush.msra.mxu0 %v1568
      %2223 = vmatpush.msra.mxu0 %v1563
      %2224 = vmatpush.msra.mxu0 %v1558
      %2225 = vmatpush.msra.mxu0 %v1553
      %2226 = vmatpush.msra.mxu0 %v1548
      %2227 = vmatpush.msra.mxu0 %v1543
      %2228 = vmatpush.msra.mxu0 %v1538
      %2229 = vmatpush.msra.mxu0 %v1533
      %2230 = vmatpush.msra.mxu0 %v1528
      %2231 = vmatmul.f32.gmra.mxu0 %v1366
      %v2232 = vpop.f32.mrf.mxu0
      %v2233 = vadd.f32 %v2213, %v2232
      %2234 = vdwg.mxu0
      %2235 = vmatpush.msra.mxu0 %v1444
      %2236 = vmatpush.msra.mxu0 %v1439
      %2237 = vmatpush.msra.mxu0 %v1434
      %2238 = vmatpush.msra.mxu0 %v1429
      %2239 = vmatpush.msra.mxu0 %v1424
      %2240 = vmatpush.msra.mxu0 %v1419
      %2241 = vmatpush.msra.mxu0 %v1414
      %2242 = vmatpush.msra.mxu0 %v1409
      %2243 = vmatpush.msra.mxu0 %v1404
      %2244 = vmatpush.msra.mxu0 %v1399
      %2245 = vmatpush.msra.mxu0 %v1394
      %2246 = vmatpush.msra.mxu0 %v1389
      %2247 = vmatpush.msra.mxu0 %v1384
      %2248 = vmatpush.msra.mxu0 %v1379
      %2249 = vmatpush.msra.mxu0 %v1374
      %2250 = vmatpush.msra.mxu0 %v1369
      %2251 = vmatmul.f32.gmra.mxu0 %v1364
      %v2252 = vpop.f32.mrf.mxu0
      %v2253 = vadd.f32 %v1993, %v2252
      %2254 = vdwg.mxu0
      %2255 = vmatpush.msra.mxu0 %v1524
      %2256 = vmatpush.msra.mxu0 %v1519
      %2257 = vmatpush.msra.mxu0 %v1514
      %2258 = vmatpush.msra.mxu0 %v1509
      %2259 = vmatpush.msra.mxu0 %v1504
      %2260 = vmatpush.msra.mxu0 %v1499
      %2261 = vmatpush.msra.mxu0 %v1494
      %2262 = vmatpush.msra.mxu0 %v1489
      %2263 = vmatpush.msra.mxu0 %v1484
      %2264 = vmatpush.msra.mxu0 %v1479
      %2265 = vmatpush.msra.mxu0 %v1474
      %2266 = vmatpush.msra.mxu0 %v1469
      %2267 = vmatpush.msra.mxu0 %v1464
      %2268 = vmatpush.msra.mxu0 %v1459
      %2269 = vmatpush.msra.mxu0 %v1454
      %2270 = vmatpush.msra.mxu0 %v1449
      %2271 = vmatmul.f32.gmra.mxu0 %v1365
      %v2272 = vpop.f32.mrf.mxu0
      %v2273 = vadd.f32 %v2253, %v2272
      %2274 = vdwg.mxu0
      %2275 = vmatpush.msra.mxu0 %v1604
      %2276 = vmatpush.msra.mxu0 %v1599
      %2277 = vmatpush.msra.mxu0 %v1594
      %2278 = vmatpush.msra.mxu0 %v1589
      %2279 = vmatpush.msra.mxu0 %v1584
      %2280 = vmatpush.msra.mxu0 %v1579
      %2281 = vmatpush.msra.mxu0 %v1574
      %2282 = vmatpush.msra.mxu0 %v1569
      %2283 = vmatpush.msra.mxu0 %v1564
      %2284 = vmatpush.msra.mxu0 %v1559
      %2285 = vmatpush.msra.mxu0 %v1554
      %2286 = vmatpush.msra.mxu0 %v1549
      %2287 = vmatpush.msra.mxu0 %v1544
      %2288 = vmatpush.msra.mxu0 %v1539
      %2289 = vmatpush.msra.mxu0 %v1534
      %2290 = vmatpush.msra.mxu0 %v1529
      %2291 = vmatmul.f32.gmra.mxu0 %v1366
      %v2292 = vpop.f32.mrf.mxu0
      %v2293 = vadd.f32 %v2273, %v2292
      %2294 = vdwg.mxu0
      %2295 = vmatpush.msra.mxu0 %v1445
      %2296 = vmatpush.msra.mxu0 %v1440
      %2297 = vmatpush.msra.mxu0 %v1435
      %2298 = vmatpush.msra.mxu0 %v1430
      %2299 = vmatpush.msra.mxu0 %v1425
      %2300 = vmatpush.msra.mxu0 %v1420
      %2301 = vmatpush.msra.mxu0 %v1415
      %2302 = vmatpush.msra.mxu0 %v1410
      %2303 = vmatpush.msra.mxu0 %v1405
      %2304 = vmatpush.msra.mxu0 %v1400
      %2305 = vmatpush.msra.mxu0 %v1395
      %2306 = vmatpush.msra.mxu0 %v1390
      %2307 = vmatpush.msra.mxu0 %v1385
      %2308 = vmatpush.msra.mxu0 %v1380
      %2309 = vmatpush.msra.mxu0 %v1375
      %2310 = vmatpush.msra.mxu0 %v1370
      %2311 = vmatmul.f32.gmra.mxu0 %v1364
      %v2312 = vpop.f32.mrf.mxu0
      %v2313 = vadd.f32 %v2053, %v2312
      %2314 = vdwg.mxu0
      %2315 = vmatpush.msra.mxu0 %v1525
      %2316 = vmatpush.msra.mxu0 %v1520
      %2317 = vmatpush.msra.mxu0 %v1515
      %2318 = vmatpush.msra.mxu0 %v1510
      %2319 = vmatpush.msra.mxu0 %v1505
      %2320 = vmatpush.msra.mxu0 %v1500
      %2321 = vmatpush.msra.mxu0 %v1495
      %2322 = vmatpush.msra.mxu0 %v1490
      %2323 = vmatpush.msra.mxu0 %v1485
      %2324 = vmatpush.msra.mxu0 %v1480
      %2325 = vmatpush.msra.mxu0 %v1475
      %2326 = vmatpush.msra.mxu0 %v1470
      %2327 = vmatpush.msra.mxu0 %v1465
      %2328 = vmatpush.msra.mxu0 %v1460
      %2329 = vmatpush.msra.mxu0 %v1455
      %2330 = vmatpush.msra.mxu0 %v1450
      %2331 = vmatmul.f32.gmra.mxu0 %v1365
      %v2332 = vpop.f32.mrf.mxu0
      %v2333 = vadd.f32 %v2313, %v2332
      %2334 = vdwg.mxu0
      %2335 = vmatpush.msra.mxu0 %v1605
      %2336 = vmatpush.msra.mxu0 %v1600
      %2337 = vmatpush.msra.mxu0 %v1595
      %2338 = vmatpush.msra.mxu0 %v1590
      %2339 = vmatpush.msra.mxu0 %v1585
      %2340 = vmatpush.msra.mxu0 %v1580
      %2341 = vmatpush.msra.mxu0 %v1575
      %2342 = vmatpush.msra.mxu0 %v1570
      %2343 = vmatpush.msra.mxu0 %v1565
      %2344 = vmatpush.msra.mxu0 %v1560
      %2345 = vmatpush.msra.mxu0 %v1555
      %2346 = vmatpush.msra.mxu0 %v1550
      %2347 = vmatpush.msra.mxu0 %v1545
      %2348 = vmatpush.msra.mxu0 %v1540
      %2349 = vmatpush.msra.mxu0 %v1535
      %2350 = vmatpush.msra.mxu0 %v1530
      %2351 = vmatmul.f32.gmra.mxu0 %v1366
      %v2352 = vpop.f32.mrf.mxu0
      %v2353 = vadd.f32 %v2333, %v2352
      %2354 = vdwg.mxu0
      %2355 = vmatpush.msra.mxu0 %v1446
      %2356 = vmatpush.msra.mxu0 %v1441
      %2357 = vmatpush.msra.mxu0 %v1436
      %2358 = vmatpush.msra.mxu0 %v1431
      %2359 = vmatpush.msra.mxu0 %v1426
      %2360 = vmatpush.msra.mxu0 %v1421
      %2361 = vmatpush.msra.mxu0 %v1416
      %2362 = vmatpush.msra.mxu0 %v1411
      %2363 = vmatpush.msra.mxu0 %v1406
      %2364 = vmatpush.msra.mxu0 %v1401
      %2365 = vmatpush.msra.mxu0 %v1396
      %2366 = vmatpush.msra.mxu0 %v1391
      %2367 = vmatpush.msra.mxu0 %v1386
      %2368 = vmatpush.msra.mxu0 %v1381
      %2369 = vmatpush.msra.mxu0 %v1376
      %2370 = vmatpush.msra.mxu0 %v1371
      %2371 = vmatmul.f32.gmra.mxu0 %v1364
      %v2372 = vpop.f32.mrf.mxu0
      %v2373 = vadd.f32 %v2113, %v2372
      %2374 = vdwg.mxu0
      %2375 = vmatpush.msra.mxu0 %v1526
      %2376 = vmatpush.msra.mxu0 %v1521
      %2377 = vmatpush.msra.mxu0 %v1516
      %2378 = vmatpush.msra.mxu0 %v1511
      %2379 = vmatpush.msra.mxu0 %v1506
      %2380 = vmatpush.msra.mxu0 %v1501
      %2381 = vmatpush.msra.mxu0 %v1496
      %2382 = vmatpush.msra.mxu0 %v1491
      %2383 = vmatpush.msra.mxu0 %v1486
      %2384 = vmatpush.msra.mxu0 %v1481
      %2385 = vmatpush.msra.mxu0 %v1476
      %2386 = vmatpush.msra.mxu0 %v1471
      %2387 = vmatpush.msra.mxu0 %v1466
      %2388 = vmatpush.msra.mxu0 %v1461
      %2389 = vmatpush.msra.mxu0 %v1456
      %2390 = vmatpush.msra.mxu0 %v1451
      %2391 = vmatmul.f32.gmra.mxu0 %v1365
      %v2392 = vpop.f32.mrf.mxu0
      %v2393 = vadd.f32 %v2373, %v2392
      %2394 = vdwg.mxu0
      %2395 = vmatpush.msra.mxu0 %v1606
      %2396 = vmatpush.msra.mxu0 %v1601
      %2397 = vmatpush.msra.mxu0 %v1596
      %2398 = vmatpush.msra.mxu0 %v1591
      %2399 = vmatpush.msra.mxu0 %v1586
      %2400 = vmatpush.msra.mxu0 %v1581
      %2401 = vmatpush.msra.mxu0 %v1576
      %2402 = vmatpush.msra.mxu0 %v1571
      %2403 = vmatpush.msra.mxu0 %v1566
      %2404 = vmatpush.msra.mxu0 %v1561
      %2405 = vmatpush.msra.mxu0 %v1556
      %2406 = vmatpush.msra.mxu0 %v1551
      %2407 = vmatpush.msra.mxu0 %v1546
      %2408 = vmatpush.msra.mxu0 %v1541
      %2409 = vmatpush.msra.mxu0 %v1536
      %2410 = vmatpush.msra.mxu0 %v1531
      %2411 = vmatmul.f32.gmra.mxu0 %v1366
      %v2412 = vpop.f32.mrf.mxu0
      %v2413 = vadd.f32 %v2393, %v2412
      %2414 = vdwg.mxu0
      %v2415 = vld [vmem:[%s8] sm:$0xff]
      %2416 = vrot.lane.b32.xlu0 %v2173, 35
      %v2417 = vpop.permute.xlu0 %2416
      %2418 = vrot.lane.b32.xlu0 %v2233, 35
      %v2419 = vpop.permute.xlu0 %2418
      %2420 = vrot.lane.b32.xlu0 %v2293, 35
      %v2421 = vpop.permute.xlu0 %2420
      %2422 = vrot.lane.b32.xlu0 %v2353, 35
      %v2423 = vpop.permute.xlu0 %2422
      %2424 = vrot.lane.b32.xlu0 %v2413, 35
      %v2425 = vpop.permute.xlu0 %2424
      %vm2426 = vcmp.lt.s32.totalorder %v501, 35
      %v2427 = vsel %vm2426, %v2423, %v2425
      %v2428 = vsel %vm2426, %v2421, %v2423
      %v2429 = vsel %vm2426, %v2419, %v2421
      %v2430 = vsel %vm2426, %v2417, %v2419
      %v2431 = vsel %vm2426, %v2425, %v2417
      %v2432 = vld [vmem:[%s10] ss:$8 sm:$0xf]
      %v2433 = vld [vmem:[%s10] ss:$8 sm:$0x10]
      %v2434 = vor.u32 %v2432, %v2433
      %v2436 = vperm.slane %v2434, 0
      %v2437 = vperm.slane %v2434, 1
      %v2438 = vperm.slane %v2434, 2
      %v2439 = vperm.slane %v2434, 3
      %v2440 = vperm.slane %v2434, 4
      %v2446 = vmul.f32 %v2431, %v2436
      %v2447 = vmul.f32 %v2430, %v2437
      %v2448 = vmul.f32 %v2429, %v2438
      %v2449 = vmul.f32 %v2428, %v2439
      %v2450 = vmul.f32 %v2427, %v2440
      %v2451 = vld [vmem:[%s7] sm:$0xff]
      %2452 = vrot.lane.b32.xlu0 %v2173, 34
      %v2453 = vpop.permute.xlu0 %2452
      %2454 = vrot.lane.b32.xlu0 %v2233, 34
      %v2455 = vpop.permute.xlu0 %2454
      %2456 = vrot.lane.b32.xlu0 %v2293, 34
      %v2457 = vpop.permute.xlu0 %2456
      %2458 = vrot.lane.b32.xlu0 %v2353, 34
      %v2459 = vpop.permute.xlu0 %2458
      %2460 = vrot.lane.b32.xlu0 %v2413, 34
      %v2461 = vpop.permute.xlu0 %2460
      %vm2462 = vcmp.lt.s32.totalorder %v501, 34
      %v2463 = vsel %vm2462, %v2459, %v2461
      %v2464 = vsel %vm2462, %v2457, %v2459
      %v2465 = vsel %vm2462, %v2455, %v2457
      %v2466 = vsel %vm2462, %v2453, %v2455
      %v2467 = vsel %vm2462, %v2461, %v2453
      %s2468 = scalar_lea.vmem %s10, 1
      %v2469 = vld [vmem:[%s2468] ss:$8 sm:$0xf]
      %v2470 = vld [vmem:[%s2468] ss:$8 sm:$0x10]
      %v2471 = vor.u32 %v2469, %v2470
      %v2473 = vperm.slane %v2471, 0
      %v2474 = vperm.slane %v2471, 1
      %v2475 = vperm.slane %v2471, 2
      %v2476 = vperm.slane %v2471, 3
      %v2477 = vperm.slane %v2471, 4
      %v2483 = vmul.f32 %v2467, %v2473
      %v2484 = vmul.f32 %v2466, %v2474
      %v2485 = vmul.f32 %v2465, %v2475
      %v2486 = vmul.f32 %v2464, %v2476
      %v2487 = vmul.f32 %v2463, %v2477
      %s2488 = scalar_lea.vmem %s7, 8
      %v2489 = vld [vmem:[%s2488] sm:$0xff]
      %vm2490 = vcmask 64512
      %v2492 = vsel %vm2490, %v2489, 0
      %2494 = vmatpush.msra.mxu0 0.0
      %2495 = vmatpush.msra.mxu0 0.0
      %2496 = vmatpush.msra.mxu0 0.0
      %2497 = vmatpush.msra.mxu0 0.0
      %2498 = vmatpush.msra.mxu0 0.0
      %2499 = vmatpush.msra.mxu0 0.0
      %2500 = vmatpush.msra.mxu0 0.0
      %2501 = vmatpush.msra.mxu0 0.0
      %2502 = vmatpush.msra.mxu0 0.0
      %2503 = vmatpush.msra.mxu0 0.0
      %2504 = vmatpush.msra.mxu0 0.0
      %2505 = vmatpush.msra.mxu0 0.0
      %2506 = vmatpush.msra.mxu0 0.0
      %2507 = vmatpush.msra.mxu0 0.0
      %2508 = vmatpush.msra.mxu0 0.0
      %2509 = vmatpush.msra.mxu0 %v2483
      %2510 = vmatmul.f32.gmra.mxu0 %v2492
      %v2511 = vpop.f32.mrf.mxu0
      %v2512 = vadd.f32 0.0, %v2511
      %2513 = vdwg.mxu0
      %2514 = vmatpush.msra.mxu0 0.0
      %2515 = vmatpush.msra.mxu0 0.0
      %2516 = vmatpush.msra.mxu0 0.0
      %2517 = vmatpush.msra.mxu0 0.0
      %2518 = vmatpush.msra.mxu0 0.0
      %2519 = vmatpush.msra.mxu0 0.0
      %2520 = vmatpush.msra.mxu0 0.0
      %2521 = vmatpush.msra.mxu0 0.0
      %2522 = vmatpush.msra.mxu0 0.0
      %2523 = vmatpush.msra.mxu0 0.0
      %2524 = vmatpush.msra.mxu0 0.0
      %2525 = vmatpush.msra.mxu0 0.0
      %2526 = vmatpush.msra.mxu0 0.0
      %2527 = vmatpush.msra.mxu0 0.0
      %2528 = vmatpush.msra.mxu0 0.0
      %2529 = vmatpush.msra.mxu0 %v2484
      %2530 = vmatmul.f32.gmra.mxu0 %v2492
      %v2531 = vpop.f32.mrf.mxu0
      %v2532 = vadd.f32 0.0, %v2531
      %2533 = vdwg.mxu0
      %2534 = vmatpush.msra.mxu0 0.0
      %2535 = vmatpush.msra.mxu0 0.0
      %2536 = vmatpush.msra.mxu0 0.0
      %2537 = vmatpush.msra.mxu0 0.0
      %2538 = vmatpush.msra.mxu0 0.0
      %2539 = vmatpush.msra.mxu0 0.0
      %2540 = vmatpush.msra.mxu0 0.0
      %2541 = vmatpush.msra.mxu0 0.0
      %2542 = vmatpush.msra.mxu0 0.0
      %2543 = vmatpush.msra.mxu0 0.0
      %2544 = vmatpush.msra.mxu0 0.0
      %2545 = vmatpush.msra.mxu0 0.0
      %2546 = vmatpush.msra.mxu0 0.0
      %2547 = vmatpush.msra.mxu0 0.0
      %2548 = vmatpush.msra.mxu0 0.0
      %2549 = vmatpush.msra.mxu0 %v2485
      %2550 = vmatmul.f32.gmra.mxu0 %v2492
      %v2551 = vpop.f32.mrf.mxu0
      %v2552 = vadd.f32 0.0, %v2551
      %2553 = vdwg.mxu0
      %2554 = vmatpush.msra.mxu0 0.0
      %2555 = vmatpush.msra.mxu0 0.0
      %2556 = vmatpush.msra.mxu0 0.0
      %2557 = vmatpush.msra.mxu0 0.0
      %2558 = vmatpush.msra.mxu0 0.0
      %2559 = vmatpush.msra.mxu0 0.0
      %2560 = vmatpush.msra.mxu0 0.0
      %2561 = vmatpush.msra.mxu0 0.0
      %2562 = vmatpush.msra.mxu0 0.0
      %2563 = vmatpush.msra.mxu0 0.0
      %2564 = vmatpush.msra.mxu0 0.0
      %2565 = vmatpush.msra.mxu0 0.0
      %2566 = vmatpush.msra.mxu0 0.0
      %2567 = vmatpush.msra.mxu0 0.0
      %2568 = vmatpush.msra.mxu0 0.0
      %2569 = vmatpush.msra.mxu0 %v2486
      %2570 = vmatmul.f32.gmra.mxu0 %v2492
      %v2571 = vpop.f32.mrf.mxu0
      %v2572 = vadd.f32 0.0, %v2571
      %2573 = vdwg.mxu0
      %2574 = vmatpush.msra.mxu0 0.0
      %2575 = vmatpush.msra.mxu0 0.0
      %2576 = vmatpush.msra.mxu0 0.0
      %2577 = vmatpush.msra.mxu0 0.0
      %2578 = vmatpush.msra.mxu0 0.0
      %2579 = vmatpush.msra.mxu0 0.0
      %2580 = vmatpush.msra.mxu0 0.0
      %2581 = vmatpush.msra.mxu0 0.0
      %2582 = vmatpush.msra.mxu0 0.0
      %2583 = vmatpush.msra.mxu0 0.0
      %2584 = vmatpush.msra.mxu0 0.0
      %2585 = vmatpush.msra.mxu0 0.0
      %2586 = vmatpush.msra.mxu0 0.0
      %2587 = vmatpush.msra.mxu0 0.0
      %2588 = vmatpush.msra.mxu0 0.0
      %2589 = vmatpush.msra.mxu0 %v2487
      %2590 = vmatmul.f32.gmra.mxu0 %v2492
      %v2591 = vpop.f32.mrf.mxu0
      %v2592 = vadd.f32 0.0, %v2591
      %2593 = vdwg.mxu0
      %v2595 = vsel %vm2490, %v2451, 0
      %2597 = vmatpush.msra.mxu0 0.0
      %2598 = vmatpush.msra.mxu0 0.0
      %2599 = vmatpush.msra.mxu0 0.0
      %2600 = vmatpush.msra.mxu0 0.0
      %2601 = vmatpush.msra.mxu0 0.0
      %2602 = vmatpush.msra.mxu0 0.0
      %2603 = vmatpush.msra.mxu0 0.0
      %2604 = vmatpush.msra.mxu0 0.0
      %2605 = vmatpush.msra.mxu0 0.0
      %2606 = vmatpush.msra.mxu0 0.0
      %2607 = vmatpush.msra.mxu0 0.0
      %2608 = vmatpush.msra.mxu0 0.0
      %2609 = vmatpush.msra.mxu0 0.0
      %2610 = vmatpush.msra.mxu0 0.0
      %2611 = vmatpush.msra.mxu0 0.0
      %2612 = vmatpush.msra.mxu0 %v2446
      %2613 = vmatmul.f32.gmra.mxu0 %v2595
      %v2614 = vpop.f32.mrf.mxu0
      %v2615 = vadd.f32 %v2512, %v2614
      %2616 = vdwg.mxu0
      %2617 = vmatpush.msra.mxu0 0.0
      %2618 = vmatpush.msra.mxu0 0.0
      %2619 = vmatpush.msra.mxu0 0.0
      %2620 = vmatpush.msra.mxu0 0.0
      %2621 = vmatpush.msra.mxu0 0.0
      %2622 = vmatpush.msra.mxu0 0.0
      %2623 = vmatpush.msra.mxu0 0.0
      %2624 = vmatpush.msra.mxu0 0.0
      %2625 = vmatpush.msra.mxu0 0.0
      %2626 = vmatpush.msra.mxu0 0.0
      %2627 = vmatpush.msra.mxu0 0.0
      %2628 = vmatpush.msra.mxu0 0.0
      %2629 = vmatpush.msra.mxu0 0.0
      %2630 = vmatpush.msra.mxu0 0.0
      %2631 = vmatpush.msra.mxu0 0.0
      %2632 = vmatpush.msra.mxu0 %v2447
      %2633 = vmatmul.f32.gmra.mxu0 %v2595
      %v2634 = vpop.f32.mrf.mxu0
      %v2635 = vadd.f32 %v2532, %v2634
      %2636 = vdwg.mxu0
      %2637 = vmatpush.msra.mxu0 0.0
      %2638 = vmatpush.msra.mxu0 0.0
      %2639 = vmatpush.msra.mxu0 0.0
      %2640 = vmatpush.msra.mxu0 0.0
      %2641 = vmatpush.msra.mxu0 0.0
      %2642 = vmatpush.msra.mxu0 0.0
      %2643 = vmatpush.msra.mxu0 0.0
      %2644 = vmatpush.msra.mxu0 0.0
      %2645 = vmatpush.msra.mxu0 0.0
      %2646 = vmatpush.msra.mxu0 0.0
      %2647 = vmatpush.msra.mxu0 0.0
      %2648 = vmatpush.msra.mxu0 0.0
      %2649 = vmatpush.msra.mxu0 0.0
      %2650 = vmatpush.msra.mxu0 0.0
      %2651 = vmatpush.msra.mxu0 0.0
      %2652 = vmatpush.msra.mxu0 %v2448
      %2653 = vmatmul.f32.gmra.mxu0 %v2595
      %v2654 = vpop.f32.mrf.mxu0
      %v2655 = vadd.f32 %v2552, %v2654
      %2656 = vdwg.mxu0
      %2657 = vmatpush.msra.mxu0 0.0
      %2658 = vmatpush.msra.mxu0 0.0
      %2659 = vmatpush.msra.mxu0 0.0
      %2660 = vmatpush.msra.mxu0 0.0
      %2661 = vmatpush.msra.mxu0 0.0
      %2662 = vmatpush.msra.mxu0 0.0
      %2663 = vmatpush.msra.mxu0 0.0
      %2664 = vmatpush.msra.mxu0 0.0
      %2665 = vmatpush.msra.mxu0 0.0
      %2666 = vmatpush.msra.mxu0 0.0
      %2667 = vmatpush.msra.mxu0 0.0
      %2668 = vmatpush.msra.mxu0 0.0
      %2669 = vmatpush.msra.mxu0 0.0
      %2670 = vmatpush.msra.mxu0 0.0
      %2671 = vmatpush.msra.mxu0 0.0
      %2672 = vmatpush.msra.mxu0 %v2449
      %2673 = vmatmul.f32.gmra.mxu0 %v2595
      %v2674 = vpop.f32.mrf.mxu0
      %v2675 = vadd.f32 %v2572, %v2674
      %2676 = vdwg.mxu0
      %2677 = vmatpush.msra.mxu0 0.0
      %2678 = vmatpush.msra.mxu0 0.0
      %2679 = vmatpush.msra.mxu0 0.0
      %2680 = vmatpush.msra.mxu0 0.0
      %2681 = vmatpush.msra.mxu0 0.0
      %2682 = vmatpush.msra.mxu0 0.0
      %2683 = vmatpush.msra.mxu0 0.0
      %2684 = vmatpush.msra.mxu0 0.0
      %2685 = vmatpush.msra.mxu0 0.0
      %2686 = vmatpush.msra.mxu0 0.0
      %2687 = vmatpush.msra.mxu0 0.0
      %2688 = vmatpush.msra.mxu0 0.0
      %2689 = vmatpush.msra.mxu0 0.0
      %2690 = vmatpush.msra.mxu0 0.0
      %2691 = vmatpush.msra.mxu0 0.0
      %2692 = vmatpush.msra.mxu0 %v2450
      %2693 = vmatmul.f32.gmra.mxu0 %v2595
      %v2694 = vpop.f32.mrf.mxu0
      %v2695 = vadd.f32 %v2592, %v2694
      %2696 = vdwg.mxu0
      %2697 = vrot.lane.b32.xlu0 %v2173, 33
      %v2698 = vpop.permute.xlu0 %2697
      %2699 = vrot.lane.b32.xlu0 %v2233, 33
      %v2700 = vpop.permute.xlu0 %2699
      %2701 = vrot.lane.b32.xlu0 %v2293, 33
      %v2702 = vpop.permute.xlu0 %2701
      %2703 = vrot.lane.b32.xlu0 %v2353, 33
      %v2704 = vpop.permute.xlu0 %2703
      %2705 = vrot.lane.b32.xlu0 %v2413, 33
      %v2706 = vpop.permute.xlu0 %2705
      %vm2707 = vcmp.lt.s32.totalorder %v501, 33
      %v2708 = vsel %vm2707, %v2704, %v2706
      %v2709 = vsel %vm2707, %v2702, %v2704
      %v2710 = vsel %vm2707, %v2700, %v2702
      %v2711 = vsel %vm2707, %v2698, %v2700
      %v2712 = vsel %vm2707, %v2706, %v2698
      %s2713 = scalar_lea.vmem %s10, 2
      %v2714 = vld [vmem:[%s2713] ss:$8 sm:$0xf]
      %v2715 = vld [vmem:[%s2713] ss:$8 sm:$0x10]
      %v2716 = vor.u32 %v2714, %v2715
      %v2718 = vperm.slane %v2716, 0
      %v2719 = vperm.slane %v2716, 1
      %v2720 = vperm.slane %v2716, 2
      %v2721 = vperm.slane %v2716, 3
      %v2722 = vperm.slane %v2716, 4
      %v2728 = vmul.f32 %v2712, %v2718
      %v2729 = vmul.f32 %v2711, %v2719
      %v2730 = vmul.f32 %v2710, %v2720
      %v2731 = vmul.f32 %v2709, %v2721
      %v2732 = vmul.f32 %v2708, %v2722
      %s2733 = scalar_lea.vmem %s7, 16
      %v2734 = vld [vmem:[%s2733] sm:$0xff]
      %v2736 = vsel %vm2490, %v2734, 0
      %2738 = vmatpush.msra.mxu0 0.0
      %2739 = vmatpush.msra.mxu0 0.0
      %2740 = vmatpush.msra.mxu0 0.0
      %2741 = vmatpush.msra.mxu0 0.0
      %2742 = vmatpush.msra.mxu0 0.0
      %2743 = vmatpush.msra.mxu0 0.0
      %2744 = vmatpush.msra.mxu0 0.0
      %2745 = vmatpush.msra.mxu0 0.0
      %2746 = vmatpush.msra.mxu0 0.0
      %2747 = vmatpush.msra.mxu0 0.0
      %2748 = vmatpush.msra.mxu0 0.0
      %2749 = vmatpush.msra.mxu0 0.0
      %2750 = vmatpush.msra.mxu0 0.0
      %2751 = vmatpush.msra.mxu0 0.0
      %2752 = vmatpush.msra.mxu0 0.0
      %2753 = vmatpush.msra.mxu0 %v2728
      %2754 = vmatmul.f32.gmra.mxu0 %v2736
      %v2755 = vpop.f32.mrf.mxu0
      %v2756 = vadd.f32 0.0, %v2755
      %2757 = vdwg.mxu0
      %2758 = vmatpush.msra.mxu0 0.0
      %2759 = vmatpush.msra.mxu0 0.0
      %2760 = vmatpush.msra.mxu0 0.0
      %2761 = vmatpush.msra.mxu0 0.0
      %2762 = vmatpush.msra.mxu0 0.0
      %2763 = vmatpush.msra.mxu0 0.0
      %2764 = vmatpush.msra.mxu0 0.0
      %2765 = vmatpush.msra.mxu0 0.0
      %2766 = vmatpush.msra.mxu0 0.0
      %2767 = vmatpush.msra.mxu0 0.0
      %2768 = vmatpush.msra.mxu0 0.0
      %2769 = vmatpush.msra.mxu0 0.0
      %2770 = vmatpush.msra.mxu0 0.0
      %2771 = vmatpush.msra.mxu0 0.0
      %2772 = vmatpush.msra.mxu0 0.0
      %2773 = vmatpush.msra.mxu0 %v2729
      %2774 = vmatmul.f32.gmra.mxu0 %v2736
      %v2775 = vpop.f32.mrf.mxu0
      %v2776 = vadd.f32 0.0, %v2775
      %2777 = vdwg.mxu0
      %2778 = vmatpush.msra.mxu0 0.0
      %2779 = vmatpush.msra.mxu0 0.0
      %2780 = vmatpush.msra.mxu0 0.0
      %2781 = vmatpush.msra.mxu0 0.0
      %2782 = vmatpush.msra.mxu0 0.0
      %2783 = vmatpush.msra.mxu0 0.0
      %2784 = vmatpush.msra.mxu0 0.0
      %2785 = vmatpush.msra.mxu0 0.0
      %2786 = vmatpush.msra.mxu0 0.0
      %2787 = vmatpush.msra.mxu0 0.0
      %2788 = vmatpush.msra.mxu0 0.0
      %2789 = vmatpush.msra.mxu0 0.0
      %2790 = vmatpush.msra.mxu0 0.0
      %2791 = vmatpush.msra.mxu0 0.0
      %2792 = vmatpush.msra.mxu0 0.0
      %2793 = vmatpush.msra.mxu0 %v2730
      %2794 = vmatmul.f32.gmra.mxu0 %v2736
      %v2795 = vpop.f32.mrf.mxu0
      %v2796 = vadd.f32 0.0, %v2795
      %2797 = vdwg.mxu0
      %2798 = vmatpush.msra.mxu0 0.0
      %2799 = vmatpush.msra.mxu0 0.0
      %2800 = vmatpush.msra.mxu0 0.0
      %2801 = vmatpush.msra.mxu0 0.0
      %2802 = vmatpush.msra.mxu0 0.0
      %2803 = vmatpush.msra.mxu0 0.0
      %2804 = vmatpush.msra.mxu0 0.0
      %2805 = vmatpush.msra.mxu0 0.0
      %2806 = vmatpush.msra.mxu0 0.0
      %2807 = vmatpush.msra.mxu0 0.0
      %2808 = vmatpush.msra.mxu0 0.0
      %2809 = vmatpush.msra.mxu0 0.0
      %2810 = vmatpush.msra.mxu0 0.0
      %2811 = vmatpush.msra.mxu0 0.0
      %2812 = vmatpush.msra.mxu0 0.0
      %2813 = vmatpush.msra.mxu0 %v2731
      %2814 = vmatmul.f32.gmra.mxu0 %v2736
      %v2815 = vpop.f32.mrf.mxu0
      %v2816 = vadd.f32 0.0, %v2815
      %2817 = vdwg.mxu0
      %2818 = vmatpush.msra.mxu0 0.0
      %2819 = vmatpush.msra.mxu0 0.0
      %2820 = vmatpush.msra.mxu0 0.0
      %2821 = vmatpush.msra.mxu0 0.0
      %2822 = vmatpush.msra.mxu0 0.0
      %2823 = vmatpush.msra.mxu0 0.0
      %2824 = vmatpush.msra.mxu0 0.0
      %2825 = vmatpush.msra.mxu0 0.0
      %2826 = vmatpush.msra.mxu0 0.0
      %2827 = vmatpush.msra.mxu0 0.0
      %2828 = vmatpush.msra.mxu0 0.0
      %2829 = vmatpush.msra.mxu0 0.0
      %2830 = vmatpush.msra.mxu0 0.0
      %2831 = vmatpush.msra.mxu0 0.0
      %2832 = vmatpush.msra.mxu0 0.0
      %2833 = vmatpush.msra.mxu0 %v2732
      %2834 = vmatmul.f32.gmra.mxu0 %v2736
      %v2835 = vpop.f32.mrf.mxu0
      %v2836 = vadd.f32 0.0, %v2835
      %2837 = vdwg.mxu0
      %v2838 = vadd.f32 %v2615, %v2756
      %v2839 = vadd.f32 %v2635, %v2776
      %v2840 = vadd.f32 %v2655, %v2796
      %v2841 = vadd.f32 %v2675, %v2816
      %v2842 = vadd.f32 %v2695, %v2836
      %2843 = vrot.lane.b32.xlu0 %v2173, 1
      %v2844 = vpop.permute.xlu0 %2843
      %2845 = vrot.lane.b32.xlu0 %v2233, 1
      %v2846 = vpop.permute.xlu0 %2845
      %2847 = vrot.lane.b32.xlu0 %v2293, 1
      %v2848 = vpop.permute.xlu0 %2847
      %2849 = vrot.lane.b32.xlu0 %v2353, 1
      %v2850 = vpop.permute.xlu0 %2849
      %2851 = vrot.lane.b32.xlu0 %v2413, 1
      %v2852 = vpop.permute.xlu0 %2851
      %v2853 = vsel %vm793, %v2850, %v2852
      %v2854 = vsel %vm793, %v2848, %v2850
      %v2855 = vsel %vm793, %v2846, %v2848
      %v2856 = vsel %vm793, %v2844, %v2846
      %v2857 = vsel %vm793, %v2852, %v2844
      %s2858 = scalar_lea.vmem %s10, 3
      %v2859 = vld [vmem:[%s2858] ss:$8 sm:$0xf]
      %v2860 = vld [vmem:[%s2858] ss:$8 sm:$0x10]
      %v2861 = vor.u32 %v2859, %v2860
      %v2863 = vperm.slane %v2861, 0
      %v2864 = vperm.slane %v2861, 1
      %v2865 = vperm.slane %v2861, 2
      %v2866 = vperm.slane %v2861, 3
      %v2867 = vperm.slane %v2861, 4
      %v2873 = vmul.f32 %v2857, %v2863
      %v2874 = vmul.f32 %v2856, %v2864
      %v2875 = vmul.f32 %v2855, %v2865
      %v2876 = vmul.f32 %v2854, %v2866
      %v2877 = vmul.f32 %v2853, %v2867
      %s2878 = scalar_lea.vmem %s7, 24
      %v2879 = vld [vmem:[%s2878] sm:$0xff]
      %v2881 = vsel %vm2490, %v2879, 0
      %2883 = vmatpush.msra.mxu0 0.0
      %2884 = vmatpush.msra.mxu0 0.0
      %2885 = vmatpush.msra.mxu0 0.0
      %2886 = vmatpush.msra.mxu0 0.0
      %2887 = vmatpush.msra.mxu0 0.0
      %2888 = vmatpush.msra.mxu0 0.0
      %2889 = vmatpush.msra.mxu0 0.0
      %2890 = vmatpush.msra.mxu0 0.0
      %2891 = vmatpush.msra.mxu0 0.0
      %2892 = vmatpush.msra.mxu0 0.0
      %2893 = vmatpush.msra.mxu0 0.0
      %2894 = vmatpush.msra.mxu0 0.0
      %2895 = vmatpush.msra.mxu0 0.0
      %2896 = vmatpush.msra.mxu0 0.0
      %2897 = vmatpush.msra.mxu0 0.0
      %2898 = vmatpush.msra.mxu0 %v2873
      %2899 = vmatmul.f32.gmra.mxu0 %v2881
      %v2900 = vpop.f32.mrf.mxu0
      %v2901 = vadd.f32 0.0, %v2900
      %2902 = vdwg.mxu0
      %2903 = vmatpush.msra.mxu0 0.0
      %2904 = vmatpush.msra.mxu0 0.0
      %2905 = vmatpush.msra.mxu0 0.0
      %2906 = vmatpush.msra.mxu0 0.0
      %2907 = vmatpush.msra.mxu0 0.0
      %2908 = vmatpush.msra.mxu0 0.0
      %2909 = vmatpush.msra.mxu0 0.0
      %2910 = vmatpush.msra.mxu0 0.0
      %2911 = vmatpush.msra.mxu0 0.0
      %2912 = vmatpush.msra.mxu0 0.0
      %2913 = vmatpush.msra.mxu0 0.0
      %2914 = vmatpush.msra.mxu0 0.0
      %2915 = vmatpush.msra.mxu0 0.0
      %2916 = vmatpush.msra.mxu0 0.0
      %2917 = vmatpush.msra.mxu0 0.0
      %2918 = vmatpush.msra.mxu0 %v2874
      %2919 = vmatmul.f32.gmra.mxu0 %v2881
      %v2920 = vpop.f32.mrf.mxu0
      %v2921 = vadd.f32 0.0, %v2920
      %2922 = vdwg.mxu0
      %2923 = vmatpush.msra.mxu0 0.0
      %2924 = vmatpush.msra.mxu0 0.0
      %2925 = vmatpush.msra.mxu0 0.0
      %2926 = vmatpush.msra.mxu0 0.0
      %2927 = vmatpush.msra.mxu0 0.0
      %2928 = vmatpush.msra.mxu0 0.0
      %2929 = vmatpush.msra.mxu0 0.0
      %2930 = vmatpush.msra.mxu0 0.0
      %2931 = vmatpush.msra.mxu0 0.0
      %2932 = vmatpush.msra.mxu0 0.0
      %2933 = vmatpush.msra.mxu0 0.0
      %2934 = vmatpush.msra.mxu0 0.0
      %2935 = vmatpush.msra.mxu0 0.0
      %2936 = vmatpush.msra.mxu0 0.0
      %2937 = vmatpush.msra.mxu0 0.0
      %2938 = vmatpush.msra.mxu0 %v2875
      %2939 = vmatmul.f32.gmra.mxu0 %v2881
      %v2940 = vpop.f32.mrf.mxu0
      %v2941 = vadd.f32 0.0, %v2940
      %2942 = vdwg.mxu0
      %2943 = vmatpush.msra.mxu0 0.0
      %2944 = vmatpush.msra.mxu0 0.0
      %2945 = vmatpush.msra.mxu0 0.0
      %2946 = vmatpush.msra.mxu0 0.0
      %2947 = vmatpush.msra.mxu0 0.0
      %2948 = vmatpush.msra.mxu0 0.0
      %2949 = vmatpush.msra.mxu0 0.0
      %2950 = vmatpush.msra.mxu0 0.0
      %2951 = vmatpush.msra.mxu0 0.0
      %2952 = vmatpush.msra.mxu0 0.0
      %2953 = vmatpush.msra.mxu0 0.0
      %2954 = vmatpush.msra.mxu0 0.0
      %2955 = vmatpush.msra.mxu0 0.0
      %2956 = vmatpush.msra.mxu0 0.0
      %2957 = vmatpush.msra.mxu0 0.0
      %2958 = vmatpush.msra.mxu0 %v2876
      %2959 = vmatmul.f32.gmra.mxu0 %v2881
      %v2960 = vpop.f32.mrf.mxu0
      %v2961 = vadd.f32 0.0, %v2960
      %2962 = vdwg.mxu0
      %2963 = vmatpush.msra.mxu0 0.0
      %2964 = vmatpush.msra.mxu0 0.0
      %2965 = vmatpush.msra.mxu0 0.0
      %2966 = vmatpush.msra.mxu0 0.0
      %2967 = vmatpush.msra.mxu0 0.0
      %2968 = vmatpush.msra.mxu0 0.0
      %2969 = vmatpush.msra.mxu0 0.0
      %2970 = vmatpush.msra.mxu0 0.0
      %2971 = vmatpush.msra.mxu0 0.0
      %2972 = vmatpush.msra.mxu0 0.0
      %2973 = vmatpush.msra.mxu0 0.0
      %2974 = vmatpush.msra.mxu0 0.0
      %2975 = vmatpush.msra.mxu0 0.0
      %2976 = vmatpush.msra.mxu0 0.0
      %2977 = vmatpush.msra.mxu0 0.0
      %2978 = vmatpush.msra.mxu0 %v2877
      %2979 = vmatmul.f32.gmra.mxu0 %v2881
      %v2980 = vpop.f32.mrf.mxu0
      %v2981 = vadd.f32 0.0, %v2980
      %2982 = vdwg.mxu0
      %v2983 = vadd.f32 %v2838, %v2901
      %v2984 = vadd.f32 %v2839, %v2921
      %v2985 = vadd.f32 %v2840, %v2941
      %v2986 = vadd.f32 %v2841, %v2961
      %v2987 = vadd.f32 %v2842, %v2981
      %s2988 = scalar_lea.vmem %s7, 32
      %v2989 = vld [vmem:[%s2988] sm:$0xff]
      %v2991 = vsel %vm2490, %v2989, 0
      %2993 = vmatpush.msra.mxu0 0.0
      %2994 = vmatpush.msra.mxu0 0.0
      %2995 = vmatpush.msra.mxu0 0.0
      %2996 = vmatpush.msra.mxu0 0.0
      %2997 = vmatpush.msra.mxu0 0.0
      %2998 = vmatpush.msra.mxu0 0.0
      %2999 = vmatpush.msra.mxu0 0.0
      %3000 = vmatpush.msra.mxu0 0.0
      %3001 = vmatpush.msra.mxu0 0.0
      %3002 = vmatpush.msra.mxu0 0.0
      %3003 = vmatpush.msra.mxu0 0.0
      %3004 = vmatpush.msra.mxu0 0.0
      %3005 = vmatpush.msra.mxu0 0.0
      %3006 = vmatpush.msra.mxu0 0.0
      %3007 = vmatpush.msra.mxu0 0.0
      %3008 = vmatpush.msra.mxu0 %v2173
      %3009 = vmatmul.f32.gmra.mxu0 %v2991
      %v3010 = vpop.f32.mrf.mxu0
      %v3011 = vadd.f32 0.0, %v3010
      %3012 = vdwg.mxu0
      %3013 = vmatpush.msra.mxu0 0.0
      %3014 = vmatpush.msra.mxu0 0.0
      %3015 = vmatpush.msra.mxu0 0.0
      %3016 = vmatpush.msra.mxu0 0.0
      %3017 = vmatpush.msra.mxu0 0.0
      %3018 = vmatpush.msra.mxu0 0.0
      %3019 = vmatpush.msra.mxu0 0.0
      %3020 = vmatpush.msra.mxu0 0.0
      %3021 = vmatpush.msra.mxu0 0.0
      %3022 = vmatpush.msra.mxu0 0.0
      %3023 = vmatpush.msra.mxu0 0.0
      %3024 = vmatpush.msra.mxu0 0.0
      %3025 = vmatpush.msra.mxu0 0.0
      %3026 = vmatpush.msra.mxu0 0.0
      %3027 = vmatpush.msra.mxu0 0.0
      %3028 = vmatpush.msra.mxu0 %v2233
      %3029 = vmatmul.f32.gmra.mxu0 %v2991
      %v3030 = vpop.f32.mrf.mxu0
      %v3031 = vadd.f32 0.0, %v3030
      %3032 = vdwg.mxu0
      %3033 = vmatpush.msra.mxu0 0.0
      %3034 = vmatpush.msra.mxu0 0.0
      %3035 = vmatpush.msra.mxu0 0.0
      %3036 = vmatpush.msra.mxu0 0.0
      %3037 = vmatpush.msra.mxu0 0.0
      %3038 = vmatpush.msra.mxu0 0.0
      %3039 = vmatpush.msra.mxu0 0.0
      %3040 = vmatpush.msra.mxu0 0.0
      %3041 = vmatpush.msra.mxu0 0.0
      %3042 = vmatpush.msra.mxu0 0.0
      %3043 = vmatpush.msra.mxu0 0.0
      %3044 = vmatpush.msra.mxu0 0.0
      %3045 = vmatpush.msra.mxu0 0.0
      %3046 = vmatpush.msra.mxu0 0.0
      %3047 = vmatpush.msra.mxu0 0.0
      %3048 = vmatpush.msra.mxu0 %v2293
      %3049 = vmatmul.f32.gmra.mxu0 %v2991
      %v3050 = vpop.f32.mrf.mxu0
      %v3051 = vadd.f32 0.0, %v3050
      %3052 = vdwg.mxu0
      %3053 = vmatpush.msra.mxu0 0.0
      %3054 = vmatpush.msra.mxu0 0.0
      %3055 = vmatpush.msra.mxu0 0.0
      %3056 = vmatpush.msra.mxu0 0.0
      %3057 = vmatpush.msra.mxu0 0.0
      %3058 = vmatpush.msra.mxu0 0.0
      %3059 = vmatpush.msra.mxu0 0.0
      %3060 = vmatpush.msra.mxu0 0.0
      %3061 = vmatpush.msra.mxu0 0.0
      %3062 = vmatpush.msra.mxu0 0.0
      %3063 = vmatpush.msra.mxu0 0.0
      %3064 = vmatpush.msra.mxu0 0.0
      %3065 = vmatpush.msra.mxu0 0.0
      %3066 = vmatpush.msra.mxu0 0.0
      %3067 = vmatpush.msra.mxu0 0.0
      %3068 = vmatpush.msra.mxu0 %v2353
      %3069 = vmatmul.f32.gmra.mxu0 %v2991
      %v3070 = vpop.f32.mrf.mxu0
      %v3071 = vadd.f32 0.0, %v3070
      %3072 = vdwg.mxu0
      %3073 = vmatpush.msra.mxu0 0.0
      %3074 = vmatpush.msra.mxu0 0.0
      %3075 = vmatpush.msra.mxu0 0.0
      %3076 = vmatpush.msra.mxu0 0.0
      %3077 = vmatpush.msra.mxu0 0.0
      %3078 = vmatpush.msra.mxu0 0.0
      %3079 = vmatpush.msra.mxu0 0.0
      %3080 = vmatpush.msra.mxu0 0.0
      %3081 = vmatpush.msra.mxu0 0.0
      %3082 = vmatpush.msra.mxu0 0.0
      %3083 = vmatpush.msra.mxu0 0.0
      %3084 = vmatpush.msra.mxu0 0.0
      %3085 = vmatpush.msra.mxu0 0.0
      %3086 = vmatpush.msra.mxu0 0.0
      %3087 = vmatpush.msra.mxu0 0.0
      %3088 = vmatpush.msra.mxu0 %v2413
      %3089 = vmatmul.f32.gmra.mxu0 %v2991
      %v3090 = vpop.f32.mrf.mxu0
      %v3091 = vadd.f32 0.0, %v3090
      %3092 = vdwg.mxu0
      %v3093 = vadd.f32 %v2983, %v3011
      %v3094 = vadd.f32 %v2984, %v3031
      %v3095 = vadd.f32 %v2985, %v3051
      %v3096 = vadd.f32 %v2986, %v3071
      %v3097 = vadd.f32 %v2987, %v3091
      %3098 = vrot.lane.b32.xlu0 %v2173, 127
      %v3099 = vpop.permute.xlu0 %3098
      %3100 = vrot.lane.b32.xlu0 %v2233, 127
      %v3101 = vpop.permute.xlu0 %3100
      %3102 = vrot.lane.b32.xlu0 %v2293, 127
      %v3103 = vpop.permute.xlu0 %3102
      %3104 = vrot.lane.b32.xlu0 %v2353, 127
      %v3105 = vpop.permute.xlu0 %3104
      %3106 = vrot.lane.b32.xlu0 %v2413, 127
      %v3107 = vpop.permute.xlu0 %3106
      %v3108 = vsel %vm969, %v3105, %v3107
      %v3109 = vsel %vm969, %v3103, %v3105
      %v3110 = vsel %vm969, %v3101, %v3103
      %v3111 = vsel %vm969, %v3099, %v3101
      %v3112 = vsel %vm969, %v3107, %v3099
      %s3113 = scalar_lea.vmem %s10, 5
      %v3114 = vld [vmem:[%s3113] ss:$8 sm:$0xf]
      %v3115 = vld [vmem:[%s3113] ss:$8 sm:$0x10]
      %v3116 = vor.u32 %v3114, %v3115
      %v3118 = vperm.slane %v3116, 0
      %v3119 = vperm.slane %v3116, 1
      %v3120 = vperm.slane %v3116, 2
      %v3121 = vperm.slane %v3116, 3
      %v3122 = vperm.slane %v3116, 4
      %v3128 = vmul.f32 %v3111, %v3118
      %v3129 = vmul.f32 %v3110, %v3119
      %v3130 = vmul.f32 %v3109, %v3120
      %v3131 = vmul.f32 %v3108, %v3121
      %v3132 = vmul.f32 %v3112, %v3122
      %s3133 = scalar_lea.vmem %s7, 40
      %v3134 = vld [vmem:[%s3133] sm:$0xff]
      %v3136 = vsel %vm2490, %v3134, 0
      %3138 = vmatpush.msra.mxu0 0.0
      %3139 = vmatpush.msra.mxu0 0.0
      %3140 = vmatpush.msra.mxu0 0.0
      %3141 = vmatpush.msra.mxu0 0.0
      %3142 = vmatpush.msra.mxu0 0.0
      %3143 = vmatpush.msra.mxu0 0.0
      %3144 = vmatpush.msra.mxu0 0.0
      %3145 = vmatpush.msra.mxu0 0.0
      %3146 = vmatpush.msra.mxu0 0.0
      %3147 = vmatpush.msra.mxu0 0.0
      %3148 = vmatpush.msra.mxu0 0.0
      %3149 = vmatpush.msra.mxu0 0.0
      %3150 = vmatpush.msra.mxu0 0.0
      %3151 = vmatpush.msra.mxu0 0.0
      %3152 = vmatpush.msra.mxu0 0.0
      %3153 = vmatpush.msra.mxu0 %v3128
      %3154 = vmatmul.f32.gmra.mxu0 %v3136
      %v3155 = vpop.f32.mrf.mxu0
      %v3156 = vadd.f32 0.0, %v3155
      %3157 = vdwg.mxu0
      %3158 = vmatpush.msra.mxu0 0.0
      %3159 = vmatpush.msra.mxu0 0.0
      %3160 = vmatpush.msra.mxu0 0.0
      %3161 = vmatpush.msra.mxu0 0.0
      %3162 = vmatpush.msra.mxu0 0.0
      %3163 = vmatpush.msra.mxu0 0.0
      %3164 = vmatpush.msra.mxu0 0.0
      %3165 = vmatpush.msra.mxu0 0.0
      %3166 = vmatpush.msra.mxu0 0.0
      %3167 = vmatpush.msra.mxu0 0.0
      %3168 = vmatpush.msra.mxu0 0.0
      %3169 = vmatpush.msra.mxu0 0.0
      %3170 = vmatpush.msra.mxu0 0.0
      %3171 = vmatpush.msra.mxu0 0.0
      %3172 = vmatpush.msra.mxu0 0.0
      %3173 = vmatpush.msra.mxu0 %v3129
      %3174 = vmatmul.f32.gmra.mxu0 %v3136
      %v3175 = vpop.f32.mrf.mxu0
      %v3176 = vadd.f32 0.0, %v3175
      %3177 = vdwg.mxu0
      %3178 = vmatpush.msra.mxu0 0.0
      %3179 = vmatpush.msra.mxu0 0.0
      %3180 = vmatpush.msra.mxu0 0.0
      %3181 = vmatpush.msra.mxu0 0.0
      %3182 = vmatpush.msra.mxu0 0.0
      %3183 = vmatpush.msra.mxu0 0.0
      %3184 = vmatpush.msra.mxu0 0.0
      %3185 = vmatpush.msra.mxu0 0.0
      %3186 = vmatpush.msra.mxu0 0.0
      %3187 = vmatpush.msra.mxu0 0.0
      %3188 = vmatpush.msra.mxu0 0.0
      %3189 = vmatpush.msra.mxu0 0.0
      %3190 = vmatpush.msra.mxu0 0.0
      %3191 = vmatpush.msra.mxu0 0.0
      %3192 = vmatpush.msra.mxu0 0.0
      %3193 = vmatpush.msra.mxu0 %v3130
      %3194 = vmatmul.f32.gmra.mxu0 %v3136
      %v3195 = vpop.f32.mrf.mxu0
      %v3196 = vadd.f32 0.0, %v3195
      %3197 = vdwg.mxu0
      %3198 = vmatpush.msra.mxu0 0.0
      %3199 = vmatpush.msra.mxu0 0.0
      %3200 = vmatpush.msra.mxu0 0.0
      %3201 = vmatpush.msra.mxu0 0.0
      %3202 = vmatpush.msra.mxu0 0.0
      %3203 = vmatpush.msra.mxu0 0.0
      %3204 = vmatpush.msra.mxu0 0.0
      %3205 = vmatpush.msra.mxu0 0.0
      %3206 = vmatpush.msra.mxu0 0.0
      %3207 = vmatpush.msra.mxu0 0.0
      %3208 = vmatpush.msra.mxu0 0.0
      %3209 = vmatpush.msra.mxu0 0.0
      %3210 = vmatpush.msra.mxu0 0.0
      %3211 = vmatpush.msra.mxu0 0.0
      %3212 = vmatpush.msra.mxu0 0.0
      %3213 = vmatpush.msra.mxu0 %v3131
      %3214 = vmatmul.f32.gmra.mxu0 %v3136
      %v3215 = vpop.f32.mrf.mxu0
      %v3216 = vadd.f32 0.0, %v3215
      %3217 = vdwg.mxu0
      %3218 = vmatpush.msra.mxu0 0.0
      %3219 = vmatpush.msra.mxu0 0.0
      %3220 = vmatpush.msra.mxu0 0.0
      %3221 = vmatpush.msra.mxu0 0.0
      %3222 = vmatpush.msra.mxu0 0.0
      %3223 = vmatpush.msra.mxu0 0.0
      %3224 = vmatpush.msra.mxu0 0.0
      %3225 = vmatpush.msra.mxu0 0.0
      %3226 = vmatpush.msra.mxu0 0.0
      %3227 = vmatpush.msra.mxu0 0.0
      %3228 = vmatpush.msra.mxu0 0.0
      %3229 = vmatpush.msra.mxu0 0.0
      %3230 = vmatpush.msra.mxu0 0.0
      %3231 = vmatpush.msra.mxu0 0.0
      %3232 = vmatpush.msra.mxu0 0.0
      %3233 = vmatpush.msra.mxu0 %v3132
      %3234 = vmatmul.f32.gmra.mxu0 %v3136
      %v3235 = vpop.f32.mrf.mxu0
      %v3236 = vadd.f32 0.0, %v3235
      %3237 = vdwg.mxu0
      %v3238 = vadd.f32 %v3093, %v3156
      %v3239 = vadd.f32 %v3094, %v3176
      %v3240 = vadd.f32 %v3095, %v3196
      %v3241 = vadd.f32 %v3096, %v3216
      %v3242 = vadd.f32 %v3097, %v3236
      %3243 = vrot.lane.b32.xlu0 %v2173, 95
      %v3244 = vpop.permute.xlu0 %3243
      %3245 = vrot.lane.b32.xlu0 %v2233, 95
      %v3246 = vpop.permute.xlu0 %3245
      %3247 = vrot.lane.b32.xlu0 %v2293, 95
      %v3248 = vpop.permute.xlu0 %3247
      %3249 = vrot.lane.b32.xlu0 %v2353, 95
      %v3250 = vpop.permute.xlu0 %3249
      %3251 = vrot.lane.b32.xlu0 %v2413, 95
      %v3252 = vpop.permute.xlu0 %3251
      %vm3253 = vcmp.lt.s32.totalorder %v501, 95
      %v3254 = vsel %vm3253, %v3250, %v3252
      %v3255 = vsel %vm3253, %v3248, %v3250
      %v3256 = vsel %vm3253, %v3246, %v3248
      %v3257 = vsel %vm3253, %v3244, %v3246
      %v3258 = vsel %vm3253, %v3252, %v3244
      %s3259 = scalar_lea.vmem %s10, 6
      %v3260 = vld [vmem:[%s3259] ss:$8 sm:$0xf]
      %v3261 = vld [vmem:[%s3259] ss:$8 sm:$0x10]
      %v3262 = vor.u32 %v3260, %v3261
      %v3264 = vperm.slane %v3262, 0
      %v3265 = vperm.slane %v3262, 1
      %v3266 = vperm.slane %v3262, 2
      %v3267 = vperm.slane %v3262, 3
      %v3268 = vperm.slane %v3262, 4
      %v3274 = vmul.f32 %v3257, %v3264
      %v3275 = vmul.f32 %v3256, %v3265
      %v3276 = vmul.f32 %v3255, %v3266
      %v3277 = vmul.f32 %v3254, %v3267
      %v3278 = vmul.f32 %v3258, %v3268
      %s3279 = scalar_lea.vmem %s7, 48
      %v3280 = vld [vmem:[%s3279] sm:$0xff]
      %v3282 = vsel %vm2490, %v3280, 0
      %3284 = vmatpush.msra.mxu0 0.0
      %3285 = vmatpush.msra.mxu0 0.0
      %3286 = vmatpush.msra.mxu0 0.0
      %3287 = vmatpush.msra.mxu0 0.0
      %3288 = vmatpush.msra.mxu0 0.0
      %3289 = vmatpush.msra.mxu0 0.0
      %3290 = vmatpush.msra.mxu0 0.0
      %3291 = vmatpush.msra.mxu0 0.0
      %3292 = vmatpush.msra.mxu0 0.0
      %3293 = vmatpush.msra.mxu0 0.0
      %3294 = vmatpush.msra.mxu0 0.0
      %3295 = vmatpush.msra.mxu0 0.0
      %3296 = vmatpush.msra.mxu0 0.0
      %3297 = vmatpush.msra.mxu0 0.0
      %3298 = vmatpush.msra.mxu0 0.0
      %3299 = vmatpush.msra.mxu0 %v3274
      %3300 = vmatmul.f32.gmra.mxu0 %v3282
      %v3301 = vpop.f32.mrf.mxu0
      %v3302 = vadd.f32 0.0, %v3301
      %3303 = vdwg.mxu0
      %3304 = vmatpush.msra.mxu0 0.0
      %3305 = vmatpush.msra.mxu0 0.0
      %3306 = vmatpush.msra.mxu0 0.0
      %3307 = vmatpush.msra.mxu0 0.0
      %3308 = vmatpush.msra.mxu0 0.0
      %3309 = vmatpush.msra.mxu0 0.0
      %3310 = vmatpush.msra.mxu0 0.0
      %3311 = vmatpush.msra.mxu0 0.0
      %3312 = vmatpush.msra.mxu0 0.0
      %3313 = vmatpush.msra.mxu0 0.0
      %3314 = vmatpush.msra.mxu0 0.0
      %3315 = vmatpush.msra.mxu0 0.0
      %3316 = vmatpush.msra.mxu0 0.0
      %3317 = vmatpush.msra.mxu0 0.0
      %3318 = vmatpush.msra.mxu0 0.0
      %3319 = vmatpush.msra.mxu0 %v3275
      %3320 = vmatmul.f32.gmra.mxu0 %v3282
      %v3321 = vpop.f32.mrf.mxu0
      %v3322 = vadd.f32 0.0, %v3321
      %3323 = vdwg.mxu0
      %3324 = vmatpush.msra.mxu0 0.0
      %3325 = vmatpush.msra.mxu0 0.0
      %3326 = vmatpush.msra.mxu0 0.0
      %3327 = vmatpush.msra.mxu0 0.0
      %3328 = vmatpush.msra.mxu0 0.0
      %3329 = vmatpush.msra.mxu0 0.0
      %3330 = vmatpush.msra.mxu0 0.0
      %3331 = vmatpush.msra.mxu0 0.0
      %3332 = vmatpush.msra.mxu0 0.0
      %3333 = vmatpush.msra.mxu0 0.0
      %3334 = vmatpush.msra.mxu0 0.0
      %3335 = vmatpush.msra.mxu0 0.0
      %3336 = vmatpush.msra.mxu0 0.0
      %3337 = vmatpush.msra.mxu0 0.0
      %3338 = vmatpush.msra.mxu0 0.0
      %3339 = vmatpush.msra.mxu0 %v3276
      %3340 = vmatmul.f32.gmra.mxu0 %v3282
      %v3341 = vpop.f32.mrf.mxu0
      %v3342 = vadd.f32 0.0, %v3341
      %3343 = vdwg.mxu0
      %3344 = vmatpush.msra.mxu0 0.0
      %3345 = vmatpush.msra.mxu0 0.0
      %3346 = vmatpush.msra.mxu0 0.0
      %3347 = vmatpush.msra.mxu0 0.0
      %3348 = vmatpush.msra.mxu0 0.0
      %3349 = vmatpush.msra.mxu0 0.0
      %3350 = vmatpush.msra.mxu0 0.0
      %3351 = vmatpush.msra.mxu0 0.0
      %3352 = vmatpush.msra.mxu0 0.0
      %3353 = vmatpush.msra.mxu0 0.0
      %3354 = vmatpush.msra.mxu0 0.0
      %3355 = vmatpush.msra.mxu0 0.0
      %3356 = vmatpush.msra.mxu0 0.0
      %3357 = vmatpush.msra.mxu0 0.0
      %3358 = vmatpush.msra.mxu0 0.0
      %3359 = vmatpush.msra.mxu0 %v3277
      %3360 = vmatmul.f32.gmra.mxu0 %v3282
      %v3361 = vpop.f32.mrf.mxu0
      %v3362 = vadd.f32 0.0, %v3361
      %3363 = vdwg.mxu0
      %3364 = vmatpush.msra.mxu0 0.0
      %3365 = vmatpush.msra.mxu0 0.0
      %3366 = vmatpush.msra.mxu0 0.0
      %3367 = vmatpush.msra.mxu0 0.0
      %3368 = vmatpush.msra.mxu0 0.0
      %3369 = vmatpush.msra.mxu0 0.0
      %3370 = vmatpush.msra.mxu0 0.0
      %3371 = vmatpush.msra.mxu0 0.0
      %3372 = vmatpush.msra.mxu0 0.0
      %3373 = vmatpush.msra.mxu0 0.0
      %3374 = vmatpush.msra.mxu0 0.0
      %3375 = vmatpush.msra.mxu0 0.0
      %3376 = vmatpush.msra.mxu0 0.0
      %3377 = vmatpush.msra.mxu0 0.0
      %3378 = vmatpush.msra.mxu0 0.0
      %3379 = vmatpush.msra.mxu0 %v3278
      %3380 = vmatmul.f32.gmra.mxu0 %v3282
      %v3381 = vpop.f32.mrf.mxu0
      %v3382 = vadd.f32 0.0, %v3381
      %3383 = vdwg.mxu0
      %v3384 = vadd.f32 %v3238, %v3302
      %v3385 = vadd.f32 %v3239, %v3322
      %v3386 = vadd.f32 %v3240, %v3342
      %v3387 = vadd.f32 %v3241, %v3362
      %v3388 = vadd.f32 %v3242, %v3382
      %3389 = vrot.lane.b32.xlu0 %v2173, 94
      %v3390 = vpop.permute.xlu0 %3389
      %3391 = vrot.lane.b32.xlu0 %v2233, 94
      %v3392 = vpop.permute.xlu0 %3391
      %3393 = vrot.lane.b32.xlu0 %v2293, 94
      %v3394 = vpop.permute.xlu0 %3393
      %3395 = vrot.lane.b32.xlu0 %v2353, 94
      %v3396 = vpop.permute.xlu0 %3395
      %3397 = vrot.lane.b32.xlu0 %v2413, 94
      %v3398 = vpop.permute.xlu0 %3397
      %vm3399 = vcmp.lt.s32.totalorder %v501, 94
      %v3400 = vsel %vm3399, %v3396, %v3398
      %v3401 = vsel %vm3399, %v3394, %v3396
      %v3402 = vsel %vm3399, %v3392, %v3394
      %v3403 = vsel %vm3399, %v3390, %v3392
      %v3404 = vsel %vm3399, %v3398, %v3390
      %s3405 = scalar_lea.vmem %s10, 7
      %v3406 = vld [vmem:[%s3405] ss:$8 sm:$0xf]
      %v3407 = vld [vmem:[%s3405] ss:$8 sm:$0x10]
      %v3408 = vor.u32 %v3406, %v3407
      %v3410 = vperm.slane %v3408, 0
      %v3411 = vperm.slane %v3408, 1
      %v3412 = vperm.slane %v3408, 2
      %v3413 = vperm.slane %v3408, 3
      %v3414 = vperm.slane %v3408, 4
      %v3420 = vmul.f32 %v3403, %v3410
      %v3421 = vmul.f32 %v3402, %v3411
      %v3422 = vmul.f32 %v3401, %v3412
      %v3423 = vmul.f32 %v3400, %v3413
      %v3424 = vmul.f32 %v3404, %v3414
      %s3425 = scalar_lea.vmem %s7, 56
      %v3426 = vld [vmem:[%s3425] sm:$0xff]
      %v3428 = vsel %vm2490, %v3426, 0
      %3430 = vmatpush.msra.mxu0 0.0
      %3431 = vmatpush.msra.mxu0 0.0
      %3432 = vmatpush.msra.mxu0 0.0
      %3433 = vmatpush.msra.mxu0 0.0
      %3434 = vmatpush.msra.mxu0 0.0
      %3435 = vmatpush.msra.mxu0 0.0
      %3436 = vmatpush.msra.mxu0 0.0
      %3437 = vmatpush.msra.mxu0 0.0
      %3438 = vmatpush.msra.mxu0 0.0
      %3439 = vmatpush.msra.mxu0 0.0
      %3440 = vmatpush.msra.mxu0 0.0
      %3441 = vmatpush.msra.mxu0 0.0
      %3442 = vmatpush.msra.mxu0 0.0
      %3443 = vmatpush.msra.mxu0 0.0
      %3444 = vmatpush.msra.mxu0 0.0
      %3445 = vmatpush.msra.mxu0 %v3420
      %3446 = vmatmul.f32.gmra.mxu0 %v3428
      %v3447 = vpop.f32.mrf.mxu0
      %v3448 = vadd.f32 0.0, %v3447
      %3449 = vdwg.mxu0
      %3450 = vmatpush.msra.mxu0 0.0
      %3451 = vmatpush.msra.mxu0 0.0
      %3452 = vmatpush.msra.mxu0 0.0
      %3453 = vmatpush.msra.mxu0 0.0
      %3454 = vmatpush.msra.mxu0 0.0
      %3455 = vmatpush.msra.mxu0 0.0
      %3456 = vmatpush.msra.mxu0 0.0
      %3457 = vmatpush.msra.mxu0 0.0
      %3458 = vmatpush.msra.mxu0 0.0
      %3459 = vmatpush.msra.mxu0 0.0
      %3460 = vmatpush.msra.mxu0 0.0
      %3461 = vmatpush.msra.mxu0 0.0
      %3462 = vmatpush.msra.mxu0 0.0
      %3463 = vmatpush.msra.mxu0 0.0
      %3464 = vmatpush.msra.mxu0 0.0
      %3465 = vmatpush.msra.mxu0 %v3421
      %3466 = vmatmul.f32.gmra.mxu0 %v3428
      %v3467 = vpop.f32.mrf.mxu0
      %v3468 = vadd.f32 0.0, %v3467
      %3469 = vdwg.mxu0
      %3470 = vmatpush.msra.mxu0 0.0
      %3471 = vmatpush.msra.mxu0 0.0
      %3472 = vmatpush.msra.mxu0 0.0
      %3473 = vmatpush.msra.mxu0 0.0
      %3474 = vmatpush.msra.mxu0 0.0
      %3475 = vmatpush.msra.mxu0 0.0
      %3476 = vmatpush.msra.mxu0 0.0
      %3477 = vmatpush.msra.mxu0 0.0
      %3478 = vmatpush.msra.mxu0 0.0
      %3479 = vmatpush.msra.mxu0 0.0
      %3480 = vmatpush.msra.mxu0 0.0
      %3481 = vmatpush.msra.mxu0 0.0
      %3482 = vmatpush.msra.mxu0 0.0
      %3483 = vmatpush.msra.mxu0 0.0
      %3484 = vmatpush.msra.mxu0 0.0
      %3485 = vmatpush.msra.mxu0 %v3422
      %3486 = vmatmul.f32.gmra.mxu0 %v3428
      %v3487 = vpop.f32.mrf.mxu0
      %v3488 = vadd.f32 0.0, %v3487
      %3489 = vdwg.mxu0
      %3490 = vmatpush.msra.mxu0 0.0
      %3491 = vmatpush.msra.mxu0 0.0
      %3492 = vmatpush.msra.mxu0 0.0
      %3493 = vmatpush.msra.mxu0 0.0
      %3494 = vmatpush.msra.mxu0 0.0
      %3495 = vmatpush.msra.mxu0 0.0
      %3496 = vmatpush.msra.mxu0 0.0
      %3497 = vmatpush.msra.mxu0 0.0
      %3498 = vmatpush.msra.mxu0 0.0
      %3499 = vmatpush.msra.mxu0 0.0
      %3500 = vmatpush.msra.mxu0 0.0
      %3501 = vmatpush.msra.mxu0 0.0
      %3502 = vmatpush.msra.mxu0 0.0
      %3503 = vmatpush.msra.mxu0 0.0
      %3504 = vmatpush.msra.mxu0 0.0
      %3505 = vmatpush.msra.mxu0 %v3423
      %3506 = vmatmul.f32.gmra.mxu0 %v3428
      %v3507 = vpop.f32.mrf.mxu0
      %v3508 = vadd.f32 0.0, %v3507
      %3509 = vdwg.mxu0
      %3510 = vmatpush.msra.mxu0 0.0
      %3511 = vmatpush.msra.mxu0 0.0
      %3512 = vmatpush.msra.mxu0 0.0
      %3513 = vmatpush.msra.mxu0 0.0
      %3514 = vmatpush.msra.mxu0 0.0
      %3515 = vmatpush.msra.mxu0 0.0
      %3516 = vmatpush.msra.mxu0 0.0
      %3517 = vmatpush.msra.mxu0 0.0
      %3518 = vmatpush.msra.mxu0 0.0
      %3519 = vmatpush.msra.mxu0 0.0
      %3520 = vmatpush.msra.mxu0 0.0
      %3521 = vmatpush.msra.mxu0 0.0
      %3522 = vmatpush.msra.mxu0 0.0
      %3523 = vmatpush.msra.mxu0 0.0
      %3524 = vmatpush.msra.mxu0 0.0
      %3525 = vmatpush.msra.mxu0 %v3424
      %3526 = vmatmul.f32.gmra.mxu0 %v3428
      %v3527 = vpop.f32.mrf.mxu0
      %v3528 = vadd.f32 0.0, %v3527
      %3529 = vdwg.mxu0
      %v3530 = vadd.f32 %v3384, %v3448
      %v3531 = vadd.f32 %v3385, %v3468
      %v3532 = vadd.f32 %v3386, %v3488
      %v3533 = vadd.f32 %v3387, %v3508
      %v3534 = vadd.f32 %v3388, %v3528
      %3535 = vrot.lane.b32.xlu0 %v2173, 93
      %v3536 = vpop.permute.xlu0 %3535
      %3537 = vrot.lane.b32.xlu0 %v2233, 93
      %v3538 = vpop.permute.xlu0 %3537
      %3539 = vrot.lane.b32.xlu0 %v2293, 93
      %v3540 = vpop.permute.xlu0 %3539
      %3541 = vrot.lane.b32.xlu0 %v2353, 93
      %v3542 = vpop.permute.xlu0 %3541
      %3543 = vrot.lane.b32.xlu0 %v2413, 93
      %v3544 = vpop.permute.xlu0 %3543
      %vm3545 = vcmp.lt.s32.totalorder %v501, 93
      %v3546 = vsel %vm3545, %v3542, %v3544
      %v3547 = vsel %vm3545, %v3540, %v3542
      %v3548 = vsel %vm3545, %v3538, %v3540
      %v3549 = vsel %vm3545, %v3536, %v3538
      %v3550 = vsel %vm3545, %v3544, %v3536
      %s3551 = scalar_lea.vmem %s10, 40
      %v3552 = vld [vmem:[%s3551] ss:$8 sm:$0xf]
      %v3553 = vld [vmem:[%s3551] ss:$8 sm:$0x10]
      %v3554 = vor.u32 %v3552, %v3553
      %v3556 = vperm.slane %v3554, 0
      %v3557 = vperm.slane %v3554, 1
      %v3558 = vperm.slane %v3554, 2
      %v3559 = vperm.slane %v3554, 3
      %v3560 = vperm.slane %v3554, 4
      %v3566 = vmul.f32 %v3549, %v3556
      %v3567 = vmul.f32 %v3548, %v3557
      %v3568 = vmul.f32 %v3547, %v3558
      %v3569 = vmul.f32 %v3546, %v3559
      %v3570 = vmul.f32 %v3550, %v3560
      %s3571 = scalar_lea.vmem %s7, 64
      %v3572 = vld [vmem:[%s3571] sm:$0xff]
      %v3574 = vsel %vm2490, %v3572, 0
      %3576 = vmatpush.msra.mxu0 0.0
      %3577 = vmatpush.msra.mxu0 0.0
      %3578 = vmatpush.msra.mxu0 0.0
      %3579 = vmatpush.msra.mxu0 0.0
      %3580 = vmatpush.msra.mxu0 0.0
      %3581 = vmatpush.msra.mxu0 0.0
      %3582 = vmatpush.msra.mxu0 0.0
      %3583 = vmatpush.msra.mxu0 0.0
      %3584 = vmatpush.msra.mxu0 0.0
      %3585 = vmatpush.msra.mxu0 0.0
      %3586 = vmatpush.msra.mxu0 0.0
      %3587 = vmatpush.msra.mxu0 0.0
      %3588 = vmatpush.msra.mxu0 0.0
      %3589 = vmatpush.msra.mxu0 0.0
      %3590 = vmatpush.msra.mxu0 0.0
      %3591 = vmatpush.msra.mxu0 %v3566
      %3592 = vmatmul.f32.gmra.mxu0 %v3574
      %v3593 = vpop.f32.mrf.mxu0
      %v3594 = vadd.f32 0.0, %v3593
      %3595 = vdwg.mxu0
      %3596 = vmatpush.msra.mxu0 0.0
      %3597 = vmatpush.msra.mxu0 0.0
      %3598 = vmatpush.msra.mxu0 0.0
      %3599 = vmatpush.msra.mxu0 0.0
      %3600 = vmatpush.msra.mxu0 0.0
      %3601 = vmatpush.msra.mxu0 0.0
      %3602 = vmatpush.msra.mxu0 0.0
      %3603 = vmatpush.msra.mxu0 0.0
      %3604 = vmatpush.msra.mxu0 0.0
      %3605 = vmatpush.msra.mxu0 0.0
      %3606 = vmatpush.msra.mxu0 0.0
      %3607 = vmatpush.msra.mxu0 0.0
      %3608 = vmatpush.msra.mxu0 0.0
      %3609 = vmatpush.msra.mxu0 0.0
      %3610 = vmatpush.msra.mxu0 0.0
      %3611 = vmatpush.msra.mxu0 %v3567
      %3612 = vmatmul.f32.gmra.mxu0 %v3574
      %v3613 = vpop.f32.mrf.mxu0
      %v3614 = vadd.f32 0.0, %v3613
      %3615 = vdwg.mxu0
      %3616 = vmatpush.msra.mxu0 0.0
      %3617 = vmatpush.msra.mxu0 0.0
      %3618 = vmatpush.msra.mxu0 0.0
      %3619 = vmatpush.msra.mxu0 0.0
      %3620 = vmatpush.msra.mxu0 0.0
      %3621 = vmatpush.msra.mxu0 0.0
      %3622 = vmatpush.msra.mxu0 0.0
      %3623 = vmatpush.msra.mxu0 0.0
      %3624 = vmatpush.msra.mxu0 0.0
      %3625 = vmatpush.msra.mxu0 0.0
      %3626 = vmatpush.msra.mxu0 0.0
      %3627 = vmatpush.msra.mxu0 0.0
      %3628 = vmatpush.msra.mxu0 0.0
      %3629 = vmatpush.msra.mxu0 0.0
      %3630 = vmatpush.msra.mxu0 0.0
      %3631 = vmatpush.msra.mxu0 %v3568
      %3632 = vmatmul.f32.gmra.mxu0 %v3574
      %v3633 = vpop.f32.mrf.mxu0
      %v3634 = vadd.f32 0.0, %v3633
      %3635 = vdwg.mxu0
      %3636 = vmatpush.msra.mxu0 0.0
      %3637 = vmatpush.msra.mxu0 0.0
      %3638 = vmatpush.msra.mxu0 0.0
      %3639 = vmatpush.msra.mxu0 0.0
      %3640 = vmatpush.msra.mxu0 0.0
      %3641 = vmatpush.msra.mxu0 0.0
      %3642 = vmatpush.msra.mxu0 0.0
      %3643 = vmatpush.msra.mxu0 0.0
      %3644 = vmatpush.msra.mxu0 0.0
      %3645 = vmatpush.msra.mxu0 0.0
      %3646 = vmatpush.msra.mxu0 0.0
      %3647 = vmatpush.msra.mxu0 0.0
      %3648 = vmatpush.msra.mxu0 0.0
      %3649 = vmatpush.msra.mxu0 0.0
      %3650 = vmatpush.msra.mxu0 0.0
      %3651 = vmatpush.msra.mxu0 %v3569
      %3652 = vmatmul.f32.gmra.mxu0 %v3574
      %v3653 = vpop.f32.mrf.mxu0
      %v3654 = vadd.f32 0.0, %v3653
      %3655 = vdwg.mxu0
      %3656 = vmatpush.msra.mxu0 0.0
      %3657 = vmatpush.msra.mxu0 0.0
      %3658 = vmatpush.msra.mxu0 0.0
      %3659 = vmatpush.msra.mxu0 0.0
      %3660 = vmatpush.msra.mxu0 0.0
      %3661 = vmatpush.msra.mxu0 0.0
      %3662 = vmatpush.msra.mxu0 0.0
      %3663 = vmatpush.msra.mxu0 0.0
      %3664 = vmatpush.msra.mxu0 0.0
      %3665 = vmatpush.msra.mxu0 0.0
      %3666 = vmatpush.msra.mxu0 0.0
      %3667 = vmatpush.msra.mxu0 0.0
      %3668 = vmatpush.msra.mxu0 0.0
      %3669 = vmatpush.msra.mxu0 0.0
      %3670 = vmatpush.msra.mxu0 0.0
      %3671 = vmatpush.msra.mxu0 %v3570
      %3672 = vmatmul.f32.gmra.mxu0 %v3574
      %v3673 = vpop.f32.mrf.mxu0
      %v3674 = vadd.f32 0.0, %v3673
      %3675 = vdwg.mxu0
      %v3676 = vadd.f32 %v3530, %v3594
      %v3677 = vadd.f32 %v3531, %v3614
      %v3678 = vadd.f32 %v3532, %v3634
      %v3679 = vadd.f32 %v3533, %v3654
      %v3680 = vadd.f32 %v3534, %v3674
      %3682 = vset.pattern.permute.xlu0 0
      %3683 = vperm.xlu0 %3682, %v2415
      %v3684 = vpop.permute.xlu0 %3683
      %v3686 = vadd.f32 %v3676, %v3684
      %v3687 = vadd.f32 %v3677, %v3684
      %v3688 = vadd.f32 %v3678, %v3684
      %v3689 = vadd.f32 %v3679, %v3684
      %v3690 = vadd.f32 %v3680, %v3684
      %v3691 = vmax.f32 %v3686, 0.0
      %v3692 = vmax.f32 %v3687, 0.0
      %v3693 = vmax.f32 %v3688, 0.0
      %v3694 = vmax.f32 %v3689, 0.0
      %v3695 = vmax.f32 %v3690, 0.0
      %3696 = vrot.lane.b32.xlu0 %v3691, 35
      %v3697 = vpop.permute.xlu0 %3696
      %3698 = vrot.lane.b32.xlu0 %v3692, 35
      %v3699 = vpop.permute.xlu0 %3698
      %3700 = vrot.lane.b32.xlu0 %v3693, 35
      %v3701 = vpop.permute.xlu0 %3700
      %3702 = vrot.lane.b32.xlu0 %v3694, 35
      %v3703 = vpop.permute.xlu0 %3702
      %3704 = vrot.lane.b32.xlu0 %v3695, 35
      %v3705 = vpop.permute.xlu0 %3704
      %v3706 = vsel %vm2426, %v3703, %v3705
      %v3707 = vsel %vm2426, %v3701, %v3703
      %v3708 = vsel %vm2426, %v3699, %v3701
      %v3709 = vsel %vm2426, %v3697, %v3699
      %v3710 = vsel %vm2426, %v3705, %v3697
      %v3711 = vmul.f32 %v3710, %v2436
      %v3712 = vmul.f32 %v3709, %v2437
      %v3713 = vmul.f32 %v3708, %v2438
      %v3714 = vmul.f32 %v3707, %v2439
      %v3715 = vmul.f32 %v3706, %v2440
      %3716 = vrot.lane.b32.xlu0 %v3691, 34
      %v3717 = vpop.permute.xlu0 %3716
      %3718 = vrot.lane.b32.xlu0 %v3692, 34
      %v3719 = vpop.permute.xlu0 %3718
      %3720 = vrot.lane.b32.xlu0 %v3693, 34
      %v3721 = vpop.permute.xlu0 %3720
      %3722 = vrot.lane.b32.xlu0 %v3694, 34
      %v3723 = vpop.permute.xlu0 %3722
      %3724 = vrot.lane.b32.xlu0 %v3695, 34
      %v3725 = vpop.permute.xlu0 %3724
      %v3726 = vsel %vm2462, %v3723, %v3725
      %v3727 = vsel %vm2462, %v3721, %v3723
      %v3728 = vsel %vm2462, %v3719, %v3721
      %v3729 = vsel %vm2462, %v3717, %v3719
      %v3730 = vsel %vm2462, %v3725, %v3717
      %v3731 = vmul.f32 %v3730, %v2473
      %v3732 = vmul.f32 %v3729, %v2474
      %v3733 = vmul.f32 %v3728, %v2475
      %v3734 = vmul.f32 %v3727, %v2476
      %v3735 = vmul.f32 %v3726, %v2477
      %3736 = vmatpush.msra.mxu0 0.0
      %3737 = vmatpush.msra.mxu0 0.0
      %3738 = vmatpush.msra.mxu0 0.0
      %3739 = vmatpush.msra.mxu0 0.0
      %3740 = vmatpush.msra.mxu0 0.0
      %3741 = vmatpush.msra.mxu0 0.0
      %3742 = vmatpush.msra.mxu0 0.0
      %3743 = vmatpush.msra.mxu0 0.0
      %3744 = vmatpush.msra.mxu0 0.0
      %3745 = vmatpush.msra.mxu0 0.0
      %3746 = vmatpush.msra.mxu0 0.0
      %3747 = vmatpush.msra.mxu0 0.0
      %3748 = vmatpush.msra.mxu0 0.0
      %3749 = vmatpush.msra.mxu0 0.0
      %3750 = vmatpush.msra.mxu0 0.0
      %3751 = vmatpush.msra.mxu0 %v3731
      %3752 = vmatmul.f32.gmra.mxu0 %v2492
      %v3753 = vpop.f32.mrf.mxu0
      %v3754 = vadd.f32 0.0, %v3753
      %3755 = vdwg.mxu0
      %3756 = vmatpush.msra.mxu0 0.0
      %3757 = vmatpush.msra.mxu0 0.0
      %3758 = vmatpush.msra.mxu0 0.0
      %3759 = vmatpush.msra.mxu0 0.0
      %3760 = vmatpush.msra.mxu0 0.0
      %3761 = vmatpush.msra.mxu0 0.0
      %3762 = vmatpush.msra.mxu0 0.0
      %3763 = vmatpush.msra.mxu0 0.0
      %3764 = vmatpush.msra.mxu0 0.0
      %3765 = vmatpush.msra.mxu0 0.0
      %3766 = vmatpush.msra.mxu0 0.0
      %3767 = vmatpush.msra.mxu0 0.0
      %3768 = vmatpush.msra.mxu0 0.0
      %3769 = vmatpush.msra.mxu0 0.0
      %3770 = vmatpush.msra.mxu0 0.0
      %3771 = vmatpush.msra.mxu0 %v3732
      %3772 = vmatmul.f32.gmra.mxu0 %v2492
      %v3773 = vpop.f32.mrf.mxu0
      %v3774 = vadd.f32 0.0, %v3773
      %3775 = vdwg.mxu0
      %3776 = vmatpush.msra.mxu0 0.0
      %3777 = vmatpush.msra.mxu0 0.0
      %3778 = vmatpush.msra.mxu0 0.0
      %3779 = vmatpush.msra.mxu0 0.0
      %3780 = vmatpush.msra.mxu0 0.0
      %3781 = vmatpush.msra.mxu0 0.0
      %3782 = vmatpush.msra.mxu0 0.0
      %3783 = vmatpush.msra.mxu0 0.0
      %3784 = vmatpush.msra.mxu0 0.0
      %3785 = vmatpush.msra.mxu0 0.0
      %3786 = vmatpush.msra.mxu0 0.0
      %3787 = vmatpush.msra.mxu0 0.0
      %3788 = vmatpush.msra.mxu0 0.0
      %3789 = vmatpush.msra.mxu0 0.0
      %3790 = vmatpush.msra.mxu0 0.0
      %3791 = vmatpush.msra.mxu0 %v3733
      %3792 = vmatmul.f32.gmra.mxu0 %v2492
      %v3793 = vpop.f32.mrf.mxu0
      %v3794 = vadd.f32 0.0, %v3793
      %3795 = vdwg.mxu0
      %3796 = vmatpush.msra.mxu0 0.0
      %3797 = vmatpush.msra.mxu0 0.0
      %3798 = vmatpush.msra.mxu0 0.0
      %3799 = vmatpush.msra.mxu0 0.0
      %3800 = vmatpush.msra.mxu0 0.0
      %3801 = vmatpush.msra.mxu0 0.0
      %3802 = vmatpush.msra.mxu0 0.0
      %3803 = vmatpush.msra.mxu0 0.0
      %3804 = vmatpush.msra.mxu0 0.0
      %3805 = vmatpush.msra.mxu0 0.0
      %3806 = vmatpush.msra.mxu0 0.0
      %3807 = vmatpush.msra.mxu0 0.0
      %3808 = vmatpush.msra.mxu0 0.0
      %3809 = vmatpush.msra.mxu0 0.0
      %3810 = vmatpush.msra.mxu0 0.0
      %3811 = vmatpush.msra.mxu0 %v3734
      %3812 = vmatmul.f32.gmra.mxu0 %v2492
      %v3813 = vpop.f32.mrf.mxu0
      %v3814 = vadd.f32 0.0, %v3813
      %3815 = vdwg.mxu0
      %3816 = vmatpush.msra.mxu0 0.0
      %3817 = vmatpush.msra.mxu0 0.0
      %3818 = vmatpush.msra.mxu0 0.0
      %3819 = vmatpush.msra.mxu0 0.0
      %3820 = vmatpush.msra.mxu0 0.0
      %3821 = vmatpush.msra.mxu0 0.0
      %3822 = vmatpush.msra.mxu0 0.0
      %3823 = vmatpush.msra.mxu0 0.0
      %3824 = vmatpush.msra.mxu0 0.0
      %3825 = vmatpush.msra.mxu0 0.0
      %3826 = vmatpush.msra.mxu0 0.0
      %3827 = vmatpush.msra.mxu0 0.0
      %3828 = vmatpush.msra.mxu0 0.0
      %3829 = vmatpush.msra.mxu0 0.0
      %3830 = vmatpush.msra.mxu0 0.0
      %3831 = vmatpush.msra.mxu0 %v3735
      %3832 = vmatmul.f32.gmra.mxu0 %v2492
      %v3833 = vpop.f32.mrf.mxu0
      %v3834 = vadd.f32 0.0, %v3833
      %3835 = vdwg.mxu0
      %3836 = vmatpush.msra.mxu0 0.0
      %3837 = vmatpush.msra.mxu0 0.0
      %3838 = vmatpush.msra.mxu0 0.0
      %3839 = vmatpush.msra.mxu0 0.0
      %3840 = vmatpush.msra.mxu0 0.0
      %3841 = vmatpush.msra.mxu0 0.0
      %3842 = vmatpush.msra.mxu0 0.0
      %3843 = vmatpush.msra.mxu0 0.0
      %3844 = vmatpush.msra.mxu0 0.0
      %3845 = vmatpush.msra.mxu0 0.0
      %3846 = vmatpush.msra.mxu0 0.0
      %3847 = vmatpush.msra.mxu0 0.0
      %3848 = vmatpush.msra.mxu0 0.0
      %3849 = vmatpush.msra.mxu0 0.0
      %3850 = vmatpush.msra.mxu0 0.0
      %3851 = vmatpush.msra.mxu0 %v3711
      %3852 = vmatmul.f32.gmra.mxu0 %v2595
      %v3853 = vpop.f32.mrf.mxu0
      %v3854 = vadd.f32 %v3754, %v3853
      %3855 = vdwg.mxu0
      %3856 = vmatpush.msra.mxu0 0.0
      %3857 = vmatpush.msra.mxu0 0.0
      %3858 = vmatpush.msra.mxu0 0.0
      %3859 = vmatpush.msra.mxu0 0.0
      %3860 = vmatpush.msra.mxu0 0.0
      %3861 = vmatpush.msra.mxu0 0.0
      %3862 = vmatpush.msra.mxu0 0.0
      %3863 = vmatpush.msra.mxu0 0.0
      %3864 = vmatpush.msra.mxu0 0.0
      %3865 = vmatpush.msra.mxu0 0.0
      %3866 = vmatpush.msra.mxu0 0.0
      %3867 = vmatpush.msra.mxu0 0.0
      %3868 = vmatpush.msra.mxu0 0.0
      %3869 = vmatpush.msra.mxu0 0.0
      %3870 = vmatpush.msra.mxu0 0.0
      %3871 = vmatpush.msra.mxu0 %v3712
      %3872 = vmatmul.f32.gmra.mxu0 %v2595
      %v3873 = vpop.f32.mrf.mxu0
      %v3874 = vadd.f32 %v3774, %v3873
      %3875 = vdwg.mxu0
      %3876 = vmatpush.msra.mxu0 0.0
      %3877 = vmatpush.msra.mxu0 0.0
      %3878 = vmatpush.msra.mxu0 0.0
      %3879 = vmatpush.msra.mxu0 0.0
      %3880 = vmatpush.msra.mxu0 0.0
      %3881 = vmatpush.msra.mxu0 0.0
      %3882 = vmatpush.msra.mxu0 0.0
      %3883 = vmatpush.msra.mxu0 0.0
      %3884 = vmatpush.msra.mxu0 0.0
      %3885 = vmatpush.msra.mxu0 0.0
      %3886 = vmatpush.msra.mxu0 0.0
      %3887 = vmatpush.msra.mxu0 0.0
      %3888 = vmatpush.msra.mxu0 0.0
      %3889 = vmatpush.msra.mxu0 0.0
      %3890 = vmatpush.msra.mxu0 0.0
      %3891 = vmatpush.msra.mxu0 %v3713
      %3892 = vmatmul.f32.gmra.mxu0 %v2595
      %v3893 = vpop.f32.mrf.mxu0
      %v3894 = vadd.f32 %v3794, %v3893
      %3895 = vdwg.mxu0
      %3896 = vmatpush.msra.mxu0 0.0
      %3897 = vmatpush.msra.mxu0 0.0
      %3898 = vmatpush.msra.mxu0 0.0
      %3899 = vmatpush.msra.mxu0 0.0
      %3900 = vmatpush.msra.mxu0 0.0
      %3901 = vmatpush.msra.mxu0 0.0
      %3902 = vmatpush.msra.mxu0 0.0
      %3903 = vmatpush.msra.mxu0 0.0
      %3904 = vmatpush.msra.mxu0 0.0
      %3905 = vmatpush.msra.mxu0 0.0
      %3906 = vmatpush.msra.mxu0 0.0
      %3907 = vmatpush.msra.mxu0 0.0
      %3908 = vmatpush.msra.mxu0 0.0
      %3909 = vmatpush.msra.mxu0 0.0
      %3910 = vmatpush.msra.mxu0 0.0
      %3911 = vmatpush.msra.mxu0 %v3714
      %3912 = vmatmul.f32.gmra.mxu0 %v2595
      %v3913 = vpop.f32.mrf.mxu0
      %v3914 = vadd.f32 %v3814, %v3913
      %3915 = vdwg.mxu0
      %3916 = vmatpush.msra.mxu0 0.0
      %3917 = vmatpush.msra.mxu0 0.0
      %3918 = vmatpush.msra.mxu0 0.0
      %3919 = vmatpush.msra.mxu0 0.0
      %3920 = vmatpush.msra.mxu0 0.0
      %3921 = vmatpush.msra.mxu0 0.0
      %3922 = vmatpush.msra.mxu0 0.0
      %3923 = vmatpush.msra.mxu0 0.0
      %3924 = vmatpush.msra.mxu0 0.0
      %3925 = vmatpush.msra.mxu0 0.0
      %3926 = vmatpush.msra.mxu0 0.0
      %3927 = vmatpush.msra.mxu0 0.0
      %3928 = vmatpush.msra.mxu0 0.0
      %3929 = vmatpush.msra.mxu0 0.0
      %3930 = vmatpush.msra.mxu0 0.0
      %3931 = vmatpush.msra.mxu0 %v3715
      %3932 = vmatmul.f32.gmra.mxu0 %v2595
      %v3933 = vpop.f32.mrf.mxu0
      %v3934 = vadd.f32 %v3834, %v3933
      %3935 = vdwg.mxu0
      %3936 = vrot.lane.b32.xlu0 %v3691, 33
      %v3937 = vpop.permute.xlu0 %3936
      %3938 = vrot.lane.b32.xlu0 %v3692, 33
      %v3939 = vpop.permute.xlu0 %3938
      %3940 = vrot.lane.b32.xlu0 %v3693, 33
      %v3941 = vpop.permute.xlu0 %3940
      %3942 = vrot.lane.b32.xlu0 %v3694, 33
      %v3943 = vpop.permute.xlu0 %3942
      %3944 = vrot.lane.b32.xlu0 %v3695, 33
      %v3945 = vpop.permute.xlu0 %3944
      %v3946 = vsel %vm2707, %v3943, %v3945
      %v3947 = vsel %vm2707, %v3941, %v3943
      %v3948 = vsel %vm2707, %v3939, %v3941
      %v3949 = vsel %vm2707, %v3937, %v3939
      %v3950 = vsel %vm2707, %v3945, %v3937
      %v3951 = vmul.f32 %v3950, %v2718
      %v3952 = vmul.f32 %v3949, %v2719
      %v3953 = vmul.f32 %v3948, %v2720
      %v3954 = vmul.f32 %v3947, %v2721
      %v3955 = vmul.f32 %v3946, %v2722
      %3956 = vmatpush.msra.mxu0 0.0
      %3957 = vmatpush.msra.mxu0 0.0
      %3958 = vmatpush.msra.mxu0 0.0
      %3959 = vmatpush.msra.mxu0 0.0
      %3960 = vmatpush.msra.mxu0 0.0
      %3961 = vmatpush.msra.mxu0 0.0
      %3962 = vmatpush.msra.mxu0 0.0
      %3963 = vmatpush.msra.mxu0 0.0
      %3964 = vmatpush.msra.mxu0 0.0
      %3965 = vmatpush.msra.mxu0 0.0
      %3966 = vmatpush.msra.mxu0 0.0
      %3967 = vmatpush.msra.mxu0 0.0
      %3968 = vmatpush.msra.mxu0 0.0
      %3969 = vmatpush.msra.mxu0 0.0
      %3970 = vmatpush.msra.mxu0 0.0
      %3971 = vmatpush.msra.mxu0 %v3951
      %3972 = vmatmul.f32.gmra.mxu0 %v2736
      %v3973 = vpop.f32.mrf.mxu0
      %v3974 = vadd.f32 0.0, %v3973
      %3975 = vdwg.mxu0
      %3976 = vmatpush.msra.mxu0 0.0
      %3977 = vmatpush.msra.mxu0 0.0
      %3978 = vmatpush.msra.mxu0 0.0
      %3979 = vmatpush.msra.mxu0 0.0
      %3980 = vmatpush.msra.mxu0 0.0
      %3981 = vmatpush.msra.mxu0 0.0
      %3982 = vmatpush.msra.mxu0 0.0
      %3983 = vmatpush.msra.mxu0 0.0
      %3984 = vmatpush.msra.mxu0 0.0
      %3985 = vmatpush.msra.mxu0 0.0
      %3986 = vmatpush.msra.mxu0 0.0
      %3987 = vmatpush.msra.mxu0 0.0
      %3988 = vmatpush.msra.mxu0 0.0
      %3989 = vmatpush.msra.mxu0 0.0
      %3990 = vmatpush.msra.mxu0 0.0
      %3991 = vmatpush.msra.mxu0 %v3952
      %3992 = vmatmul.f32.gmra.mxu0 %v2736
      %v3993 = vpop.f32.mrf.mxu0
      %v3994 = vadd.f32 0.0, %v3993
      %3995 = vdwg.mxu0
      %3996 = vmatpush.msra.mxu0 0.0
      %3997 = vmatpush.msra.mxu0 0.0
      %3998 = vmatpush.msra.mxu0 0.0
      %3999 = vmatpush.msra.mxu0 0.0
      %4000 = vmatpush.msra.mxu0 0.0
      %4001 = vmatpush.msra.mxu0 0.0
      %4002 = vmatpush.msra.mxu0 0.0
      %4003 = vmatpush.msra.mxu0 0.0
      %4004 = vmatpush.msra.mxu0 0.0
      %4005 = vmatpush.msra.mxu0 0.0
      %4006 = vmatpush.msra.mxu0 0.0
      %4007 = vmatpush.msra.mxu0 0.0
      %4008 = vmatpush.msra.mxu0 0.0
      %4009 = vmatpush.msra.mxu0 0.0
      %4010 = vmatpush.msra.mxu0 0.0
      %4011 = vmatpush.msra.mxu0 %v3953
      %4012 = vmatmul.f32.gmra.mxu0 %v2736
      %v4013 = vpop.f32.mrf.mxu0
      %v4014 = vadd.f32 0.0, %v4013
      %4015 = vdwg.mxu0
      %4016 = vmatpush.msra.mxu0 0.0
      %4017 = vmatpush.msra.mxu0 0.0
      %4018 = vmatpush.msra.mxu0 0.0
      %4019 = vmatpush.msra.mxu0 0.0
      %4020 = vmatpush.msra.mxu0 0.0
      %4021 = vmatpush.msra.mxu0 0.0
      %4022 = vmatpush.msra.mxu0 0.0
      %4023 = vmatpush.msra.mxu0 0.0
      %4024 = vmatpush.msra.mxu0 0.0
      %4025 = vmatpush.msra.mxu0 0.0
      %4026 = vmatpush.msra.mxu0 0.0
      %4027 = vmatpush.msra.mxu0 0.0
      %4028 = vmatpush.msra.mxu0 0.0
      %4029 = vmatpush.msra.mxu0 0.0
      %4030 = vmatpush.msra.mxu0 0.0
      %4031 = vmatpush.msra.mxu0 %v3954
      %4032 = vmatmul.f32.gmra.mxu0 %v2736
      %v4033 = vpop.f32.mrf.mxu0
      %v4034 = vadd.f32 0.0, %v4033
      %4035 = vdwg.mxu0
      %4036 = vmatpush.msra.mxu0 0.0
      %4037 = vmatpush.msra.mxu0 0.0
      %4038 = vmatpush.msra.mxu0 0.0
      %4039 = vmatpush.msra.mxu0 0.0
      %4040 = vmatpush.msra.mxu0 0.0
      %4041 = vmatpush.msra.mxu0 0.0
      %4042 = vmatpush.msra.mxu0 0.0
      %4043 = vmatpush.msra.mxu0 0.0
      %4044 = vmatpush.msra.mxu0 0.0
      %4045 = vmatpush.msra.mxu0 0.0
      %4046 = vmatpush.msra.mxu0 0.0
      %4047 = vmatpush.msra.mxu0 0.0
      %4048 = vmatpush.msra.mxu0 0.0
      %4049 = vmatpush.msra.mxu0 0.0
      %4050 = vmatpush.msra.mxu0 0.0
      %4051 = vmatpush.msra.mxu0 %v3955
      %4052 = vmatmul.f32.gmra.mxu0 %v2736
      %v4053 = vpop.f32.mrf.mxu0
      %v4054 = vadd.f32 0.0, %v4053
      %4055 = vdwg.mxu0
      %v4056 = vadd.f32 %v3854, %v3974
      %v4057 = vadd.f32 %v3874, %v3994
      %v4058 = vadd.f32 %v3894, %v4014
      %v4059 = vadd.f32 %v3914, %v4034
      %v4060 = vadd.f32 %v3934, %v4054
      %4061 = vrot.lane.b32.xlu0 %v3691, 1
      %v4062 = vpop.permute.xlu0 %4061
      %4063 = vrot.lane.b32.xlu0 %v3692, 1
      %v4064 = vpop.permute.xlu0 %4063
      %4065 = vrot.lane.b32.xlu0 %v3693, 1
      %v4066 = vpop.permute.xlu0 %4065
      %4067 = vrot.lane.b32.xlu0 %v3694, 1
      %v4068 = vpop.permute.xlu0 %4067
      %4069 = vrot.lane.b32.xlu0 %v3695, 1
      %v4070 = vpop.permute.xlu0 %4069
      %v4071 = vsel %vm793, %v4068, %v4070
      %v4072 = vsel %vm793, %v4066, %v4068
      %v4073 = vsel %vm793, %v4064, %v4066
      %v4074 = vsel %vm793, %v4062, %v4064
      %v4075 = vsel %vm793, %v4070, %v4062
      %v4076 = vmul.f32 %v4075, %v2863
      %v4077 = vmul.f32 %v4074, %v2864
      %v4078 = vmul.f32 %v4073, %v2865
      %v4079 = vmul.f32 %v4072, %v2866
      %v4080 = vmul.f32 %v4071, %v2867
      %4081 = vmatpush.msra.mxu0 0.0
      %4082 = vmatpush.msra.mxu0 0.0
      %4083 = vmatpush.msra.mxu0 0.0
      %4084 = vmatpush.msra.mxu0 0.0
      %4085 = vmatpush.msra.mxu0 0.0
      %4086 = vmatpush.msra.mxu0 0.0
      %4087 = vmatpush.msra.mxu0 0.0
      %4088 = vmatpush.msra.mxu0 0.0
      %4089 = vmatpush.msra.mxu0 0.0
      %4090 = vmatpush.msra.mxu0 0.0
      %4091 = vmatpush.msra.mxu0 0.0
      %4092 = vmatpush.msra.mxu0 0.0
      %4093 = vmatpush.msra.mxu0 0.0
      %4094 = vmatpush.msra.mxu0 0.0
      %4095 = vmatpush.msra.mxu0 0.0
      %4096 = vmatpush.msra.mxu0 %v4076
      %4097 = vmatmul.f32.gmra.mxu0 %v2881
      %v4098 = vpop.f32.mrf.mxu0
      %v4099 = vadd.f32 0.0, %v4098
      %4100 = vdwg.mxu0
      %4101 = vmatpush.msra.mxu0 0.0
      %4102 = vmatpush.msra.mxu0 0.0
      %4103 = vmatpush.msra.mxu0 0.0
      %4104 = vmatpush.msra.mxu0 0.0
      %4105 = vmatpush.msra.mxu0 0.0
      %4106 = vmatpush.msra.mxu0 0.0
      %4107 = vmatpush.msra.mxu0 0.0
      %4108 = vmatpush.msra.mxu0 0.0
      %4109 = vmatpush.msra.mxu0 0.0
      %4110 = vmatpush.msra.mxu0 0.0
      %4111 = vmatpush.msra.mxu0 0.0
      %4112 = vmatpush.msra.mxu0 0.0
      %4113 = vmatpush.msra.mxu0 0.0
      %4114 = vmatpush.msra.mxu0 0.0
      %4115 = vmatpush.msra.mxu0 0.0
      %4116 = vmatpush.msra.mxu0 %v4077
      %4117 = vmatmul.f32.gmra.mxu0 %v2881
      %v4118 = vpop.f32.mrf.mxu0
      %v4119 = vadd.f32 0.0, %v4118
      %4120 = vdwg.mxu0
      %4121 = vmatpush.msra.mxu0 0.0
      %4122 = vmatpush.msra.mxu0 0.0
      %4123 = vmatpush.msra.mxu0 0.0
      %4124 = vmatpush.msra.mxu0 0.0
      %4125 = vmatpush.msra.mxu0 0.0
      %4126 = vmatpush.msra.mxu0 0.0
      %4127 = vmatpush.msra.mxu0 0.0
      %4128 = vmatpush.msra.mxu0 0.0
      %4129 = vmatpush.msra.mxu0 0.0
      %4130 = vmatpush.msra.mxu0 0.0
      %4131 = vmatpush.msra.mxu0 0.0
      %4132 = vmatpush.msra.mxu0 0.0
      %4133 = vmatpush.msra.mxu0 0.0
      %4134 = vmatpush.msra.mxu0 0.0
      %4135 = vmatpush.msra.mxu0 0.0
      %4136 = vmatpush.msra.mxu0 %v4078
      %4137 = vmatmul.f32.gmra.mxu0 %v2881
      %v4138 = vpop.f32.mrf.mxu0
      %v4139 = vadd.f32 0.0, %v4138
      %4140 = vdwg.mxu0
      %4141 = vmatpush.msra.mxu0 0.0
      %4142 = vmatpush.msra.mxu0 0.0
      %4143 = vmatpush.msra.mxu0 0.0
      %4144 = vmatpush.msra.mxu0 0.0
      %4145 = vmatpush.msra.mxu0 0.0
      %4146 = vmatpush.msra.mxu0 0.0
      %4147 = vmatpush.msra.mxu0 0.0
      %4148 = vmatpush.msra.mxu0 0.0
      %4149 = vmatpush.msra.mxu0 0.0
      %4150 = vmatpush.msra.mxu0 0.0
      %4151 = vmatpush.msra.mxu0 0.0
      %4152 = vmatpush.msra.mxu0 0.0
      %4153 = vmatpush.msra.mxu0 0.0
      %4154 = vmatpush.msra.mxu0 0.0
      %4155 = vmatpush.msra.mxu0 0.0
      %4156 = vmatpush.msra.mxu0 %v4079
      %4157 = vmatmul.f32.gmra.mxu0 %v2881
      %v4158 = vpop.f32.mrf.mxu0
      %v4159 = vadd.f32 0.0, %v4158
      %4160 = vdwg.mxu0
      %4161 = vmatpush.msra.mxu0 0.0
      %4162 = vmatpush.msra.mxu0 0.0
      %4163 = vmatpush.msra.mxu0 0.0
      %4164 = vmatpush.msra.mxu0 0.0
      %4165 = vmatpush.msra.mxu0 0.0
      %4166 = vmatpush.msra.mxu0 0.0
      %4167 = vmatpush.msra.mxu0 0.0
      %4168 = vmatpush.msra.mxu0 0.0
      %4169 = vmatpush.msra.mxu0 0.0
      %4170 = vmatpush.msra.mxu0 0.0
      %4171 = vmatpush.msra.mxu0 0.0
      %4172 = vmatpush.msra.mxu0 0.0
      %4173 = vmatpush.msra.mxu0 0.0
      %4174 = vmatpush.msra.mxu0 0.0
      %4175 = vmatpush.msra.mxu0 0.0
      %4176 = vmatpush.msra.mxu0 %v4080
      %4177 = vmatmul.f32.gmra.mxu0 %v2881
      %v4178 = vpop.f32.mrf.mxu0
      %v4179 = vadd.f32 0.0, %v4178
      %4180 = vdwg.mxu0
      %v4181 = vadd.f32 %v4056, %v4099
      %v4182 = vadd.f32 %v4057, %v4119
      %v4183 = vadd.f32 %v4058, %v4139
      %v4184 = vadd.f32 %v4059, %v4159
      %v4185 = vadd.f32 %v4060, %v4179
      %4186 = vmatpush.msra.mxu0 0.0
      %4187 = vmatpush.msra.mxu0 0.0
      %4188 = vmatpush.msra.mxu0 0.0
      %4189 = vmatpush.msra.mxu0 0.0
      %4190 = vmatpush.msra.mxu0 0.0
      %4191 = vmatpush.msra.mxu0 0.0
      %4192 = vmatpush.msra.mxu0 0.0
      %4193 = vmatpush.msra.mxu0 0.0
      %4194 = vmatpush.msra.mxu0 0.0
      %4195 = vmatpush.msra.mxu0 0.0
      %4196 = vmatpush.msra.mxu0 0.0
      %4197 = vmatpush.msra.mxu0 0.0
      %4198 = vmatpush.msra.mxu0 0.0
      %4199 = vmatpush.msra.mxu0 0.0
      %4200 = vmatpush.msra.mxu0 0.0
      %4201 = vmatpush.msra.mxu0 %v3691
      %4202 = vmatmul.f32.gmra.mxu0 %v2991
      %v4203 = vpop.f32.mrf.mxu0
      %v4204 = vadd.f32 0.0, %v4203
      %4205 = vdwg.mxu0
      %4206 = vmatpush.msra.mxu0 0.0
      %4207 = vmatpush.msra.mxu0 0.0
      %4208 = vmatpush.msra.mxu0 0.0
      %4209 = vmatpush.msra.mxu0 0.0
      %4210 = vmatpush.msra.mxu0 0.0
      %4211 = vmatpush.msra.mxu0 0.0
      %4212 = vmatpush.msra.mxu0 0.0
      %4213 = vmatpush.msra.mxu0 0.0
      %4214 = vmatpush.msra.mxu0 0.0
      %4215 = vmatpush.msra.mxu0 0.0
      %4216 = vmatpush.msra.mxu0 0.0
      %4217 = vmatpush.msra.mxu0 0.0
      %4218 = vmatpush.msra.mxu0 0.0
      %4219 = vmatpush.msra.mxu0 0.0
      %4220 = vmatpush.msra.mxu0 0.0
      %4221 = vmatpush.msra.mxu0 %v3692
      %4222 = vmatmul.f32.gmra.mxu0 %v2991
      %v4223 = vpop.f32.mrf.mxu0
      %v4224 = vadd.f32 0.0, %v4223
      %4225 = vdwg.mxu0
      %4226 = vmatpush.msra.mxu0 0.0
      %4227 = vmatpush.msra.mxu0 0.0
      %4228 = vmatpush.msra.mxu0 0.0
      %4229 = vmatpush.msra.mxu0 0.0
      %4230 = vmatpush.msra.mxu0 0.0
      %4231 = vmatpush.msra.mxu0 0.0
      %4232 = vmatpush.msra.mxu0 0.0
      %4233 = vmatpush.msra.mxu0 0.0
      %4234 = vmatpush.msra.mxu0 0.0
      %4235 = vmatpush.msra.mxu0 0.0
      %4236 = vmatpush.msra.mxu0 0.0
      %4237 = vmatpush.msra.mxu0 0.0
      %4238 = vmatpush.msra.mxu0 0.0
      %4239 = vmatpush.msra.mxu0 0.0
      %4240 = vmatpush.msra.mxu0 0.0
      %4241 = vmatpush.msra.mxu0 %v3693
      %4242 = vmatmul.f32.gmra.mxu0 %v2991
      %v4243 = vpop.f32.mrf.mxu0
      %v4244 = vadd.f32 0.0, %v4243
      %4245 = vdwg.mxu0
      %4246 = vmatpush.msra.mxu0 0.0
      %4247 = vmatpush.msra.mxu0 0.0
      %4248 = vmatpush.msra.mxu0 0.0
      %4249 = vmatpush.msra.mxu0 0.0
      %4250 = vmatpush.msra.mxu0 0.0
      %4251 = vmatpush.msra.mxu0 0.0
      %4252 = vmatpush.msra.mxu0 0.0
      %4253 = vmatpush.msra.mxu0 0.0
      %4254 = vmatpush.msra.mxu0 0.0
      %4255 = vmatpush.msra.mxu0 0.0
      %4256 = vmatpush.msra.mxu0 0.0
      %4257 = vmatpush.msra.mxu0 0.0
      %4258 = vmatpush.msra.mxu0 0.0
      %4259 = vmatpush.msra.mxu0 0.0
      %4260 = vmatpush.msra.mxu0 0.0
      %4261 = vmatpush.msra.mxu0 %v3694
      %4262 = vmatmul.f32.gmra.mxu0 %v2991
      %v4263 = vpop.f32.mrf.mxu0
      %v4264 = vadd.f32 0.0, %v4263
      %4265 = vdwg.mxu0
      %4266 = vmatpush.msra.mxu0 0.0
      %4267 = vmatpush.msra.mxu0 0.0
      %4268 = vmatpush.msra.mxu0 0.0
      %4269 = vmatpush.msra.mxu0 0.0
      %4270 = vmatpush.msra.mxu0 0.0
      %4271 = vmatpush.msra.mxu0 0.0
      %4272 = vmatpush.msra.mxu0 0.0
      %4273 = vmatpush.msra.mxu0 0.0
      %4274 = vmatpush.msra.mxu0 0.0
      %4275 = vmatpush.msra.mxu0 0.0
      %4276 = vmatpush.msra.mxu0 0.0
      %4277 = vmatpush.msra.mxu0 0.0
      %4278 = vmatpush.msra.mxu0 0.0
      %4279 = vmatpush.msra.mxu0 0.0
      %4280 = vmatpush.msra.mxu0 0.0
      %4281 = vmatpush.msra.mxu0 %v3695
      %4282 = vmatmul.f32.gmra.mxu0 %v2991
      %v4283 = vpop.f32.mrf.mxu0
      %v4284 = vadd.f32 0.0, %v4283
      %4285 = vdwg.mxu0
      %v4286 = vadd.f32 %v4181, %v4204
      %v4287 = vadd.f32 %v4182, %v4224
      %v4288 = vadd.f32 %v4183, %v4244
      %v4289 = vadd.f32 %v4184, %v4264
      %v4290 = vadd.f32 %v4185, %v4284
      %4291 = vrot.lane.b32.xlu0 %v3691, 127
      %v4292 = vpop.permute.xlu0 %4291
      %4293 = vrot.lane.b32.xlu0 %v3692, 127
      %v4294 = vpop.permute.xlu0 %4293
      %4295 = vrot.lane.b32.xlu0 %v3693, 127
      %v4296 = vpop.permute.xlu0 %4295
      %4297 = vrot.lane.b32.xlu0 %v3694, 127
      %v4298 = vpop.permute.xlu0 %4297
      %4299 = vrot.lane.b32.xlu0 %v3695, 127
      %v4300 = vpop.permute.xlu0 %4299
      %v4301 = vsel %vm969, %v4298, %v4300
      %v4302 = vsel %vm969, %v4296, %v4298
      %v4303 = vsel %vm969, %v4294, %v4296
      %v4304 = vsel %vm969, %v4292, %v4294
      %v4305 = vsel %vm969, %v4300, %v4292
      %v4306 = vmul.f32 %v4304, %v3118
      %v4307 = vmul.f32 %v4303, %v3119
      %v4308 = vmul.f32 %v4302, %v3120
      %v4309 = vmul.f32 %v4301, %v3121
      %v4310 = vmul.f32 %v4305, %v3122
      %4311 = vmatpush.msra.mxu0 0.0
      %4312 = vmatpush.msra.mxu0 0.0
      %4313 = vmatpush.msra.mxu0 0.0
      %4314 = vmatpush.msra.mxu0 0.0
      %4315 = vmatpush.msra.mxu0 0.0
      %4316 = vmatpush.msra.mxu0 0.0
      %4317 = vmatpush.msra.mxu0 0.0
      %4318 = vmatpush.msra.mxu0 0.0
      %4319 = vmatpush.msra.mxu0 0.0
      %4320 = vmatpush.msra.mxu0 0.0
      %4321 = vmatpush.msra.mxu0 0.0
      %4322 = vmatpush.msra.mxu0 0.0
      %4323 = vmatpush.msra.mxu0 0.0
      %4324 = vmatpush.msra.mxu0 0.0
      %4325 = vmatpush.msra.mxu0 0.0
      %4326 = vmatpush.msra.mxu0 %v4306
      %4327 = vmatmul.f32.gmra.mxu0 %v3136
      %v4328 = vpop.f32.mrf.mxu0
      %v4329 = vadd.f32 0.0, %v4328
      %4330 = vdwg.mxu0
      %4331 = vmatpush.msra.mxu0 0.0
      %4332 = vmatpush.msra.mxu0 0.0
      %4333 = vmatpush.msra.mxu0 0.0
      %4334 = vmatpush.msra.mxu0 0.0
      %4335 = vmatpush.msra.mxu0 0.0
      %4336 = vmatpush.msra.mxu0 0.0
      %4337 = vmatpush.msra.mxu0 0.0
      %4338 = vmatpush.msra.mxu0 0.0
      %4339 = vmatpush.msra.mxu0 0.0
      %4340 = vmatpush.msra.mxu0 0.0
      %4341 = vmatpush.msra.mxu0 0.0
      %4342 = vmatpush.msra.mxu0 0.0
      %4343 = vmatpush.msra.mxu0 0.0
      %4344 = vmatpush.msra.mxu0 0.0
      %4345 = vmatpush.msra.mxu0 0.0
      %4346 = vmatpush.msra.mxu0 %v4307
      %4347 = vmatmul.f32.gmra.mxu0 %v3136
      %v4348 = vpop.f32.mrf.mxu0
      %v4349 = vadd.f32 0.0, %v4348
      %4350 = vdwg.mxu0
      %4351 = vmatpush.msra.mxu0 0.0
      %4352 = vmatpush.msra.mxu0 0.0
      %4353 = vmatpush.msra.mxu0 0.0
      %4354 = vmatpush.msra.mxu0 0.0
      %4355 = vmatpush.msra.mxu0 0.0
      %4356 = vmatpush.msra.mxu0 0.0
      %4357 = vmatpush.msra.mxu0 0.0
      %4358 = vmatpush.msra.mxu0 0.0
      %4359 = vmatpush.msra.mxu0 0.0
      %4360 = vmatpush.msra.mxu0 0.0
      %4361 = vmatpush.msra.mxu0 0.0
      %4362 = vmatpush.msra.mxu0 0.0
      %4363 = vmatpush.msra.mxu0 0.0
      %4364 = vmatpush.msra.mxu0 0.0
      %4365 = vmatpush.msra.mxu0 0.0
      %4366 = vmatpush.msra.mxu0 %v4308
      %4367 = vmatmul.f32.gmra.mxu0 %v3136
      %v4368 = vpop.f32.mrf.mxu0
      %v4369 = vadd.f32 0.0, %v4368
      %4370 = vdwg.mxu0
      %4371 = vmatpush.msra.mxu0 0.0
      %4372 = vmatpush.msra.mxu0 0.0
      %4373 = vmatpush.msra.mxu0 0.0
      %4374 = vmatpush.msra.mxu0 0.0
      %4375 = vmatpush.msra.mxu0 0.0
      %4376 = vmatpush.msra.mxu0 0.0
      %4377 = vmatpush.msra.mxu0 0.0
      %4378 = vmatpush.msra.mxu0 0.0
      %4379 = vmatpush.msra.mxu0 0.0
      %4380 = vmatpush.msra.mxu0 0.0
      %4381 = vmatpush.msra.mxu0 0.0
      %4382 = vmatpush.msra.mxu0 0.0
      %4383 = vmatpush.msra.mxu0 0.0
      %4384 = vmatpush.msra.mxu0 0.0
      %4385 = vmatpush.msra.mxu0 0.0
      %4386 = vmatpush.msra.mxu0 %v4309
      %4387 = vmatmul.f32.gmra.mxu0 %v3136
      %v4388 = vpop.f32.mrf.mxu0
      %v4389 = vadd.f32 0.0, %v4388
      %4390 = vdwg.mxu0
      %4391 = vmatpush.msra.mxu0 0.0
      %4392 = vmatpush.msra.mxu0 0.0
      %4393 = vmatpush.msra.mxu0 0.0
      %4394 = vmatpush.msra.mxu0 0.0
      %4395 = vmatpush.msra.mxu0 0.0
      %4396 = vmatpush.msra.mxu0 0.0
      %4397 = vmatpush.msra.mxu0 0.0
      %4398 = vmatpush.msra.mxu0 0.0
      %4399 = vmatpush.msra.mxu0 0.0
      %4400 = vmatpush.msra.mxu0 0.0
      %4401 = vmatpush.msra.mxu0 0.0
      %4402 = vmatpush.msra.mxu0 0.0
      %4403 = vmatpush.msra.mxu0 0.0
      %4404 = vmatpush.msra.mxu0 0.0
      %4405 = vmatpush.msra.mxu0 0.0
      %4406 = vmatpush.msra.mxu0 %v4310
      %4407 = vmatmul.f32.gmra.mxu0 %v3136
      %v4408 = vpop.f32.mrf.mxu0
      %v4409 = vadd.f32 0.0, %v4408
      %4410 = vdwg.mxu0
      %v4411 = vadd.f32 %v4286, %v4329
      %v4412 = vadd.f32 %v4287, %v4349
      %v4413 = vadd.f32 %v4288, %v4369
      %v4414 = vadd.f32 %v4289, %v4389
      %v4415 = vadd.f32 %v4290, %v4409
      %4416 = vrot.lane.b32.xlu0 %v3691, 95
      %v4417 = vpop.permute.xlu0 %4416
      %4418 = vrot.lane.b32.xlu0 %v3692, 95
      %v4419 = vpop.permute.xlu0 %4418
      %4420 = vrot.lane.b32.xlu0 %v3693, 95
      %v4421 = vpop.permute.xlu0 %4420
      %4422 = vrot.lane.b32.xlu0 %v3694, 95
      %v4423 = vpop.permute.xlu0 %4422
      %4424 = vrot.lane.b32.xlu0 %v3695, 95
      %v4425 = vpop.permute.xlu0 %4424
      %v4426 = vsel %vm3253, %v4423, %v4425
      %v4427 = vsel %vm3253, %v4421, %v4423
      %v4428 = vsel %vm3253, %v4419, %v4421
      %v4429 = vsel %vm3253, %v4417, %v4419
      %v4430 = vsel %vm3253, %v4425, %v4417
      %v4431 = vmul.f32 %v4429, %v3264
      %v4432 = vmul.f32 %v4428, %v3265
      %v4433 = vmul.f32 %v4427, %v3266
      %v4434 = vmul.f32 %v4426, %v3267
      %v4435 = vmul.f32 %v4430, %v3268
      %4436 = vmatpush.msra.mxu0 0.0
      %4437 = vmatpush.msra.mxu0 0.0
      %4438 = vmatpush.msra.mxu0 0.0
      %4439 = vmatpush.msra.mxu0 0.0
      %4440 = vmatpush.msra.mxu0 0.0
      %4441 = vmatpush.msra.mxu0 0.0
      %4442 = vmatpush.msra.mxu0 0.0
      %4443 = vmatpush.msra.mxu0 0.0
      %4444 = vmatpush.msra.mxu0 0.0
      %4445 = vmatpush.msra.mxu0 0.0
      %4446 = vmatpush.msra.mxu0 0.0
      %4447 = vmatpush.msra.mxu0 0.0
      %4448 = vmatpush.msra.mxu0 0.0
      %4449 = vmatpush.msra.mxu0 0.0
      %4450 = vmatpush.msra.mxu0 0.0
      %4451 = vmatpush.msra.mxu0 %v4431
      %4452 = vmatmul.f32.gmra.mxu0 %v3282
      %v4453 = vpop.f32.mrf.mxu0
      %v4454 = vadd.f32 0.0, %v4453
      %4455 = vdwg.mxu0
      %4456 = vmatpush.msra.mxu0 0.0
      %4457 = vmatpush.msra.mxu0 0.0
      %4458 = vmatpush.msra.mxu0 0.0
      %4459 = vmatpush.msra.mxu0 0.0
      %4460 = vmatpush.msra.mxu0 0.0
      %4461 = vmatpush.msra.mxu0 0.0
      %4462 = vmatpush.msra.mxu0 0.0
      %4463 = vmatpush.msra.mxu0 0.0
      %4464 = vmatpush.msra.mxu0 0.0
      %4465 = vmatpush.msra.mxu0 0.0
      %4466 = vmatpush.msra.mxu0 0.0
      %4467 = vmatpush.msra.mxu0 0.0
      %4468 = vmatpush.msra.mxu0 0.0
      %4469 = vmatpush.msra.mxu0 0.0
      %4470 = vmatpush.msra.mxu0 0.0
      %4471 = vmatpush.msra.mxu0 %v4432
      %4472 = vmatmul.f32.gmra.mxu0 %v3282
      %v4473 = vpop.f32.mrf.mxu0
      %v4474 = vadd.f32 0.0, %v4473
      %4475 = vdwg.mxu0
      %4476 = vmatpush.msra.mxu0 0.0
      %4477 = vmatpush.msra.mxu0 0.0
      %4478 = vmatpush.msra.mxu0 0.0
      %4479 = vmatpush.msra.mxu0 0.0
      %4480 = vmatpush.msra.mxu0 0.0
      %4481 = vmatpush.msra.mxu0 0.0
      %4482 = vmatpush.msra.mxu0 0.0
      %4483 = vmatpush.msra.mxu0 0.0
      %4484 = vmatpush.msra.mxu0 0.0
      %4485 = vmatpush.msra.mxu0 0.0
      %4486 = vmatpush.msra.mxu0 0.0
      %4487 = vmatpush.msra.mxu0 0.0
      %4488 = vmatpush.msra.mxu0 0.0
      %4489 = vmatpush.msra.mxu0 0.0
      %4490 = vmatpush.msra.mxu0 0.0
      %4491 = vmatpush.msra.mxu0 %v4433
      %4492 = vmatmul.f32.gmra.mxu0 %v3282
      %v4493 = vpop.f32.mrf.mxu0
      %v4494 = vadd.f32 0.0, %v4493
      %4495 = vdwg.mxu0
      %4496 = vmatpush.msra.mxu0 0.0
      %4497 = vmatpush.msra.mxu0 0.0
      %4498 = vmatpush.msra.mxu0 0.0
      %4499 = vmatpush.msra.mxu0 0.0
      %4500 = vmatpush.msra.mxu0 0.0
      %4501 = vmatpush.msra.mxu0 0.0
      %4502 = vmatpush.msra.mxu0 0.0
      %4503 = vmatpush.msra.mxu0 0.0
      %4504 = vmatpush.msra.mxu0 0.0
      %4505 = vmatpush.msra.mxu0 0.0
      %4506 = vmatpush.msra.mxu0 0.0
      %4507 = vmatpush.msra.mxu0 0.0
      %4508 = vmatpush.msra.mxu0 0.0
      %4509 = vmatpush.msra.mxu0 0.0
      %4510 = vmatpush.msra.mxu0 0.0
      %4511 = vmatpush.msra.mxu0 %v4434
      %4512 = vmatmul.f32.gmra.mxu0 %v3282
      %v4513 = vpop.f32.mrf.mxu0
      %v4514 = vadd.f32 0.0, %v4513
      %4515 = vdwg.mxu0
      %4516 = vmatpush.msra.mxu0 0.0
      %4517 = vmatpush.msra.mxu0 0.0
      %4518 = vmatpush.msra.mxu0 0.0
      %4519 = vmatpush.msra.mxu0 0.0
      %4520 = vmatpush.msra.mxu0 0.0
      %4521 = vmatpush.msra.mxu0 0.0
      %4522 = vmatpush.msra.mxu0 0.0
      %4523 = vmatpush.msra.mxu0 0.0
      %4524 = vmatpush.msra.mxu0 0.0
      %4525 = vmatpush.msra.mxu0 0.0
      %4526 = vmatpush.msra.mxu0 0.0
      %4527 = vmatpush.msra.mxu0 0.0
      %4528 = vmatpush.msra.mxu0 0.0
      %4529 = vmatpush.msra.mxu0 0.0
      %4530 = vmatpush.msra.mxu0 0.0
      %4531 = vmatpush.msra.mxu0 %v4435
      %4532 = vmatmul.f32.gmra.mxu0 %v3282
      %v4533 = vpop.f32.mrf.mxu0
      %v4534 = vadd.f32 0.0, %v4533
      %4535 = vdwg.mxu0
      %v4536 = vadd.f32 %v4411, %v4454
      %v4537 = vadd.f32 %v4412, %v4474
      %v4538 = vadd.f32 %v4413, %v4494
      %v4539 = vadd.f32 %v4414, %v4514
      %v4540 = vadd.f32 %v4415, %v4534
      %4541 = vrot.lane.b32.xlu0 %v3691, 94
      %v4542 = vpop.permute.xlu0 %4541
      %4543 = vrot.lane.b32.xlu0 %v3692, 94
      %v4544 = vpop.permute.xlu0 %4543
      %4545 = vrot.lane.b32.xlu0 %v3693, 94
      %v4546 = vpop.permute.xlu0 %4545
      %4547 = vrot.lane.b32.xlu0 %v3694, 94
      %v4548 = vpop.permute.xlu0 %4547
      %4549 = vrot.lane.b32.xlu0 %v3695, 94
      %v4550 = vpop.permute.xlu0 %4549
      %v4551 = vsel %vm3399, %v4548, %v4550
      %v4552 = vsel %vm3399, %v4546, %v4548
      %v4553 = vsel %vm3399, %v4544, %v4546
      %v4554 = vsel %vm3399, %v4542, %v4544
      %v4555 = vsel %vm3399, %v4550, %v4542
      %v4556 = vmul.f32 %v4554, %v3410
      %v4557 = vmul.f32 %v4553, %v3411
      %v4558 = vmul.f32 %v4552, %v3412
      %v4559 = vmul.f32 %v4551, %v3413
      %v4560 = vmul.f32 %v4555, %v3414
      %4561 = vmatpush.msra.mxu0 0.0
      %4562 = vmatpush.msra.mxu0 0.0
      %4563 = vmatpush.msra.mxu0 0.0
      %4564 = vmatpush.msra.mxu0 0.0
      %4565 = vmatpush.msra.mxu0 0.0
      %4566 = vmatpush.msra.mxu0 0.0
      %4567 = vmatpush.msra.mxu0 0.0
      %4568 = vmatpush.msra.mxu0 0.0
      %4569 = vmatpush.msra.mxu0 0.0
      %4570 = vmatpush.msra.mxu0 0.0
      %4571 = vmatpush.msra.mxu0 0.0
      %4572 = vmatpush.msra.mxu0 0.0
      %4573 = vmatpush.msra.mxu0 0.0
      %4574 = vmatpush.msra.mxu0 0.0
      %4575 = vmatpush.msra.mxu0 0.0
      %4576 = vmatpush.msra.mxu0 %v4556
      %4577 = vmatmul.f32.gmra.mxu0 %v3428
      %v4578 = vpop.f32.mrf.mxu0
      %v4579 = vadd.f32 0.0, %v4578
      %4580 = vdwg.mxu0
      %4581 = vmatpush.msra.mxu0 0.0
      %4582 = vmatpush.msra.mxu0 0.0
      %4583 = vmatpush.msra.mxu0 0.0
      %4584 = vmatpush.msra.mxu0 0.0
      %4585 = vmatpush.msra.mxu0 0.0
      %4586 = vmatpush.msra.mxu0 0.0
      %4587 = vmatpush.msra.mxu0 0.0
      %4588 = vmatpush.msra.mxu0 0.0
      %4589 = vmatpush.msra.mxu0 0.0
      %4590 = vmatpush.msra.mxu0 0.0
      %4591 = vmatpush.msra.mxu0 0.0
      %4592 = vmatpush.msra.mxu0 0.0
      %4593 = vmatpush.msra.mxu0 0.0
      %4594 = vmatpush.msra.mxu0 0.0
      %4595 = vmatpush.msra.mxu0 0.0
      %4596 = vmatpush.msra.mxu0 %v4557
      %4597 = vmatmul.f32.gmra.mxu0 %v3428
      %v4598 = vpop.f32.mrf.mxu0
      %v4599 = vadd.f32 0.0, %v4598
      %4600 = vdwg.mxu0
      %4601 = vmatpush.msra.mxu0 0.0
      %4602 = vmatpush.msra.mxu0 0.0
      %4603 = vmatpush.msra.mxu0 0.0
      %4604 = vmatpush.msra.mxu0 0.0
      %4605 = vmatpush.msra.mxu0 0.0
      %4606 = vmatpush.msra.mxu0 0.0
      %4607 = vmatpush.msra.mxu0 0.0
      %4608 = vmatpush.msra.mxu0 0.0
      %4609 = vmatpush.msra.mxu0 0.0
      %4610 = vmatpush.msra.mxu0 0.0
      %4611 = vmatpush.msra.mxu0 0.0
      %4612 = vmatpush.msra.mxu0 0.0
      %4613 = vmatpush.msra.mxu0 0.0
      %4614 = vmatpush.msra.mxu0 0.0
      %4615 = vmatpush.msra.mxu0 0.0
      %4616 = vmatpush.msra.mxu0 %v4558
      %4617 = vmatmul.f32.gmra.mxu0 %v3428
      %v4618 = vpop.f32.mrf.mxu0
      %v4619 = vadd.f32 0.0, %v4618
      %4620 = vdwg.mxu0
      %4621 = vmatpush.msra.mxu0 0.0
      %4622 = vmatpush.msra.mxu0 0.0
      %4623 = vmatpush.msra.mxu0 0.0
      %4624 = vmatpush.msra.mxu0 0.0
      %4625 = vmatpush.msra.mxu0 0.0
      %4626 = vmatpush.msra.mxu0 0.0
      %4627 = vmatpush.msra.mxu0 0.0
      %4628 = vmatpush.msra.mxu0 0.0
      %4629 = vmatpush.msra.mxu0 0.0
      %4630 = vmatpush.msra.mxu0 0.0
      %4631 = vmatpush.msra.mxu0 0.0
      %4632 = vmatpush.msra.mxu0 0.0
      %4633 = vmatpush.msra.mxu0 0.0
      %4634 = vmatpush.msra.mxu0 0.0
      %4635 = vmatpush.msra.mxu0 0.0
      %4636 = vmatpush.msra.mxu0 %v4559
      %4637 = vmatmul.f32.gmra.mxu0 %v3428
      %v4638 = vpop.f32.mrf.mxu0
      %v4639 = vadd.f32 0.0, %v4638
      %4640 = vdwg.mxu0
      %4641 = vmatpush.msra.mxu0 0.0
      %4642 = vmatpush.msra.mxu0 0.0
      %4643 = vmatpush.msra.mxu0 0.0
      %4644 = vmatpush.msra.mxu0 0.0
      %4645 = vmatpush.msra.mxu0 0.0
      %4646 = vmatpush.msra.mxu0 0.0
      %4647 = vmatpush.msra.mxu0 0.0
      %4648 = vmatpush.msra.mxu0 0.0
      %4649 = vmatpush.msra.mxu0 0.0
      %4650 = vmatpush.msra.mxu0 0.0
      %4651 = vmatpush.msra.mxu0 0.0
      %4652 = vmatpush.msra.mxu0 0.0
      %4653 = vmatpush.msra.mxu0 0.0
      %4654 = vmatpush.msra.mxu0 0.0
      %4655 = vmatpush.msra.mxu0 0.0
      %4656 = vmatpush.msra.mxu0 %v4560
      %4657 = vmatmul.f32.gmra.mxu0 %v3428
      %v4658 = vpop.f32.mrf.mxu0
      %v4659 = vadd.f32 0.0, %v4658
      %4660 = vdwg.mxu0
      %v4661 = vadd.f32 %v4536, %v4579
      %v4662 = vadd.f32 %v4537, %v4599
      %v4663 = vadd.f32 %v4538, %v4619
      %v4664 = vadd.f32 %v4539, %v4639
      %v4665 = vadd.f32 %v4540, %v4659
      %4666 = vrot.lane.b32.xlu0 %v3691, 93
      %v4667 = vpop.permute.xlu0 %4666
      %4668 = vrot.lane.b32.xlu0 %v3692, 93
      %v4669 = vpop.permute.xlu0 %4668
      %4670 = vrot.lane.b32.xlu0 %v3693, 93
      %v4671 = vpop.permute.xlu0 %4670
      %4672 = vrot.lane.b32.xlu0 %v3694, 93
      %v4673 = vpop.permute.xlu0 %4672
      %4674 = vrot.lane.b32.xlu0 %v3695, 93
      %v4675 = vpop.permute.xlu0 %4674
      %v4676 = vsel %vm3545, %v4673, %v4675
      %v4677 = vsel %vm3545, %v4671, %v4673
      %v4678 = vsel %vm3545, %v4669, %v4671
      %v4679 = vsel %vm3545, %v4667, %v4669
      %v4680 = vsel %vm3545, %v4675, %v4667
      %v4681 = vmul.f32 %v4679, %v3556
      %v4682 = vmul.f32 %v4678, %v3557
      %v4683 = vmul.f32 %v4677, %v3558
      %v4684 = vmul.f32 %v4676, %v3559
      %v4685 = vmul.f32 %v4680, %v3560
      %4686 = vmatpush.msra.mxu0 0.0
      %4687 = vmatpush.msra.mxu0 0.0
      %4688 = vmatpush.msra.mxu0 0.0
      %4689 = vmatpush.msra.mxu0 0.0
      %4690 = vmatpush.msra.mxu0 0.0
      %4691 = vmatpush.msra.mxu0 0.0
      %4692 = vmatpush.msra.mxu0 0.0
      %4693 = vmatpush.msra.mxu0 0.0
      %4694 = vmatpush.msra.mxu0 0.0
      %4695 = vmatpush.msra.mxu0 0.0
      %4696 = vmatpush.msra.mxu0 0.0
      %4697 = vmatpush.msra.mxu0 0.0
      %4698 = vmatpush.msra.mxu0 0.0
      %4699 = vmatpush.msra.mxu0 0.0
      %4700 = vmatpush.msra.mxu0 0.0
      %4701 = vmatpush.msra.mxu0 %v4681
      %4702 = vmatmul.f32.gmra.mxu0 %v3574
      %v4703 = vpop.f32.mrf.mxu0
      %v4704 = vadd.f32 0.0, %v4703
      %4705 = vdwg.mxu0
      %4706 = vmatpush.msra.mxu0 0.0
      %4707 = vmatpush.msra.mxu0 0.0
      %4708 = vmatpush.msra.mxu0 0.0
      %4709 = vmatpush.msra.mxu0 0.0
      %4710 = vmatpush.msra.mxu0 0.0
      %4711 = vmatpush.msra.mxu0 0.0
      %4712 = vmatpush.msra.mxu0 0.0
      %4713 = vmatpush.msra.mxu0 0.0
      %4714 = vmatpush.msra.mxu0 0.0
      %4715 = vmatpush.msra.mxu0 0.0
      %4716 = vmatpush.msra.mxu0 0.0
      %4717 = vmatpush.msra.mxu0 0.0
      %4718 = vmatpush.msra.mxu0 0.0
      %4719 = vmatpush.msra.mxu0 0.0
      %4720 = vmatpush.msra.mxu0 0.0
      %4721 = vmatpush.msra.mxu0 %v4682
      %4722 = vmatmul.f32.gmra.mxu0 %v3574
      %v4723 = vpop.f32.mrf.mxu0
      %v4724 = vadd.f32 0.0, %v4723
      %4725 = vdwg.mxu0
      %4726 = vmatpush.msra.mxu0 0.0
      %4727 = vmatpush.msra.mxu0 0.0
      %4728 = vmatpush.msra.mxu0 0.0
      %4729 = vmatpush.msra.mxu0 0.0
      %4730 = vmatpush.msra.mxu0 0.0
      %4731 = vmatpush.msra.mxu0 0.0
      %4732 = vmatpush.msra.mxu0 0.0
      %4733 = vmatpush.msra.mxu0 0.0
      %4734 = vmatpush.msra.mxu0 0.0
      %4735 = vmatpush.msra.mxu0 0.0
      %4736 = vmatpush.msra.mxu0 0.0
      %4737 = vmatpush.msra.mxu0 0.0
      %4738 = vmatpush.msra.mxu0 0.0
      %4739 = vmatpush.msra.mxu0 0.0
      %4740 = vmatpush.msra.mxu0 0.0
      %4741 = vmatpush.msra.mxu0 %v4683
      %4742 = vmatmul.f32.gmra.mxu0 %v3574
      %v4743 = vpop.f32.mrf.mxu0
      %v4744 = vadd.f32 0.0, %v4743
      %4745 = vdwg.mxu0
      %4746 = vmatpush.msra.mxu0 0.0
      %4747 = vmatpush.msra.mxu0 0.0
      %4748 = vmatpush.msra.mxu0 0.0
      %4749 = vmatpush.msra.mxu0 0.0
      %4750 = vmatpush.msra.mxu0 0.0
      %4751 = vmatpush.msra.mxu0 0.0
      %4752 = vmatpush.msra.mxu0 0.0
      %4753 = vmatpush.msra.mxu0 0.0
      %4754 = vmatpush.msra.mxu0 0.0
      %4755 = vmatpush.msra.mxu0 0.0
      %4756 = vmatpush.msra.mxu0 0.0
      %4757 = vmatpush.msra.mxu0 0.0
      %4758 = vmatpush.msra.mxu0 0.0
      %4759 = vmatpush.msra.mxu0 0.0
      %4760 = vmatpush.msra.mxu0 0.0
      %4761 = vmatpush.msra.mxu0 %v4684
      %4762 = vmatmul.f32.gmra.mxu0 %v3574
      %v4763 = vpop.f32.mrf.mxu0
      %v4764 = vadd.f32 0.0, %v4763
      %4765 = vdwg.mxu0
      %4766 = vmatpush.msra.mxu0 0.0
      %4767 = vmatpush.msra.mxu0 0.0
      %4768 = vmatpush.msra.mxu0 0.0
      %4769 = vmatpush.msra.mxu0 0.0
      %4770 = vmatpush.msra.mxu0 0.0
      %4771 = vmatpush.msra.mxu0 0.0
      %4772 = vmatpush.msra.mxu0 0.0
      %4773 = vmatpush.msra.mxu0 0.0
      %4774 = vmatpush.msra.mxu0 0.0
      %4775 = vmatpush.msra.mxu0 0.0
      %4776 = vmatpush.msra.mxu0 0.0
      %4777 = vmatpush.msra.mxu0 0.0
      %4778 = vmatpush.msra.mxu0 0.0
      %4779 = vmatpush.msra.mxu0 0.0
      %4780 = vmatpush.msra.mxu0 0.0
      %4781 = vmatpush.msra.mxu0 %v4685
      %4782 = vmatmul.f32.gmra.mxu0 %v3574
      %v4783 = vpop.f32.mrf.mxu0
      %v4784 = vadd.f32 0.0, %v4783
      %4785 = vdwg.mxu0
      %v4786 = vadd.f32 %v4661, %v4704
      %v4787 = vadd.f32 %v4662, %v4724
      %v4788 = vadd.f32 %v4663, %v4744
      %v4789 = vadd.f32 %v4664, %v4764
      %v4790 = vadd.f32 %v4665, %v4784
      %v4791 = vadd.f32 %v4786, %v3684
      %v4792 = vadd.f32 %v4787, %v3684
      %v4793 = vadd.f32 %v4788, %v3684
      %v4794 = vadd.f32 %v4789, %v3684
      %v4795 = vadd.f32 %v4790, %v3684
      %v4796 = vmax.f32 %v4791, 0.0
      %v4797 = vmax.f32 %v4792, 0.0
      %v4798 = vmax.f32 %v4793, 0.0
      %v4799 = vmax.f32 %v4794, 0.0
      %v4800 = vmax.f32 %v4795, 0.0
      %4801 = vst [vmem:[%s403] sm:$0xff] %v4796
      %4802 = vst [vmem:[%s403 + $0x8] sm:$0xff] %v4797
      %4803 = vst [vmem:[%s403 + $0x10] sm:$0xff] %v4798
      %4804 = vst [vmem:[%s403 + $0x18] sm:$0xff] %v4799
      %4805 = vst [vmem:[%s403 + $0x20] sm:$0xff] %v4800
      %p4806 = scmp.lt.s32.totalorder %s22, 1
      %s4807 = scalar_select %p4806, %s22, 1
      %s4808 = smul.addr %s4807, 5
      %s4809 = smul.addr %s4808, 8
      %s4810 = scalar_lea.vmem %s11, %s4809
      // Predicated region
      $region65: #{upsampling_block_forward.1} parent=63 // pred_check
        %p4811 = pneg %p281
      $region66: #{upsampling_block_forward.1} parent=63 // pred_check_branch
        %4813 = sbr.rel (%p4811) target = $region68
      $region67: #{upsampling_block_forward.1} parent=63 // pred_region
        _
      $region68: #{upsampling_block_forward.1} parent=63 // pred_fallthru
        _
    $region64: #{upsampling_block_forward.1} parent=5 // pred_fallthru
      _
    %p4814 = scmp.le.s32.totalorder 2, %s17
    // Predicated region
    $region69: #{upsampling_block_forward.1} parent=5 // pred_check
      %p4815 = pneg %p4814
    $region70: #{upsampling_block_forward.1} parent=5 // pred_check_branch
      %4817 = sbr.rel (%p4815) target = $region72
    $region71: #{upsampling_block_forward.1} parent=5 // pred_region
      %s4818 = ssub.s32 %s17, 2
      // Predicated region
      $region73: #{upsampling_block_forward.1} parent=71 // pred_check
        %p4819 = pneg %p287
      $region74: #{upsampling_block_forward.1} parent=71 // pred_check_branch
        %4821 = sbr.rel (%p4819) target = $region76
      $region75: #{upsampling_block_forward.1} parent=71 // pred_region
        %p4822 = scmp.lt.s32.totalorder %s23, 1
        %s4823 = scalar_select %p4822, %s23, 1
        %s4824 = smul.addr %s4823, 5
        %s4825 = smul.addr %s4824, 8
        %s4826 = scalar_lea.vmem %s11, %s4825
      $region76: #{upsampling_block_forward.1} parent=71 // pred_fallthru
        _
    $region72: #{upsampling_block_forward.1} parent=5 // pred_fallthru
      _
  $region6: #{upsampling_block_forward.1} parent=0 // loop_footer
    %s21 = sadd.s32 1, %s17
  $region7: #{upsampling_block_forward.1} parent=0 // loop_footer_branch
    %16 = sbr.rel target = $region3
  $region8: #{upsampling_block_forward.1} parent=0 // loop_exit
    _

</llo_original>
